<compile_context>
chip_gen: v6e
topology: v6e:2x2x1
jax: 0.10.0
libtpu: 0.0.40
codegen_flags: <defaults>
</compile_context>

<pallas_src>
import functools

import jax
import jax.numpy as jnp
from jax import lax
from jax.experimental import pallas as pl
from jax.experimental.pallas import tpu as pltpu

BN_EPS = 1e-5
LANE = 128


def _round_up(x, m):
  return (x + m - 1) // m * m


def _pad_ch(a, c_to):
  c = a.shape[-1]
  if c == c_to:
    return a
  pad = [(0, 0)] * (a.ndim - 1) + [(0, c_to - c)]
  return jnp.pad(a, pad)


def _bn_scale_shift(stats, gamma, beta, count):
  """Fold per-image (sum, sum_sq) partials into per-channel scale/shift."""
  s = jnp.sum(stats, axis=0)                     # (2, C)
  mean = s[0] / count
  var = s[1] / count - mean * mean               # biased variance (training BN)
  scale = gamma * lax.rsqrt(var + BN_EPS)
  shift = beta - mean * scale
  return jnp.stack([scale, shift], axis=0).astype(jnp.float32)   # (2, C)


# --------------------------- kernel 1: conv1 (+ 1x1 downsample) --------------
def _conv1_s1_kernel(h, w, c1, c2, has_ds, *refs):
  """3x3 conv, stride 1, pad 1 for one image (+ optional 1x1 downsample)."""
  if has_ds:
    xsp_ref, w1_ref, wd_ref, a1_ref, s1_ref, ad_ref, sd_ref, patch_ref = refs
  else:
    xsp_ref, w1_ref, a1_ref, s1_ref, patch_ref = refs

  # 9 shifted slabs of the zero-padded image -> (H, W, 9*C1) patch scratch.
  for kh in range(3):
    for kw in range(3):
      t = kh * 3 + kw
      patch_ref[:, :, t * c1:(t + 1) * c1] = xsp_ref[0, kh:kh + h, kw:kw + w, :]

  p = patch_ref[...].reshape(h * w, 9 * c1)                  # bf16
  a1 = jnp.dot(p, w1_ref[...], preferred_element_type=jnp.float32)
  a1_ref[0] = a1.astype(a1_ref.dtype)                        # bf16 store (HBM/2)
  s1_ref[0, 0:1, :] = jnp.sum(a1, axis=0, keepdims=True)
  s1_ref[0, 1:2, :] = jnp.sum(a1 * a1, axis=0, keepdims=True)

  if has_ds:
    ctr = p[:, 4 * c1:5 * c1]          # centre tap == the 1x1-conv input
    ad = jnp.dot(ctr, wd_ref[...], preferred_element_type=jnp.float32)
    ad_ref[0] = ad.astype(ad_ref.dtype)
    sd_ref[0, 0:1, :] = jnp.sum(ad, axis=0, keepdims=True)
    sd_ref[0, 1:2, :] = jnp.sum(ad * ad, axis=0, keepdims=True)


def _conv1_strided_kernel(c1, c2, has_ds, *refs):
  """3x3 conv with stride != 1: taps are host-prepared strided views."""
  tap_refs = refs[:9]
  if has_ds:
    w1_ref, wd_ref, a1_ref, s1_ref, ad_ref, sd_ref, patch_ref = refs[9:]
  else:
    w1_ref, a1_ref, s1_ref, patch_ref = refs[9:]

  for t in range(9):
    patch_ref[:, t * c1:(t + 1) * c1] = tap_refs[t][0]

  p = patch_ref[...]                                         # (Mimg, 9*C1) bf16
  a1 = jnp.dot(p, w1_ref[...], preferred_element_type=jnp.float32)
  a1_ref[0] = a1.astype(a1_ref.dtype)
  s1_ref[0, 0:1, :] = jnp.sum(a1, axis=0, keepdims=True)
  s1_ref[0, 1:2, :] = jnp.sum(a1 * a1, axis=0, keepdims=True)

  if has_ds:
    ctr = p[:, 4 * c1:5 * c1]
    ad = jnp.dot(ctr, wd_ref[...], preferred_element_type=jnp.float32)
    ad_ref[0] = ad.astype(ad_ref.dtype)
    sd_ref[0, 0:1, :] = jnp.sum(ad, axis=0, keepdims=True)
    sd_ref[0, 1:2, :] = jnp.sum(ad * ad, axis=0, keepdims=True)


# --------------------------- kernel 2: bn1+relu fused into conv2 -------------
def _conv2_kernel(ho, wo, c2, a1_ref, sc1_ref, w2_ref, a2_ref, s2_ref,
                  patch_ref):
  scale = sc1_ref[0:1, :]
  shift = sc1_ref[1:2, :]
  y3 = jnp.maximum(a1_ref[0] * scale + shift, 0.0)           # bn1 + relu (f32)
  y3 = y3.reshape(ho, wo, c2).astype(jnp.bfloat16)

  zrow = jnp.zeros((1, wo, c2), jnp.bfloat16)
  zcol = jnp.zeros((ho, 1, c2), jnp.bfloat16)
  for kh in range(3):
    for kw in range(3):
      dh, dw = kh - 1, kw - 1
      lane = slice((kh * 3 + kw) * c2, (kh * 3 + kw + 1) * c2)
      dst_h = slice(max(0, -dh), ho - max(0, dh))
      src_h = slice(max(0, dh), ho - max(0, -dh))
      dst_w = slice(max(0, -dw), wo - max(0, dw))
      src_w = slice(max(0, dw), wo - max(0, -dw))
      # The rows/cols the shifted copy skips are the conv zero padding.
      # Re-zero them every step -> no cross-iteration scratch state.
      if dh == -1:
        patch_ref[0:1, :, lane] = zrow
      elif dh == 1:
        patch_ref[ho - 1:ho, :, lane] = zrow
      if dw == -1:
        patch_ref[:, 0:1, lane] = zcol
      elif dw == 1:
        patch_ref[:, wo - 1:wo, lane] = zcol
      patch_ref[dst_h, dst_w, lane] = y3[src_h, src_w, :]

  p = patch_ref[...].reshape(ho * wo, 9 * c2)                # bf16, K = 9*C2
  a2 = jnp.dot(p, w2_ref[...], preferred_element_type=jnp.float32)
  a2_ref[0] = a2
  s2_ref[0, 0:1, :] = jnp.sum(a2, axis=0, keepdims=True)
  s2_ref[0, 1:2, :] = jnp.sum(a2 * a2, axis=0, keepdims=True)


# --------------------------- kernel 3: bn2 + residual + relu -----------------
def _finalize_kernel(has_ds, *refs):
  if has_ds:
    a2_ref, sc2_ref, ad_ref, scd_ref, out_ref = refs
    ident = ad_ref[0] * scd_ref[0:1, :] + scd_ref[1:2, :]
  else:
    a2_ref, sc2_ref, id_ref, out_ref = refs
    ident = id_ref[0]
  out_ref[0] = jnp.maximum(a2_ref[0] * sc2_ref[0:1, :] + sc2_ref[1:2, :] + ident,
                           0.0)


# --------------------------- wrapper ------------------------------------------
def _basic_block_fwd(x_nchw, params, stride):
  x = jnp.transpose(x_nchw, (0, 2, 3, 1)).astype(jnp.float32)      # NHWC
  n, h, w, cin = x.shape
  cout = params["conv1_w"].shape[0]
  ho = (h + 2 - 3) // stride + 1
  wo = (w + 2 - 3) // stride + 1
  m_img = ho * wo
  c1 = _round_up(cin, LANE)
  c2 = _round_up(cout, LANE)
  has_ds = (stride != 1) or (cin != cout)

  xch = _pad_ch(x, c1)                                             # (N,H,W,C1) f32
  xsp = jnp.pad(xch, ((0, 0), (1, 1), (1, 1), (0, 0))).astype(jnp.bfloat16)

  def conv_w(wt, ci_p, co_p):
    wj = jnp.transpose(wt, (2, 3, 1, 0))                           # (kh,kw,I,O)
    kh, kw, ci, co = wj.shape
    wj = jnp.pad(wj, ((0, 0), (0, 0), (0, ci_p - ci), (0, co_p - co)))
    return wj.reshape(kh * kw * ci_p, co_p).astype(jnp.bfloat16)

  w1 = conv_w(params["conv1_w"], c1, c2)                           # (9*C1, C2)
  w2 = conv_w(params["conv2_w"], c2, c2)                           # (9*C2, C2)
  g1 = _pad_ch(params["bn1_gamma"], c2)
  b1 = _pad_ch(params["bn1_beta"], c2)
  g2 = _pad_ch(params["bn2_gamma"], c2)
  b2 = _pad_ch(params["bn2_beta"], c2)

  img3 = lambda i: (i, 0, 0)
  img4 = lambda i: (i, 0, 0, 0)
  whole = lambda i: (0, 0)

  cp = pltpu.CompilerParams(dimension_semantics=("parallel",),
                            vmem_limit_bytes=32 * 1024 * 1024)
  act_f32 = jax.ShapeDtypeStruct((n, m_img, c2), jnp.float32)
  act_bf16 = jax.ShapeDtypeStruct((n, m_img, c2), jnp.bfloat16)
  stat_sds = jax.ShapeDtypeStruct((n, 2, c2), jnp.float32)

  # ---- kernel 1: conv1 (+ downsample 1x1) + per-image BN partial stats -----
  if stride == 1:
    kernel_a = functools.partial(_conv1_s1_kernel, h, w, c1, c2, has_ds)
    a_inputs = [xsp, w1]
    a_specs = [pl.BlockSpec((1, h + 2, w + 2, c1), img4),
               pl.BlockSpec((9 * c1, c2), whole)]
    a_scratch = [pltpu.VMEM((h, w, 9 * c1), jnp.bfloat16)]
    in_bytes_a = xsp.size * 2
  else:
    taps = []
    for kh in range(3):
      for kw in range(3):
        v = xsp[:, kh:kh + stride * (ho - 1) + 1:stride,
                kw:kw + stride * (wo - 1) + 1:stride, :]
        taps.append(v.reshape(n, m_img, c1))
    kernel_a = functools.partial(_conv1_strided_kernel, c1, c2, has_ds)
    a_inputs = taps + [w1]
    a_specs = ([pl.BlockSpec((1, m_img, c1), img3) for _ in range(9)]
               + [pl.BlockSpec((9 * c1, c2), whole)])
    a_scratch = [pltpu.VMEM((m_img, 9 * c1), jnp.bfloat16)]
    in_bytes_a = 9 * n * m_img * c1 * 2

  if has_ds:
    wd = conv_w(params["down_w"], c1, c2)                          # (C1, C2)
    a_inputs = a_inputs + [wd]
    a_specs = a_specs + [pl.BlockSpec((c1, c2), whole)]
    a_out_shape = (act_bf16, stat_sds, act_bf16, stat_sds)
    a_out_specs = (pl.BlockSpec((1, m_img, c2), img3),
                   pl.BlockSpec((1, 2, c2), img3),
                   pl.BlockSpec((1, m_img, c2), img3),
                   pl.BlockSpec((1, 2, c2), img3))
  else:
    a_out_shape = (act_bf16, stat_sds)
    a_out_specs = (pl.BlockSpec((1, m_img, c2), img3),
                   pl.BlockSpec((1, 2, c2), img3))

  flops_a = 2 * n * m_img * (9 * c1) * c2
  if has_ds:
    flops_a += 2 * n * m_img * c1 * c2
  bytes_a = (in_bytes_a + w1.size * 2 + (wd.size * 2 if has_ds else 0)
             + (2 if has_ds else 1) * (n * m_img * c2 * 2 + 2 * n * c2 * 4))

  outs_a = pl.pallas_call(
      kernel_a,
      grid=(n,),
      in_specs=a_specs,
      out_specs=a_out_specs,
      out_shape=a_out_shape,
      scratch_shapes=a_scratch,
      compiler_params=cp,
      cost_estimate=pl.CostEstimate(flops=flops_a, transcendentals=0,
                                    bytes_accessed=bytes_a),
  )(*a_inputs)

  if has_ds:
    a1, s1, ad, sdst = outs_a
  else:
    a1, s1 = outs_a

  count = float(n * m_img)
  sc1 = _bn_scale_shift(s1, g1, b1, count)                         # (2, C2)

  # ---- kernel 2: bn1 + relu fused into conv2 + per-image BN partial stats --
  kernel_b = functools.partial(_conv2_kernel, ho, wo, c2)
  a2, s2 = pl.pallas_call(
      kernel_b,
      grid=(n,),
      in_specs=[pl.BlockSpec((1, m_img, c2), img3),
                pl.BlockSpec((2, c2), whole),
                pl.BlockSpec((9 * c2, c2), whole)],
      out_specs=(pl.BlockSpec((1, m_img, c2), img3),
                 pl.BlockSpec((1, 2, c2), img3)),
      out_shape=(act_f32, stat_sds),
      scratch_shapes=[pltpu.VMEM((ho, wo, 9 * c2), jnp.bfloat16)],
      compiler_params=cp,
      cost_estimate=pl.CostEstimate(
          flops=2 * n * m_img * 9 * c2 * c2,
          transcendentals=0,
          bytes_accessed=(n * m_img * c2 * 2              # a1 in (bf16)
                          + n * m_img * c2 * 4            # a2 out (f32)
                          + 2 * n * c2 * 4 + w2.size * 2)),
  )(a1, sc1, w2)

  sc2 = _bn_scale_shift(s2, g2, b2, count)

  # ---- kernel 3: bn2 + residual + relu --------------------------------------
  if has_ds:
    gd = _pad_ch(params["bn_d_gamma"], c2)
    bd = _pad_ch(params["bn_d_beta"], c2)
    scd = _bn_scale_shift(sdst, gd, bd, count)
    c_inputs = (a2, sc2, ad, scd)
    c_specs = [pl.BlockSpec((1, m_img, c2), img3),
               pl.BlockSpec((2, c2), whole),
               pl.BlockSpec((1, m_img, c2), img3),
               pl.BlockSpec((2, c2), whole)]
    ident_bytes = n * m_img * c2 * 2
  else:
    ident = xch.reshape(n, m_img, c2)          # stride==1 and Cin==Cout here
    c_inputs = (a2, sc2, ident)
    c_specs = [pl.BlockSpec((1, m_img, c2), img3),
               pl.BlockSpec((2, c2), whole),
               pl.BlockSpec((1, m_img, c2), img3)]
    ident_bytes = n * m_img * c2 * 4

  kernel_c = functools.partial(_finalize_kernel, has_ds)
  out_flat = pl.pallas_call(
      kernel_c,
      grid=(n,),
      in_specs=c_specs,
      out_specs=pl.BlockSpec((1, m_img, c2), img3),
      out_shape=act_f32,
      compiler_params=cp,
      cost_estimate=pl.CostEstimate(
          flops=6 * n * m_img * c2, transcendentals=0,
          bytes_accessed=2 * n * m_img * c2 * 4 + ident_bytes),
  )(*c_inputs)

  out = out_flat.reshape(n, ho, wo, c2)[..., :cout]
  return jnp.transpose(out, (0, 3, 1, 2))                          # back to NCHW


basic_block_forward = jax.jit(_basic_block_fwd, static_argnums=(2,))


# ----------------------------- reference (plain JAX, f32) --------------------
def _reference_forward(x_nchw, params, stride):
  x = jnp.transpose(x_nchw, (0, 2, 3, 1)).astype(jnp.float32)
  dn = ("NHWC", "HWIO", "NHWC")

  def conv(v, w_t, s, pad):
    w = jnp.transpose(w_t, (2, 3, 1, 0))
    return lax.conv_general_dilated(v, w, (s, s), [(pad, pad), (pad, pad)],
                                    dimension_numbers=dn,
                                    precision=lax.Precision.HIGHEST)

  def bn(v, g, b):
    mean = jnp.mean(v, axis=(0, 1, 2), keepdims=True)
    var = jnp.mean((v - mean) ** 2, axis=(0, 1, 2), keepdims=True)
    return (v - mean) * lax.rsqrt(var + BN_EPS) * g.reshape(1, 1, 1, -1) \
        + b.reshape(1, 1, 1, -1)

  cin = x.shape[-1]
  cout = params["conv1_w"].shape[0]
  if stride != 1 or cin != cout:
    ident = bn(conv(x, params["down_w"], stride, 0),
               params["bn_d_gamma"], params["bn_d_beta"])
  else:
    ident = x
  out = jnp.maximum(bn(conv(x, params["conv1_w"], stride, 1),
                       params["bn1_gamma"], params["bn1_beta"]), 0.0)
  out = bn(conv(out, params["conv2_w"], 1, 1),
           params["bn2_gamma"], params["bn2_beta"])
  out = jnp.maximum(out + ident, 0.0)
  return jnp.transpose(out, (0, 3, 1, 2))


def _make_params(key, cin, cout, has_downsample):
  ks = jax.random.split(key, 9)
  p = {
      "conv1_w": 0.2 * jax.random.normal(ks[0], (cout, cin, 3, 3), jnp.float32),
      "bn1_gamma": 1.0 + 0.1 * jax.random.normal(ks[1], (cout,), jnp.float32),
      "bn1_beta": 0.1 * jax.random.normal(ks[2], (cout,), jnp.float32),
      "conv2_w": 0.2 * jax.random.normal(ks[3], (cout, cout, 3, 3), jnp.float32),
      "bn2_gamma": 1.0 + 0.1 * jax.random.normal(ks[4], (cout,), jnp.float32),
      "bn2_beta": 0.1 * jax.random.normal(ks[5], (cout,), jnp.float32),
  }
  if has_downsample:
    p["down_w"] = 0.2 * jax.random.normal(ks[6], (cout, cin, 1, 1), jnp.float32)
    p["bn_d_gamma"] = 1.0 + 0.1 * jax.random.normal(ks[7], (cout,), jnp.float32)
    p["bn_d_beta"] = 0.1 * jax.random.normal(ks[8], (cout,), jnp.float32)
  return p


if __name__ == "__main__":
  key = jax.random.PRNGKey(0)
  k1, k2, kx1, kx2 = jax.random.split(key, 4)

  # Tolerance sized for bf16 MXU operands / bf16 intermediate activations
  # with f32 accumulation.
  ATOL = RTOL = 5e-2

  # Case 1: stride=2, Cin=4 -> Cout=8  (downsample branch active)
  x1 = jax.random.normal(kx1, (2, 4, 16, 16), jnp.float32)         # NCHW
  p1 = _make_params(k1, 4, 8, True)
  out1 = jax.block_until_ready(basic_block_forward(x1, p1, 2))
  ref1 = _reference_forward(x1, p1, 2)
  assert out1.shape == (2, 8, 8, 8), out1.shape
  assert jnp.allclose(out1, ref1, atol=ATOL, rtol=RTOL), \
      float(jnp.max(jnp.abs(out1 - ref1)))

  # Case 2: stride=1, Cin=Cout=8  (plain identity shortcut)
  x2 = jax.random.normal(kx2, (2, 8, 16, 16), jnp.float32)
  p2 = _make_params(k2, 8, 8, False)
  out2 = jax.block_until_ready(basic_block_forward(x2, p2, 1))
  ref2 = _reference_forward(x2, p2, 1)
  assert out2.shape == (2, 8, 16, 16), out2.shape
  assert jnp.allclose(out2, ref2, atol=ATOL, rtol=RTOL), \
      float(jnp.max(jnp.abs(out2 - ref2)))

  print("KERNEL_OK")
</pallas_src>

<mosaic_0001>
module attributes {stable_mosaic.version = 11 : i64} {
  func.func @_conv1_strided_kernel(%arg0: i32, %arg1: memref<1x64x128xbf16, #tpu.memory_space<vmem>>, %arg2: memref<1x64x128xbf16, #tpu.memory_space<vmem>>, %arg3: memref<1x64x128xbf16, #tpu.memory_space<vmem>>, %arg4: memref<1x64x128xbf16, #tpu.memory_space<vmem>>, %arg5: memref<1x64x128xbf16, #tpu.memory_space<vmem>>, %arg6: memref<1x64x128xbf16, #tpu.memory_space<vmem>>, %arg7: memref<1x64x128xbf16, #tpu.memory_space<vmem>>, %arg8: memref<1x64x128xbf16, #tpu.memory_space<vmem>>, %arg9: memref<1x64x128xbf16, #tpu.memory_space<vmem>>, %arg10: memref<1152x128xbf16, #tpu.memory_space<vmem>>, %arg11: memref<128x128xbf16, #tpu.memory_space<vmem>>, %arg12: memref<1x64x128xbf16, #tpu.memory_space<vmem>>, %arg13: memref<1x2x128xf32, #tpu.memory_space<vmem>>, %arg14: memref<1x64x128xbf16, #tpu.memory_space<vmem>>, %arg15: memref<1x2x128xf32, #tpu.memory_space<vmem>>, %arg16: memref<64x1152xbf16, #tpu.memory_space<vmem>>) attributes {dimension_semantics = [#tpu.dimension_semantics<parallel>], iteration_bounds = array<i64: 2>, scalar_prefetch = 0 : i64, scratch_operands = 1 : i64, tpu.core_type = #tpu.core_type<tc>, window_params = [{transform_indices = @transform_0, window_bounds = array<i64: 1, 64, 128>}, {transform_indices = @transform_1, window_bounds = array<i64: 1, 64, 128>}, {transform_indices = @transform_2, window_bounds = array<i64: 1, 64, 128>}, {transform_indices = @transform_3, window_bounds = array<i64: 1, 64, 128>}, {transform_indices = @transform_4, window_bounds = array<i64: 1, 64, 128>}, {transform_indices = @transform_5, window_bounds = array<i64: 1, 64, 128>}, {transform_indices = @transform_6, window_bounds = array<i64: 1, 64, 128>}, {transform_indices = @transform_7, window_bounds = array<i64: 1, 64, 128>}, {transform_indices = @transform_8, window_bounds = array<i64: 1, 64, 128>}, {pipeline_mode = #tpu.pipeline_mode<synchronous>, transform_indices = @transform_9, window_bounds = array<i64: 1152, 128>}, {pipeline_mode = #tpu.pipeline_mode<synchronous>, transform_indices = @transform_10, window_bounds = array<i64: 128, 128>}, {transform_indices = @transform_11, window_bounds = array<i64: 1, 64, 128>}, {transform_indices = @transform_12, window_bounds = array<i64: 1, 2, 128>}, {transform_indices = @transform_13, window_bounds = array<i64: 1, 64, 128>}, {transform_indices = @transform_14, window_bounds = array<i64: 1, 2, 128>}]} {
    %c0 = arith.constant 0 : index
    %c0_0 = arith.constant 0 : index
    %c0_1 = arith.constant 0 : index
    %0 = vector.load %arg1[%c0, %c0_0, %c0_1] : memref<1x64x128xbf16, #tpu.memory_space<vmem>>, vector<1x64x128xbf16>
    %1 = vector.shape_cast %0 : vector<1x64x128xbf16> to vector<64x128xbf16>
    %c0_2 = arith.constant 0 : index
    %c0_3 = arith.constant 0 : index
    %2 = vector.load %arg16[%c0_2, %c0_3] : memref<64x1152xbf16, #tpu.memory_space<vmem>>, vector<64x128xbf16>
    tpu.vector_store %arg16[%c0_2, %c0_3], %1 {strides = array<i32>} : memref<64x1152xbf16, #tpu.memory_space<vmem>>, vector<64x128xbf16>,
    %c0_4 = arith.constant 0 : index
    %c0_5 = arith.constant 0 : index
    %c0_6 = arith.constant 0 : index
    %3 = vector.load %arg2[%c0_4, %c0_5, %c0_6] : memref<1x64x128xbf16, #tpu.memory_space<vmem>>, vector<1x64x128xbf16>
    %4 = vector.shape_cast %3 : vector<1x64x128xbf16> to vector<64x128xbf16>
    %c0_7 = arith.constant 0 : index
    %c128 = arith.constant 128 : index
    %5 = vector.load %arg16[%c0_7, %c128] : memref<64x1152xbf16, #tpu.memory_space<vmem>>, vector<64x128xbf16>
    tpu.vector_store %arg16[%c0_7, %c128], %4 {strides = array<i32>} : memref<64x1152xbf16, #tpu.memory_space<vmem>>, vector<64x128xbf16>,
    %c0_8 = arith.constant 0 : index
    %c0_9 = arith.constant 0 : index
    %c0_10 = arith.constant 0 : index
    %6 = vector.load %arg3[%c0_8, %c0_9, %c0_10] : memref<1x64x128xbf16, #tpu.memory_space<vmem>>, vector<1x64x128xbf16>
    %7 = vector.shape_cast %6 : vector<1x64x128xbf16> to vector<64x128xbf16>
    %c0_11 = arith.constant 0 : index
    %c256 = arith.constant 256 : index
    %8 = vector.load %arg16[%c0_11, %c256] : memref<64x1152xbf16, #tpu.memory_space<vmem>>, vector<64x128xbf16>
    tpu.vector_store %arg16[%c0_11, %c256], %7 {strides = array<i32>} : memref<64x1152xbf16, #tpu.memory_space<vmem>>, vector<64x128xbf16>,
    %c0_12 = arith.constant 0 : index
    %c0_13 = arith.constant 0 : index
    %c0_14 = arith.constant 0 : index
    %9 = vector.load %arg4[%c0_12, %c0_13, %c0_14] : memref<1x64x128xbf16, #tpu.memory_space<vmem>>, vector<1x64x128xbf16>
    %10 = vector.shape_cast %9 : vector<1x64x128xbf16> to vector<64x128xbf16>
    %c0_15 = arith.constant 0 : index
    %c384 = arith.constant 384 : index
    %11 = vector.load %arg16[%c0_15, %c384] : memref<64x1152xbf16, #tpu.memory_space<vmem>>, vector<64x128xbf16>
    tpu.vector_store %arg16[%c0_15, %c384], %10 {strides = array<i32>} : memref<64x1152xbf16, #tpu.memory_space<vmem>>, vector<64x128xbf16>,
    %c0_16 = arith.constant 0 : index
    %c0_17 = arith.constant 0 : index
    %c0_18 = arith.constant 0 : index
    %12 = vector.load %arg5[%c0_16, %c0_17, %c0_18] : memref<1x64x128xbf16, #tpu.memory_space<vmem>>, vector<1x64x128xbf16>
    %13 = vector.shape_cast %12 : vector<1x64x128xbf16> to vector<64x128xbf16>
    %c0_19 = arith.constant 0 : index
    %c512 = arith.constant 512 : index
    %14 = vector.load %arg16[%c0_19, %c512] : memref<64x1152xbf16, #tpu.memory_space<vmem>>, vector<64x128xbf16>
    tpu.vector_store %arg16[%c0_19, %c512], %13 {strides = array<i32>} : memref<64x1152xbf16, #tpu.memory_space<vmem>>, vector<64x128xbf16>,
    %c0_20 = arith.constant 0 : index
    %c0_21 = arith.constant 0 : index
    %c0_22 = arith.constant 0 : index
    %15 = vector.load %arg6[%c0_20, %c0_21, %c0_22] : memref<1x64x128xbf16, #tpu.memory_space<vmem>>, vector<1x64x128xbf16>
    %16 = vector.shape_cast %15 : vector<1x64x128xbf16> to vector<64x128xbf16>
    %c0_23 = arith.constant 0 : index
    %c640 = arith.constant 640 : index
    %17 = vector.load %arg16[%c0_23, %c640] : memref<64x1152xbf16, #tpu.memory_space<vmem>>, vector<64x128xbf16>
    tpu.vector_store %arg16[%c0_23, %c640], %16 {strides = array<i32>} : memref<64x1152xbf16, #tpu.memory_space<vmem>>, vector<64x128xbf16>,
    %c0_24 = arith.constant 0 : index
    %c0_25 = arith.constant 0 : index
    %c0_26 = arith.constant 0 : index
    %18 = vector.load %arg7[%c0_24, %c0_25, %c0_26] : memref<1x64x128xbf16, #tpu.memory_space<vmem>>, vector<1x64x128xbf16>
    %19 = vector.shape_cast %18 : vector<1x64x128xbf16> to vector<64x128xbf16>
    %c0_27 = arith.constant 0 : index
    %c768 = arith.constant 768 : index
    %20 = vector.load %arg16[%c0_27, %c768] : memref<64x1152xbf16, #tpu.memory_space<vmem>>, vector<64x128xbf16>
    tpu.vector_store %arg16[%c0_27, %c768], %19 {strides = array<i32>} : memref<64x1152xbf16, #tpu.memory_space<vmem>>, vector<64x128xbf16>,
    %c0_28 = arith.constant 0 : index
    %c0_29 = arith.constant 0 : index
    %c0_30 = arith.constant 0 : index
    %21 = vector.load %arg8[%c0_28, %c0_29, %c0_30] : memref<1x64x128xbf16, #tpu.memory_space<vmem>>, vector<1x64x128xbf16>
    %22 = vector.shape_cast %21 : vector<1x64x128xbf16> to vector<64x128xbf16>
    %c0_31 = arith.constant 0 : index
    %c896 = arith.constant 896 : index
    %23 = vector.load %arg16[%c0_31, %c896] : memref<64x1152xbf16, #tpu.memory_space<vmem>>, vector<64x128xbf16>
    tpu.vector_store %arg16[%c0_31, %c896], %22 {strides = array<i32>} : memref<64x1152xbf16, #tpu.memory_space<vmem>>, vector<64x128xbf16>,
    %c0_32 = arith.constant 0 : index
    %c0_33 = arith.constant 0 : index
    %c0_34 = arith.constant 0 : index
    %24 = vector.load %arg9[%c0_32, %c0_33, %c0_34] : memref<1x64x128xbf16, #tpu.memory_space<vmem>>, vector<1x64x128xbf16>
    %25 = vector.shape_cast %24 : vector<1x64x128xbf16> to vector<64x128xbf16>
    %c0_35 = arith.constant 0 : index
    %c1024 = arith.constant 1024 : index
    %26 = vector.load %arg16[%c0_35, %c1024] : memref<64x1152xbf16, #tpu.memory_space<vmem>>, vector<64x128xbf16>
    tpu.vector_store %arg16[%c0_35, %c1024], %25 {strides = array<i32>} : memref<64x1152xbf16, #tpu.memory_space<vmem>>, vector<64x128xbf16>,
    %c0_36 = arith.constant 0 : index
    %c0_37 = arith.constant 0 : index
    %27 = vector.load %arg16[%c0_36, %c0_37] : memref<64x1152xbf16, #tpu.memory_space<vmem>>, vector<64x1152xbf16>
    %c0_38 = arith.constant 0 : index
    %c0_39 = arith.constant 0 : index
    %28 = vector.load %arg10[%c0_38, %c0_39] : memref<1152x128xbf16, #tpu.memory_space<vmem>>, vector<1152x128xbf16>
    %cst = arith.constant dense<0.000000e+00> : vector<64x128xf32>
    %29 = tpu.matmul %27, %28, %cst {dimension_numbers = #tpu.dot_dimension_numbers<[1], [0], [0], [1], [0, 0, 1, 1], [], []>} : vector<64x1152xbf16>, vector<1152x128xbf16>, vector<64x128xf32> -> vector<64x128xf32>
    %30 = arith.truncf %29 : vector<64x128xf32> to vector<64x128xbf16>
    %c0_40 = arith.constant 0 : index
    %c0_41 = arith.constant 0 : index
    %c0_42 = arith.constant 0 : index
    %31 = vector.load %arg12[%c0_40, %c0_41, %c0_42] : memref<1x64x128xbf16, #tpu.memory_space<vmem>>, vector<1x64x128xbf16>
    %32 = vector.shape_cast %31 : vector<1x64x128xbf16> to vector<64x128xbf16>
    %33 = vector.shape_cast %30 : vector<64x128xbf16> to vector<1x64x128xbf16>
    tpu.vector_store %arg12[%c0_40, %c0_41, %c0_42], %33 {strides = array<i32>} : memref<1x64x128xbf16, #tpu.memory_space<vmem>>, vector<1x64x128xbf16>,
    %cst_43 = arith.constant dense<0.000000e+00> : vector<128xf32>
    %34 = vector.multi_reduction <add>, %29, %cst_43 [0] : vector<64x128xf32> to vector<128xf32>
    %35 = vector.shape_cast %34 : vector<128xf32> to vector<1x128xf32>
    %c0_44 = arith.constant 0 : index
    %c0_45 = arith.constant 0 : index
    %c0_46 = arith.constant 0 : index
    %36 = vector.load %arg13[%c0_44, %c0_45, %c0_46] : memref<1x2x128xf32, #tpu.memory_space<vmem>>, vector<1x1x128xf32>
    %37 = vector.shape_cast %36 : vector<1x1x128xf32> to vector<1x128xf32>
    %38 = vector.shape_cast %35 : vector<1x128xf32> to vector<1x1x128xf32>
    tpu.vector_store %arg13[%c0_44, %c0_45, %c0_46], %38 {strides = array<i32>} : memref<1x2x128xf32, #tpu.memory_space<vmem>>, vector<1x1x128xf32>,
    %39 = arith.mulf %29, %29 : vector<64x128xf32>
    %cst_47 = arith.constant dense<0.000000e+00> : vector<128xf32>
    %40 = vector.multi_reduction <add>, %39, %cst_47 [0] : vector<64x128xf32> to vector<128xf32>
    %41 = vector.shape_cast %40 : vector<128xf32> to vector<1x128xf32>
    %c0_48 = arith.constant 0 : index
    %c1 = arith.constant 1 : index
    %c0_49 = arith.constant 0 : index
    %42 = vector.load %arg13[%c0_48, %c1, %c0_49] : memref<1x2x128xf32, #tpu.memory_space<vmem>>, vector<1x1x128xf32>
    %43 = vector.shape_cast %42 : vector<1x1x128xf32> to vector<1x128xf32>
    %44 = vector.shape_cast %41 : vector<1x128xf32> to vector<1x1x128xf32>
    tpu.vector_store %arg13[%c0_48, %c1, %c0_49], %44 {strides = array<i32>} : memref<1x2x128xf32, #tpu.memory_space<vmem>>, vector<1x1x128xf32>,
    %45 = vector.extract_strided_slice %27 {offsets = [0, 512], sizes = [64, 128], strides = [1, 1]} : vector<64x1152xbf16> to vector<64x128xbf16>
    %c0_50 = arith.constant 0 : index
    %c0_51 = arith.constant 0 : index
    %46 = vector.load %arg11[%c0_50, %c0_51] : memref<128x128xbf16, #tpu.memory_space<vmem>>, vector<128x128xbf16>
    %cst_52 = arith.constant dense<0.000000e+00> : vector<64x128xf32>
    %47 = tpu.matmul %45, %46, %cst_52 {dimension_numbers = #tpu.dot_dimension_numbers<[1], [0], [0], [1], [0, 0, 1, 1], [], []>} : vector<64x128xbf16>, vector<128x128xbf16>, vector<64x128xf32> -> vector<64x128xf32>
    %48 = arith.truncf %47 : vector<64x128xf32> to vector<64x128xbf16>
    %c0_53 = arith.constant 0 : index
    %c0_54 = arith.constant 0 : index
    %c0_55 = arith.constant 0 : index
    %49 = vector.load %arg14[%c0_53, %c0_54, %c0_55] : memref<1x64x128xbf16, #tpu.memory_space<vmem>>, vector<1x64x128xbf16>
    %50 = vector.shape_cast %49 : vector<1x64x128xbf16> to vector<64x128xbf16>
    %51 = vector.shape_cast %48 : vector<64x128xbf16> to vector<1x64x128xbf16>
    tpu.vector_store %arg14[%c0_53, %c0_54, %c0_55], %51 {strides = array<i32>} : memref<1x64x128xbf16, #tpu.memory_space<vmem>>, vector<1x64x128xbf16>,
    %cst_56 = arith.constant dense<0.000000e+00> : vector<128xf32>
    %52 = vector.multi_reduction <add>, %47, %cst_56 [0] : vector<64x128xf32> to vector<128xf32>
    %53 = vector.shape_cast %52 : vector<128xf32> to vector<1x128xf32>
    %c0_57 = arith.constant 0 : index
    %c0_58 = arith.constant 0 : index
    %c0_59 = arith.constant 0 : index
    %54 = vector.load %arg15[%c0_57, %c0_58, %c0_59] : memref<1x2x128xf32, #tpu.memory_space<vmem>>, vector<1x1x128xf32>
    %55 = vector.shape_cast %54 : vector<1x1x128xf32> to vector<1x128xf32>
    %56 = vector.shape_cast %53 : vector<1x128xf32> to vector<1x1x128xf32>
    tpu.vector_store %arg15[%c0_57, %c0_58, %c0_59], %56 {strides = array<i32>} : memref<1x2x128xf32, #tpu.memory_space<vmem>>, vector<1x1x128xf32>,
    %57 = arith.mulf %47, %47 : vector<64x128xf32>
    %cst_60 = arith.constant dense<0.000000e+00> : vector<128xf32>
    %58 = vector.multi_reduction <add>, %57, %cst_60 [0] : vector<64x128xf32> to vector<128xf32>
    %59 = vector.shape_cast %58 : vector<128xf32> to vector<1x128xf32>
    %c0_61 = arith.constant 0 : index
    %c1_62 = arith.constant 1 : index
    %c0_63 = arith.constant 0 : index
    %60 = vector.load %arg15[%c0_61, %c1_62, %c0_63] : memref<1x2x128xf32, #tpu.memory_space<vmem>>, vector<1x1x128xf32>
    %61 = vector.shape_cast %60 : vector<1x1x128xf32> to vector<1x128xf32>
    %62 = vector.shape_cast %59 : vector<1x128xf32> to vector<1x1x128xf32>
    tpu.vector_store %arg15[%c0_61, %c1_62, %c0_63], %62 {strides = array<i32>} : memref<1x2x128xf32, #tpu.memory_space<vmem>>, vector<1x1x128xf32>,
    return
  }
  func.func @transform_0(%arg0: i32) -> (i32, i32, i32) {
    %c0_i32 = arith.constant 0 : i32
    %c0_i32_0 = arith.constant 0 : i32
    %c0_i32_1 = arith.constant 0 : i32
    return %arg0, %c0_i32, %c0_i32_0 : i32, i32, i32
  }
  func.func @transform_1(%arg0: i32) -> (i32, i32, i32) {
    %c0_i32 = arith.constant 0 : i32
    %c0_i32_0 = arith.constant 0 : i32
    %c0_i32_1 = arith.constant 0 : i32
    return %arg0, %c0_i32, %c0_i32_0 : i32, i32, i32
  }
  func.func @transform_2(%arg0: i32) -> (i32, i32, i32) {
    %c0_i32 = arith.constant 0 : i32
    %c0_i32_0 = arith.constant 0 : i32
    %c0_i32_1 = arith.constant 0 : i32
    return %arg0, %c0_i32, %c0_i32_0 : i32, i32, i32
  }
  func.func @transform_3(%arg0: i32) -> (i32, i32, i32) {
    %c0_i32 = arith.constant 0 : i32
    %c0_i32_0 = arith.constant 0 : i32
    %c0_i32_1 = arith.constant 0 : i32
    return %arg0, %c0_i32, %c0_i32_0 : i32, i32, i32
  }
  func.func @transform_4(%arg0: i32) -> (i32, i32, i32) {
    %c0_i32 = arith.constant 0 : i32
    %c0_i32_0 = arith.constant 0 : i32
    %c0_i32_1 = arith.constant 0 : i32
    return %arg0, %c0_i32, %c0_i32_0 : i32, i32, i32
  }
  func.func @transform_5(%arg0: i32) -> (i32, i32, i32) {
    %c0_i32 = arith.constant 0 : i32
    %c0_i32_0 = arith.constant 0 : i32
    %c0_i32_1 = arith.constant 0 : i32
    return %arg0, %c0_i32, %c0_i32_0 : i32, i32, i32
  }
  func.func @transform_6(%arg0: i32) -> (i32, i32, i32) {
    %c0_i32 = arith.constant 0 : i32
    %c0_i32_0 = arith.constant 0 : i32
    %c0_i32_1 = arith.constant 0 : i32
    return %arg0, %c0_i32, %c0_i32_0 : i32, i32, i32
  }
  func.func @transform_7(%arg0: i32) -> (i32, i32, i32) {
    %c0_i32 = arith.constant 0 : i32
    %c0_i32_0 = arith.constant 0 : i32
    %c0_i32_1 = arith.constant 0 : i32
    return %arg0, %c0_i32, %c0_i32_0 : i32, i32, i32
  }
  func.func @transform_8(%arg0: i32) -> (i32, i32, i32) {
    %c0_i32 = arith.constant 0 : i32
    %c0_i32_0 = arith.constant 0 : i32
    %c0_i32_1 = arith.constant 0 : i32
    return %arg0, %c0_i32, %c0_i32_0 : i32, i32, i32
  }
  func.func @transform_9(%arg0: i32) -> (i32, i32) {
    %c0_i32 = arith.constant 0 : i32
    %c0_i32_0 = arith.constant 0 : i32
    %c0_i32_1 = arith.constant 0 : i32
    return %c0_i32, %c0_i32_0 : i32, i32
  }
  func.func @transform_10(%arg0: i32) -> (i32, i32) {
    %c0_i32 = arith.constant 0 : i32
    %c0_i32_0 = arith.constant 0 : i32
    %c0_i32_1 = arith.constant 0 : i32
    return %c0_i32, %c0_i32_0 : i32, i32
  }
  func.func @transform_11(%arg0: i32) -> (i32, i32, i32) {
    %c0_i32 = arith.constant 0 : i32
    %c0_i32_0 = arith.constant 0 : i32
    %c0_i32_1 = arith.constant 0 : i32
    return %arg0, %c0_i32, %c0_i32_0 : i32, i32, i32
  }
  func.func @transform_12(%arg0: i32) -> (i32, i32, i32) {
    %c0_i32 = arith.constant 0 : i32
    %c0_i32_0 = arith.constant 0 : i32
    %c0_i32_1 = arith.constant 0 : i32
    return %arg0, %c0_i32, %c0_i32_0 : i32, i32, i32
  }
  func.func @transform_13(%arg0: i32) -> (i32, i32, i32) {
    %c0_i32 = arith.constant 0 : i32
    %c0_i32_0 = arith.constant 0 : i32
    %c0_i32_1 = arith.constant 0 : i32
    return %arg0, %c0_i32, %c0_i32_0 : i32, i32, i32
  }
  func.func @transform_14(%arg0: i32) -> (i32, i32, i32) {
    %c0_i32 = arith.constant 0 : i32
    %c0_i32_0 = arith.constant 0 : i32
    %c0_i32_1 = arith.constant 0 : i32
    return %arg0, %c0_i32, %c0_i32_0 : i32, i32, i32
  }
}

module attributes {stable_mosaic.version = 11 : i64} {
  func.func @_finalize_kernel(%arg0: i32, %arg1: memref<1x64x128xf32, #tpu.memory_space<vmem>>, %arg2: memref<2x128xf32, #tpu.memory_space<vmem>>, %arg3: memref<1x64x128xbf16, #tpu.memory_space<vmem>>, %arg4: memref<2x128xf32, #tpu.memory_space<vmem>>, %arg5: memref<1x64x128xf32, #tpu.memory_space<vmem>>) attributes {dimension_semantics = [#tpu.dimension_semantics<parallel>], iteration_bounds = array<i64: 2>, scalar_prefetch = 0 : i64, scratch_operands = 0 : i64, tpu.core_type = #tpu.core_type<tc>, window_params = [{transform_indices = @transform_0, window_bounds = array<i64: 1, 64, 128>}, {pipeline_mode = #tpu.pipeline_mode<synchronous>, transform_indices = @transform_1, window_bounds = array<i64: 2, 128>}, {transform_indices = @transform_2, window_bounds = array<i64: 1, 64, 128>}, {pipeline_mode = #tpu.pipeline_mode<synchronous>, transform_indices = @transform_3, window_bounds = array<i64: 2, 128>}, {transform_indices = @transform_4, window_bounds = array<i64: 1, 64, 128>}]} {
    %c0 = arith.constant 0 : index
    %c0_0 = arith.constant 0 : index
    %c0_1 = arith.constant 0 : index
    %0 = vector.load %arg3[%c0, %c0_0, %c0_1] : memref<1x64x128xbf16, #tpu.memory_space<vmem>>, vector<1x64x128xbf16>
    %1 = vector.shape_cast %0 : vector<1x64x128xbf16> to vector<64x128xbf16>
    %c0_2 = arith.constant 0 : index
    %c0_3 = arith.constant 0 : index
    %2 = vector.load %arg4[%c0_2, %c0_3] : memref<2x128xf32, #tpu.memory_space<vmem>>, vector<1x128xf32>
    %3 = arith.extf %1 : vector<64x128xbf16> to vector<64x128xf32>
    %4 = vector.broadcast %2 : vector<1x128xf32> to vector<64x128xf32>
    %5 = arith.mulf %3, %4 : vector<64x128xf32>
    %c1 = arith.constant 1 : index
    %c0_4 = arith.constant 0 : index
    %6 = vector.load %arg4[%c1, %c0_4] : memref<2x128xf32, #tpu.memory_space<vmem>>, vector<1x128xf32>
    %7 = vector.broadcast %6 : vector<1x128xf32> to vector<64x128xf32>
    %8 = arith.addf %5, %7 : vector<64x128xf32>
    %c0_5 = arith.constant 0 : index
    %c0_6 = arith.constant 0 : index
    %c0_7 = arith.constant 0 : index
    %9 = vector.load %arg1[%c0_5, %c0_6, %c0_7] : memref<1x64x128xf32, #tpu.memory_space<vmem>>, vector<1x64x128xf32>
    %10 = vector.shape_cast %9 : vector<1x64x128xf32> to vector<64x128xf32>
    %c0_8 = arith.constant 0 : index
    %c0_9 = arith.constant 0 : index
    %11 = vector.load %arg2[%c0_8, %c0_9] : memref<2x128xf32, #tpu.memory_space<vmem>>, vector<1x128xf32>
    %12 = vector.broadcast %11 : vector<1x128xf32> to vector<64x128xf32>
    %13 = arith.mulf %10, %12 : vector<64x128xf32>
    %c1_10 = arith.constant 1 : index
    %c0_11 = arith.constant 0 : index
    %14 = vector.load %arg2[%c1_10, %c0_11] : memref<2x128xf32, #tpu.memory_space<vmem>>, vector<1x128xf32>
    %15 = vector.broadcast %14 : vector<1x128xf32> to vector<64x128xf32>
    %16 = arith.addf %13, %15 : vector<64x128xf32>
    %17 = arith.addf %16, %8 : vector<64x128xf32>
    %cst = arith.constant 0.000000e+00 : f32
    %18 = vector.broadcast %cst : f32 to vector<64x128xf32>
    %19 = arith.maximumf %17, %18 : vector<64x128xf32>
    %c0_12 = arith.constant 0 : index
    %c0_13 = arith.constant 0 : index
    %c0_14 = arith.constant 0 : index
    %20 = vector.load %arg5[%c0_12, %c0_13, %c0_14] : memref<1x64x128xf32, #tpu.memory_space<vmem>>, vector<1x64x128xf32>
    %21 = vector.shape_cast %20 : vector<1x64x128xf32> to vector<64x128xf32>
    %22 = vector.shape_cast %19 : vector<64x128xf32> to vector<1x64x128xf32>
    tpu.vector_store %arg5[%c0_12, %c0_13, %c0_14], %22 {strides = array<i32>} : memref<1x64x128xf32, #tpu.memory_space<vmem>>, vector<1x64x128xf32>,
    return
  }
  func.func @transform_0(%arg0: i32) -> (i32, i32, i32) {
    %c0_i32 = arith.constant 0 : i32
    %c0_i32_0 = arith.constant 0 : i32
    %c0_i32_1 = arith.constant 0 : i32
    return %arg0, %c0_i32, %c0_i32_0 : i32, i32, i32
  }
  func.func @transform_1(%arg0: i32) -> (i32, i32) {
    %c0_i32 = arith.constant 0 : i32
    %c0_i32_0 = arith.constant 0 : i32
    %c0_i32_1 = arith.constant 0 : i32
    return %c0_i32, %c0_i32_0 : i32, i32
  }
  func.func @transform_2(%arg0: i32) -> (i32, i32, i32) {
    %c0_i32 = arith.constant 0 : i32
    %c0_i32_0 = arith.constant 0 : i32
    %c0_i32_1 = arith.constant 0 : i32
    return %arg0, %c0_i32, %c0_i32_0 : i32, i32, i32
  }
  func.func @transform_3(%arg0: i32) -> (i32, i32) {
    %c0_i32 = arith.constant 0 : i32
    %c0_i32_0 = arith.constant 0 : i32
    %c0_i32_1 = arith.constant 0 : i32
    return %c0_i32, %c0_i32_0 : i32, i32
  }
  func.func @transform_4(%arg0: i32) -> (i32, i32, i32) {
    %c0_i32 = arith.constant 0 : i32
    %c0_i32_0 = arith.constant 0 : i32
    %c0_i32_1 = arith.constant 0 : i32
    return %arg0, %c0_i32, %c0_i32_0 : i32, i32, i32
  }
}

module attributes {stable_mosaic.version = 11 : i64} {
  func.func @_conv2_kernel(%arg0: i32, %arg1: memref<1x64x128xbf16, #tpu.memory_space<vmem>>, %arg2: memref<2x128xf32, #tpu.memory_space<vmem>>, %arg3: memref<1152x128xbf16, #tpu.memory_space<vmem>>, %arg4: memref<1x64x128xf32, #tpu.memory_space<vmem>>, %arg5: memref<1x2x128xf32, #tpu.memory_space<vmem>>, %arg6: memref<8x8x1152xbf16, #tpu.memory_space<vmem>>) attributes {dimension_semantics = [#tpu.dimension_semantics<parallel>], iteration_bounds = array<i64: 2>, scalar_prefetch = 0 : i64, scratch_operands = 1 : i64, tpu.core_type = #tpu.core_type<tc>, window_params = [{transform_indices = @transform_0, window_bounds = array<i64: 1, 64, 128>}, {pipeline_mode = #tpu.pipeline_mode<synchronous>, transform_indices = @transform_1, window_bounds = array<i64: 2, 128>}, {pipeline_mode = #tpu.pipeline_mode<synchronous>, transform_indices = @transform_2, window_bounds = array<i64: 1152, 128>}, {transform_indices = @transform_3, window_bounds = array<i64: 1, 64, 128>}, {transform_indices = @transform_4, window_bounds = array<i64: 1, 2, 128>}]} {
    %c0 = arith.constant 0 : index
    %c0_0 = arith.constant 0 : index
    %0 = vector.load %arg2[%c0, %c0_0] : memref<2x128xf32, #tpu.memory_space<vmem>>, vector<1x128xf32>
    %c1 = arith.constant 1 : index
    %c0_1 = arith.constant 0 : index
    %1 = vector.load %arg2[%c1, %c0_1] : memref<2x128xf32, #tpu.memory_space<vmem>>, vector<1x128xf32>
    %c0_2 = arith.constant 0 : index
    %c0_3 = arith.constant 0 : index
    %c0_4 = arith.constant 0 : index
    %2 = vector.load %arg1[%c0_2, %c0_3, %c0_4] : memref<1x64x128xbf16, #tpu.memory_space<vmem>>, vector<1x64x128xbf16>
    %3 = vector.shape_cast %2 : vector<1x64x128xbf16> to vector<64x128xbf16>
    %4 = arith.extf %3 : vector<64x128xbf16> to vector<64x128xf32>
    %5 = vector.broadcast %0 : vector<1x128xf32> to vector<64x128xf32>
    %6 = arith.mulf %4, %5 : vector<64x128xf32>
    %7 = vector.broadcast %1 : vector<1x128xf32> to vector<64x128xf32>
    %8 = arith.addf %6, %7 : vector<64x128xf32>
    %cst = arith.constant 0.000000e+00 : f32
    %9 = vector.broadcast %cst : f32 to vector<64x128xf32>
    %10 = arith.maximumf %8, %9 : vector<64x128xf32>
    %11 = vector.shape_cast %10 : vector<64x128xf32> to vector<8x8x128xf32>
    %12 = arith.truncf %11 : vector<8x8x128xf32> to vector<8x8x128xbf16>
    %cst_5 = arith.constant 0.000000e+00 : bf16
    %13 = vector.broadcast %cst_5 : bf16 to vector<1x8x128xbf16>
    %cst_6 = arith.constant 0.000000e+00 : bf16
    %14 = vector.broadcast %cst_6 : bf16 to vector<8x1x128xbf16>
    %c0_7 = arith.constant 0 : index
    %c0_8 = arith.constant 0 : index
    %c0_9 = arith.constant 0 : index
    %15 = vector.load %arg6[%c0_7, %c0_8, %c0_9] : memref<8x8x1152xbf16, #tpu.memory_space<vmem>>, vector<1x8x128xbf16>
    tpu.vector_store %arg6[%c0_7, %c0_8, %c0_9], %13 {strides = array<i32>} : memref<8x8x1152xbf16, #tpu.memory_space<vmem>>, vector<1x8x128xbf16>,
    %c0_10 = arith.constant 0 : index
    %c0_11 = arith.constant 0 : index
    %c0_12 = arith.constant 0 : index
    %16 = vector.load %arg6[%c0_10, %c0_11, %c0_12] : memref<8x8x1152xbf16, #tpu.memory_space<vmem>>, vector<8x1x128xbf16>
    tpu.vector_store %arg6[%c0_10, %c0_11, %c0_12], %14 {strides = array<i32>} : memref<8x8x1152xbf16, #tpu.memory_space<vmem>>, vector<8x1x128xbf16>,
    %17 = vector.extract_strided_slice %12 {offsets = [0, 0, 0], sizes = [7, 7, 128], strides = [1, 1, 1]} : vector<8x8x128xbf16> to vector<7x7x128xbf16>
    %c1_13 = arith.constant 1 : index
    %c1_14 = arith.constant 1 : index
    %c0_15 = arith.constant 0 : index
    %18 = vector.load %arg6[%c1_13, %c1_14, %c0_15] : memref<8x8x1152xbf16, #tpu.memory_space<vmem>>, vector<7x7x128xbf16>
    tpu.vector_store %arg6[%c1_13, %c1_14, %c0_15], %17 {strides = array<i32>} : memref<8x8x1152xbf16, #tpu.memory_space<vmem>>, vector<7x7x128xbf16>,
    %c0_16 = arith.constant 0 : index
    %c0_17 = arith.constant 0 : index
    %c128 = arith.constant 128 : index
    %19 = vector.load %arg6[%c0_16, %c0_17, %c128] : memref<8x8x1152xbf16, #tpu.memory_space<vmem>>, vector<1x8x128xbf16>
    tpu.vector_store %arg6[%c0_16, %c0_17, %c128], %13 {strides = array<i32>} : memref<8x8x1152xbf16, #tpu.memory_space<vmem>>, vector<1x8x128xbf16>,
    %20 = vector.extract_strided_slice %12 {offsets = [0, 0, 0], sizes = [7, 8, 128], strides = [1, 1, 1]} : vector<8x8x128xbf16> to vector<7x8x128xbf16>
    %c1_18 = arith.constant 1 : index
    %c0_19 = arith.constant 0 : index
    %c128_20 = arith.constant 128 : index
    %21 = vector.load %arg6[%c1_18, %c0_19, %c128_20] : memref<8x8x1152xbf16, #tpu.memory_space<vmem>>, vector<7x8x128xbf16>
    tpu.vector_store %arg6[%c1_18, %c0_19, %c128_20], %20 {strides = array<i32>} : memref<8x8x1152xbf16, #tpu.memory_space<vmem>>, vector<7x8x128xbf16>,
    %c0_21 = arith.constant 0 : index
    %c0_22 = arith.constant 0 : index
    %c256 = arith.constant 256 : index
    %22 = vector.load %arg6[%c0_21, %c0_22, %c256] : memref<8x8x1152xbf16, #tpu.memory_space<vmem>>, vector<1x8x128xbf16>
    tpu.vector_store %arg6[%c0_21, %c0_22, %c256], %13 {strides = array<i32>} : memref<8x8x1152xbf16, #tpu.memory_space<vmem>>, vector<1x8x128xbf16>,
    %c0_23 = arith.constant 0 : index
    %c7 = arith.constant 7 : index
    %c256_24 = arith.constant 256 : index
    %23 = vector.load %arg6[%c0_23, %c7, %c256_24] : memref<8x8x1152xbf16, #tpu.memory_space<vmem>>, vector<8x1x128xbf16>
    tpu.vector_store %arg6[%c0_23, %c7, %c256_24], %14 {strides = array<i32>} : memref<8x8x1152xbf16, #tpu.memory_space<vmem>>, vector<8x1x128xbf16>,
    %24 = vector.extract_strided_slice %12 {offsets = [0, 1, 0], sizes = [7, 7, 128], strides = [1, 1, 1]} : vector<8x8x128xbf16> to vector<7x7x128xbf16>
    %c1_25 = arith.constant 1 : index
    %c0_26 = arith.constant 0 : index
    %c256_27 = arith.constant 256 : index
    %25 = vector.load %arg6[%c1_25, %c0_26, %c256_27] : memref<8x8x1152xbf16, #tpu.memory_space<vmem>>, vector<7x7x128xbf16>
    tpu.vector_store %arg6[%c1_25, %c0_26, %c256_27], %24 {strides = array<i32>} : memref<8x8x1152xbf16, #tpu.memory_space<vmem>>, vector<7x7x128xbf16>,
    %c0_28 = arith.constant 0 : index
    %c0_29 = arith.constant 0 : index
    %c384 = arith.constant 384 : index
    %26 = vector.load %arg6[%c0_28, %c0_29, %c384] : memref<8x8x1152xbf16, #tpu.memory_space<vmem>>, vector<8x1x128xbf16>
    tpu.vector_store %arg6[%c0_28, %c0_29, %c384], %14 {strides = array<i32>} : memref<8x8x1152xbf16, #tpu.memory_space<vmem>>, vector<8x1x128xbf16>,
    %27 = vector.extract_strided_slice %12 {offsets = [0, 0, 0], sizes = [8, 7, 128], strides = [1, 1, 1]} : vector<8x8x128xbf16> to vector<8x7x128xbf16>
    %c0_30 = arith.constant 0 : index
    %c1_31 = arith.constant 1 : index
    %c384_32 = arith.constant 384 : index
    %28 = vector.load %arg6[%c0_30, %c1_31, %c384_32] : memref<8x8x1152xbf16, #tpu.memory_space<vmem>>, vector<8x7x128xbf16>
    tpu.vector_store %arg6[%c0_30, %c1_31, %c384_32], %27 {strides = array<i32>} : memref<8x8x1152xbf16, #tpu.memory_space<vmem>>, vector<8x7x128xbf16>,
    %c0_33 = arith.constant 0 : index
    %c0_34 = arith.constant 0 : index
    %c512 = arith.constant 512 : index
    %29 = vector.load %arg6[%c0_33, %c0_34, %c512] : memref<8x8x1152xbf16, #tpu.memory_space<vmem>>, vector<8x8x128xbf16>
    tpu.vector_store %arg6[%c0_33, %c0_34, %c512], %12 {strides = array<i32>} : memref<8x8x1152xbf16, #tpu.memory_space<vmem>>, vector<8x8x128xbf16>,
    %c0_35 = arith.constant 0 : index
    %c7_36 = arith.constant 7 : index
    %c640 = arith.constant 640 : index
    %30 = vector.load %arg6[%c0_35, %c7_36, %c640] : memref<8x8x1152xbf16, #tpu.memory_space<vmem>>, vector<8x1x128xbf16>
    tpu.vector_store %arg6[%c0_35, %c7_36, %c640], %14 {strides = array<i32>} : memref<8x8x1152xbf16, #tpu.memory_space<vmem>>, vector<8x1x128xbf16>,
    %31 = vector.extract_strided_slice %12 {offsets = [0, 1, 0], sizes = [8, 7, 128], strides = [1, 1, 1]} : vector<8x8x128xbf16> to vector<8x7x128xbf16>
    %c0_37 = arith.constant 0 : index
    %c0_38 = arith.constant 0 : index
    %c640_39 = arith.constant 640 : index
    %32 = vector.load %arg6[%c0_37, %c0_38, %c640_39] : memref<8x8x1152xbf16, #tpu.memory_space<vmem>>, vector<8x7x128xbf16>
    tpu.vector_store %arg6[%c0_37, %c0_38, %c640_39], %31 {strides = array<i32>} : memref<8x8x1152xbf16, #tpu.memory_space<vmem>>, vector<8x7x128xbf16>,
    %c7_40 = arith.constant 7 : index
    %c0_41 = arith.constant 0 : index
    %c768 = arith.constant 768 : index
    %33 = vector.load %arg6[%c7_40, %c0_41, %c768] : memref<8x8x1152xbf16, #tpu.memory_space<vmem>>, vector<1x8x128xbf16>
    tpu.vector_store %arg6[%c7_40, %c0_41, %c768], %13 {strides = array<i32>} : memref<8x8x1152xbf16, #tpu.memory_space<vmem>>, vector<1x8x128xbf16>,
    %c0_42 = arith.constant 0 : index
    %c0_43 = arith.constant 0 : index
    %c768_44 = arith.constant 768 : index
    %34 = vector.load %arg6[%c0_42, %c0_43, %c768_44] : memref<8x8x1152xbf16, #tpu.memory_space<vmem>>, vector<8x1x128xbf16>
    tpu.vector_store %arg6[%c0_42, %c0_43, %c768_44], %14 {strides = array<i32>} : memref<8x8x1152xbf16, #tpu.memory_space<vmem>>, vector<8x1x128xbf16>,
    %35 = vector.extract_strided_slice %12 {offsets = [1, 0, 0], sizes = [7, 7, 128], strides = [1, 1, 1]} : vector<8x8x128xbf16> to vector<7x7x128xbf16>
    %c0_45 = arith.constant 0 : index
    %c1_46 = arith.constant 1 : index
    %c768_47 = arith.constant 768 : index
    %36 = vector.load %arg6[%c0_45, %c1_46, %c768_47] : memref<8x8x1152xbf16, #tpu.memory_space<vmem>>, vector<7x7x128xbf16>
    tpu.vector_store %arg6[%c0_45, %c1_46, %c768_47], %35 {strides = array<i32>} : memref<8x8x1152xbf16, #tpu.memory_space<vmem>>, vector<7x7x128xbf16>,
    %c7_48 = arith.constant 7 : index
    %c0_49 = arith.constant 0 : index
    %c896 = arith.constant 896 : index
    %37 = vector.load %arg6[%c7_48, %c0_49, %c896] : memref<8x8x1152xbf16, #tpu.memory_space<vmem>>, vector<1x8x128xbf16>
    tpu.vector_store %arg6[%c7_48, %c0_49, %c896], %13 {strides = array<i32>} : memref<8x8x1152xbf16, #tpu.memory_space<vmem>>, vector<1x8x128xbf16>,
    %38 = vector.extract_strided_slice %12 {offsets = [1, 0, 0], sizes = [7, 8, 128], strides = [1, 1, 1]} : vector<8x8x128xbf16> to vector<7x8x128xbf16>
    %c0_50 = arith.constant 0 : index
    %c0_51 = arith.constant 0 : index
    %c896_52 = arith.constant 896 : index
    %39 = vector.load %arg6[%c0_50, %c0_51, %c896_52] : memref<8x8x1152xbf16, #tpu.memory_space<vmem>>, vector<7x8x128xbf16>
    tpu.vector_store %arg6[%c0_50, %c0_51, %c896_52], %38 {strides = array<i32>} : memref<8x8x1152xbf16, #tpu.memory_space<vmem>>, vector<7x8x128xbf16>,
    %c7_53 = arith.constant 7 : index
    %c0_54 = arith.constant 0 : index
    %c1024 = arith.constant 1024 : index
    %40 = vector.load %arg6[%c7_53, %c0_54, %c1024] : memref<8x8x1152xbf16, #tpu.memory_space<vmem>>, vector<1x8x128xbf16>
    tpu.vector_store %arg6[%c7_53, %c0_54, %c1024], %13 {strides = array<i32>} : memref<8x8x1152xbf16, #tpu.memory_space<vmem>>, vector<1x8x128xbf16>,
    %c0_55 = arith.constant 0 : index
    %c7_56 = arith.constant 7 : index
    %c1024_57 = arith.constant 1024 : index
    %41 = vector.load %arg6[%c0_55, %c7_56, %c1024_57] : memref<8x8x1152xbf16, #tpu.memory_space<vmem>>, vector<8x1x128xbf16>
    tpu.vector_store %arg6[%c0_55, %c7_56, %c1024_57], %14 {strides = array<i32>} : memref<8x8x1152xbf16, #tpu.memory_space<vmem>>, vector<8x1x128xbf16>,
    %42 = vector.extract_strided_slice %12 {offsets = [1, 1, 0], sizes = [7, 7, 128], strides = [1, 1, 1]} : vector<8x8x128xbf16> to vector<7x7x128xbf16>
    %c0_58 = arith.constant 0 : index
    %c0_59 = arith.constant 0 : index
    %c1024_60 = arith.constant 1024 : index
    %43 = vector.load %arg6[%c0_58, %c0_59, %c1024_60] : memref<8x8x1152xbf16, #tpu.memory_space<vmem>>, vector<7x7x128xbf16>
    tpu.vector_store %arg6[%c0_58, %c0_59, %c1024_60], %42 {strides = array<i32>} : memref<8x8x1152xbf16, #tpu.memory_space<vmem>>, vector<7x7x128xbf16>,
    %c0_61 = arith.constant 0 : index
    %c0_62 = arith.constant 0 : index
    %c0_63 = arith.constant 0 : index
    %44 = vector.load %arg6[%c0_61, %c0_62, %c0_63] : memref<8x8x1152xbf16, #tpu.memory_space<vmem>>, vector<8x8x1152xbf16>
    %45 = vector.shape_cast %44 : vector<8x8x1152xbf16> to vector<64x1152xbf16>
    %c0_64 = arith.constant 0 : index
    %c0_65 = arith.constant 0 : index
    %46 = vector.load %arg3[%c0_64, %c0_65] : memref<1152x128xbf16, #tpu.memory_space<vmem>>, vector<1152x128xbf16>
    %cst_66 = arith.constant dense<0.000000e+00> : vector<64x128xf32>
    %47 = tpu.matmul %45, %46, %cst_66 {dimension_numbers = #tpu.dot_dimension_numbers<[1], [0], [0], [1], [0, 0, 1, 1], [], []>} : vector<64x1152xbf16>, vector<1152x128xbf16>, vector<64x128xf32> -> vector<64x128xf32>
    %c0_67 = arith.constant 0 : index
    %c0_68 = arith.constant 0 : index
    %c0_69 = arith.constant 0 : index
    %48 = vector.load %arg4[%c0_67, %c0_68, %c0_69] : memref<1x64x128xf32, #tpu.memory_space<vmem>>, vector<1x64x128xf32>
    %49 = vector.shape_cast %48 : vector<1x64x128xf32> to vector<64x128xf32>
    %50 = vector.shape_cast %47 : vector<64x128xf32> to vector<1x64x128xf32>
    tpu.vector_store %arg4[%c0_67, %c0_68, %c0_69], %50 {strides = array<i32>} : memref<1x64x128xf32, #tpu.memory_space<vmem>>, vector<1x64x128xf32>,
    %cst_70 = arith.constant dense<0.000000e+00> : vector<128xf32>
    %51 = vector.multi_reduction <add>, %47, %cst_70 [0] : vector<64x128xf32> to vector<128xf32>
    %52 = vector.shape_cast %51 : vector<128xf32> to vector<1x128xf32>
    %c0_71 = arith.constant 0 : index
    %c0_72 = arith.constant 0 : index
    %c0_73 = arith.constant 0 : index
    %53 = vector.load %arg5[%c0_71, %c0_72, %c0_73] : memref<1x2x128xf32, #tpu.memory_space<vmem>>, vector<1x1x128xf32>
    %54 = vector.shape_cast %53 : vector<1x1x128xf32> to vector<1x128xf32>
    %55 = vector.shape_cast %52 : vector<1x128xf32> to vector<1x1x128xf32>
    tpu.vector_store %arg5[%c0_71, %c0_72, %c0_73], %55 {strides = array<i32>} : memref<1x2x128xf32, #tpu.memory_space<vmem>>, vector<1x1x128xf32>,
    %56 = arith.mulf %47, %47 : vector<64x128xf32>
    %cst_74 = arith.constant dense<0.000000e+00> : vector<128xf32>
    %57 = vector.multi_reduction <add>, %56, %cst_74 [0] : vector<64x128xf32> to vector<128xf32>
    %58 = vector.shape_cast %57 : vector<128xf32> to vector<1x128xf32>
    %c0_75 = arith.constant 0 : index
    %c1_76 = arith.constant 1 : index
    %c0_77 = arith.constant 0 : index
    %59 = vector.load %arg5[%c0_75, %c1_76, %c0_77] : memref<1x2x128xf32, #tpu.memory_space<vmem>>, vector<1x1x128xf32>
    %60 = vector.shape_cast %59 : vector<1x1x128xf32> to vector<1x128xf32>
    %61 = vector.shape_cast %58 : vector<1x128xf32> to vector<1x1x128xf32>
    tpu.vector_store %arg5[%c0_75, %c1_76, %c0_77], %61 {strides = array<i32>} : memref<1x2x128xf32, #tpu.memory_space<vmem>>, vector<1x1x128xf32>,
    return
  }
  func.func @transform_0(%arg0: i32) -> (i32, i32, i32) {
    %c0_i32 = arith.constant 0 : i32
    %c0_i32_0 = arith.constant 0 : i32
    %c0_i32_1 = arith.constant 0 : i32
    return %arg0, %c0_i32, %c0_i32_0 : i32, i32, i32
  }
  func.func @transform_1(%arg0: i32) -> (i32, i32) {
    %c0_i32 = arith.constant 0 : i32
    %c0_i32_0 = arith.constant 0 : i32
    %c0_i32_1 = arith.constant 0 : i32
    return %c0_i32, %c0_i32_0 : i32, i32
  }
  func.func @transform_2(%arg0: i32) -> (i32, i32) {
    %c0_i32 = arith.constant 0 : i32
    %c0_i32_0 = arith.constant 0 : i32
    %c0_i32_1 = arith.constant 0 : i32
    return %c0_i32, %c0_i32_0 : i32, i32
  }
  func.func @transform_3(%arg0: i32) -> (i32, i32, i32) {
    %c0_i32 = arith.constant 0 : i32
    %c0_i32_0 = arith.constant 0 : i32
    %c0_i32_1 = arith.constant 0 : i32
    return %arg0, %c0_i32, %c0_i32_0 : i32, i32, i32
  }
  func.func @transform_4(%arg0: i32) -> (i32, i32, i32) {
    %c0_i32 = arith.constant 0 : i32
    %c0_i32_0 = arith.constant 0 : i32
    %c0_i32_1 = arith.constant 0 : i32
    return %arg0, %c0_i32, %c0_i32_0 : i32, i32, i32
  }
}

</mosaic_0001>

<llo_original>
// kernel: _basic_block_fwd.5
$region0: #{_basic_block_fwd.5}
  #allocation0 [shape = 'u32[]', space=smem, size = 0x4, offset = 0x4, fixed_abs, tag = 'smem constant byte address 0x4 - core index']
  #allocation1 [shape = 'u32[144,128]{1,0:T(1,128)}', space=vmem, size = 0x12000, scoped, tag = 'internal scratch']
  %s0 = inlined_call_operand.vmem [shape: f32[2,64,128], index: 0, kind: input, shape index: {}]
  %s1 = inlined_call_operand.vmem [shape: f32[2,128], index: 1, kind: input, shape index: {}]
  %s2 = inlined_call_operand.vmem [shape: bf16[2,64,128], index: 2, kind: input, shape index: {}]
  %s3 = inlined_call_operand.vmem [shape: f32[2,128], index: 3, kind: input, shape index: {}]
  %s4 = inlined_call_operand.vmem [shape: f32[2,64,128], index: 4, kind: output, shape index: {}]
  %s5 = sld [smem:[#allocation0]]
  $region49: #{_basic_block_fwd.5} parent=0
    _
  %s7 = ssub.s32 1, %s5
  %s8 = scalar_select 0, %s7, %s5
  loop: start=0, step=1, limit=4
  $region2: #{_basic_block_fwd.5} parent=0 // loop_pre_header
    _
  $region3: #{_basic_block_fwd.5} parent=0 // loop_header
    %s10 = sphi 0, %s14
    %p11 = scmp.ge.s32.totalorder %s10, 4
    %s20 = sphi 0, %s22
    %s23 = sphi 0, %s20
    %s24 = sphi 0, %s23
    %s40 = sphi 0, %s24
    %s44 = sphi 0, %s44
    %s46 = sphi 0, %s44
    %s47 = sphi 0, %s46
    %s61 = sphi 0, %s47
    %s67 = sphi 0, %s69
    %s70 = sphi 0, %s67
    %s71 = sphi 0, %s70
    %s87 = sphi 0, %s71
    %s91 = sphi 0, %s91
    %s93 = sphi 0, %s91
    %s94 = sphi 0, %s93
    %s108 = sphi 0, %s94
    %s114 = sphi 0, %s116
    %s117 = sphi 0, %s114
    %s118 = sphi 0, %s117
    %s134 = sphi 0, %s118
  $region4: #{_basic_block_fwd.5} parent=0 // loop_header_branch
    %13 = sbr.rel (%p11) target = $region8
  $region5: #{_basic_block_fwd.5} parent=0 // loop_body
    %s15 = ssub.s32 %s10, 1
    %s16 = ssub.s32 %s10, 2
    %s17 = sadd.s32 %s10, 1
    %s18 = ssub.s32 %s10, %s17
    %p19 = scmp.eq.s32.totalorder %s18, 0
    %s21 = sadd.s32 %s20, 1
    %s22 = scalar_select %p19, %s20, %s21
    %p25 = pneg %p19
    %p26 = scmp.eq.s32.totalorder %s10, 1
    %p27 = por %p25, %p26
    %p28 = scmp.ne.s32.totalorder %s20, %s23
    %p29 = scmp.eq.s32.totalorder %s10, 0
    %p30 = por %p28, %p29
    %p31 = scmp.ne.s32.totalorder %s20, %s23
    %p32 = scmp.eq.s32.totalorder %s15, 1
    %p33 = por %p31, %p32
    %p34 = scmp.ne.s32.totalorder %s23, %s24
    %p35 = scmp.eq.s32.totalorder %s15, 0
    %p36 = por %p34, %p35
    %p37 = scmp.ne.s32.totalorder %s23, %s24
    %p38 = scmp.eq.s32.totalorder %s16, 1
    %p39 = por %p37, %p38
    %p41 = scmp.ne.s32.totalorder %s24, %s40
    %p42 = scmp.eq.s32.totalorder %s16, 0
    %p43 = por %p41, %p42
    %s45 = sadd.s32 %s44, 1
    %p48 = scmp.eq.s32.totalorder %s10, 1
    %p49 = scmp.ne.s32.totalorder %s44, %s46
    %p50 = scmp.eq.s32.totalorder %s10, 0
    %p51 = por %p49, %p50
    %p52 = scmp.ne.s32.totalorder %s44, %s46
    %p53 = scmp.eq.s32.totalorder %s15, 1
    %p54 = por %p52, %p53
    %p55 = scmp.ne.s32.totalorder %s46, %s47
    %p56 = scmp.eq.s32.totalorder %s15, 0
    %p57 = por %p55, %p56
    %p58 = scmp.ne.s32.totalorder %s46, %s47
    %p59 = scmp.eq.s32.totalorder %s16, 1
    %p60 = por %p58, %p59
    %p62 = scmp.ne.s32.totalorder %s47, %s61
    %p63 = scmp.eq.s32.totalorder %s16, 0
    %p64 = por %p62, %p63
    %s65 = ssub.s32 %s10, %s17
    %p66 = scmp.eq.s32.totalorder %s65, 0
    %s68 = sadd.s32 %s67, 1
    %s69 = scalar_select %p66, %s67, %s68
    %p72 = pneg %p66
    %p73 = scmp.eq.s32.totalorder %s10, 1
    %p74 = por %p72, %p73
    %p75 = scmp.ne.s32.totalorder %s67, %s70
    %p76 = scmp.eq.s32.totalorder %s10, 0
    %p77 = por %p75, %p76
    %p78 = scmp.ne.s32.totalorder %s67, %s70
    %p79 = scmp.eq.s32.totalorder %s15, 1
    %p80 = por %p78, %p79
    %p81 = scmp.ne.s32.totalorder %s70, %s71
    %p82 = scmp.eq.s32.totalorder %s15, 0
    %p83 = por %p81, %p82
    %p84 = scmp.ne.s32.totalorder %s70, %s71
    %p85 = scmp.eq.s32.totalorder %s16, 1
    %p86 = por %p84, %p85
    %p88 = scmp.ne.s32.totalorder %s71, %s87
    %p89 = scmp.eq.s32.totalorder %s16, 0
    %p90 = por %p88, %p89
    %s92 = sadd.s32 %s91, 1
    %p95 = scmp.eq.s32.totalorder %s10, 1
    %p96 = scmp.ne.s32.totalorder %s91, %s93
    %p97 = scmp.eq.s32.totalorder %s10, 0
    %p98 = por %p96, %p97
    %p99 = scmp.ne.s32.totalorder %s91, %s93
    %p100 = scmp.eq.s32.totalorder %s15, 1
    %p101 = por %p99, %p100
    %p102 = scmp.ne.s32.totalorder %s93, %s94
    %p103 = scmp.eq.s32.totalorder %s15, 0
    %p104 = por %p102, %p103
    %p105 = scmp.ne.s32.totalorder %s93, %s94
    %p106 = scmp.eq.s32.totalorder %s16, 1
    %p107 = por %p105, %p106
    %p109 = scmp.ne.s32.totalorder %s94, %s108
    %p110 = scmp.eq.s32.totalorder %s16, 0
    %p111 = por %p109, %p110
    %s112 = ssub.s32 %s10, %s17
    %p113 = scmp.eq.s32.totalorder %s112, 0
    %s115 = sadd.s32 %s114, 1
    %s116 = scalar_select %p113, %s114, %s115
    %p119 = pneg %p113
    %p120 = scmp.eq.s32.totalorder %s10, 1
    %p121 = por %p119, %p120
    %p122 = scmp.ne.s32.totalorder %s114, %s117
    %p123 = scmp.eq.s32.totalorder %s10, 0
    %p124 = por %p122, %p123
    %p125 = scmp.ne.s32.totalorder %s114, %s117
    %p126 = scmp.eq.s32.totalorder %s15, 1
    %p127 = por %p125, %p126
    %p128 = scmp.ne.s32.totalorder %s117, %s118
    %p129 = scmp.eq.s32.totalorder %s15, 0
    %p130 = por %p128, %p129
    %p131 = scmp.ne.s32.totalorder %s117, %s118
    %p132 = scmp.eq.s32.totalorder %s16, 1
    %p133 = por %p131, %p132
    %p135 = scmp.ne.s32.totalorder %s118, %s134
    %p136 = scmp.eq.s32.totalorder %s16, 0
    %p137 = por %p135, %p136
    %p138 = scmp.le.s32.totalorder 1, %s10
    %p139 = scmp.lt.s32.totalorder %s10, 3
    %p140 = pnand %p138, %p139
    %p141 = pneg %p140
    // Predicated region
    $region9: #{_basic_block_fwd.5} parent=5 // pred_check
      _
    $region10: #{_basic_block_fwd.5} parent=5 // pred_check_branch
      %143 = sbr.rel (%p140) target = $region12
    $region11: #{_basic_block_fwd.5} parent=5 // pred_region
      %s144 = ssub.s32 %s10, 1
      // Predicated region
      $region13: #{_basic_block_fwd.5} parent=11 // pred_check
        %p145 = pneg %p57
      $region14: #{_basic_block_fwd.5} parent=11 // pred_check_branch
        %147 = sbr.rel (%p145) target = $region16
      $region15: #{_basic_block_fwd.5} parent=11 // pred_region
        _
      $region16: #{_basic_block_fwd.5} parent=11 // pred_fallthru
        _
      // Predicated region
      $region17: #{_basic_block_fwd.5} parent=11 // pred_check
        %p148 = pneg %p104
      $region18: #{_basic_block_fwd.5} parent=11 // pred_check_branch
        %150 = sbr.rel (%p148) target = $region20
      $region19: #{_basic_block_fwd.5} parent=11 // pred_region
        _
      $region20: #{_basic_block_fwd.5} parent=11 // pred_fallthru
        _
    $region12: #{_basic_block_fwd.5} parent=5 // pred_fallthru
      _
    %p151 = scmp.lt.s32.totalorder %s10, 2
    // Predicated region
    $region21: #{_basic_block_fwd.5} parent=5 // pred_check
      %p152 = pneg %p151
    $region22: #{_basic_block_fwd.5} parent=5 // pred_check_branch
      %154 = sbr.rel (%p152) target = $region24
    $region23: #{_basic_block_fwd.5} parent=5 // pred_region
      // Predicated region
      $region25: #{_basic_block_fwd.5} parent=23 // pred_check
        %p155 = pneg %p30
      $region26: #{_basic_block_fwd.5} parent=23 // pred_check_branch
        %157 = sbr.rel (%p155) target = $region28
      $region27: #{_basic_block_fwd.5} parent=23 // pred_region
        %p158 = scmp.lt.s32.totalorder %s10, 1
        %s159 = scalar_select %p158, %s10, 1
        %s160 = smul.addr %s159, 8
        %s161 = smul.addr %s160, 8
        %s162 = scalar_lea.vmem %s0, %s161
      $region28: #{_basic_block_fwd.5} parent=23 // pred_fallthru
        _
      // Predicated region
      $region29: #{_basic_block_fwd.5} parent=23 // pred_check
        %p163 = pneg %p77
      $region30: #{_basic_block_fwd.5} parent=23 // pred_check_branch
        %165 = sbr.rel (%p163) target = $region32
      $region31: #{_basic_block_fwd.5} parent=23 // pred_region
        %p166 = scmp.lt.s32.totalorder %s10, 1
        %s167 = scalar_select %p166, %s10, 1
        %s168 = smul.addr %s167, 8
        %s169 = smul.addr %s168, 4
        %s170 = scalar_lea.vmem %s2, %s169
      $region32: #{_basic_block_fwd.5} parent=23 // pred_fallthru
        _
    $region24: #{_basic_block_fwd.5} parent=5 // pred_fallthru
      _
    %p171 = scmp.le.s32.totalorder 1, %s10
    %p172 = scmp.lt.s32.totalorder %s10, 3
    %p173 = pnand %p171, %p172
    %p174 = pneg %p173
    // Predicated region
    $region33: #{_basic_block_fwd.5} parent=5 // pred_check
      _
    $region34: #{_basic_block_fwd.5} parent=5 // pred_check_branch
      %176 = sbr.rel (%p173) target = $region36
    $region35: #{_basic_block_fwd.5} parent=5 // pred_region
      %s177 = ssub.s32 %s10, 1
      %p178 = scmp.lt.s32.totalorder %s15, 1
      %s179 = scalar_select %p178, %s15, 1
      %s180 = smul.addr %s179, 8
      %s181 = smul.addr %s180, 8
      %s182 = scalar_lea.vmem %s0, %s181
      %p183 = pneg %p36
      %p184 = pneg %p33
      %p185 = pneg %p57
      %p186 = pneg %p54
      %p187 = scmp.lt.s32.totalorder %s15, 1
      %s188 = scalar_select %p187, %s15, 1
      %s189 = smul.addr %s188, 8
      %s190 = smul.addr %s189, 4
      %s191 = scalar_lea.vmem %s2, %s190
      %p192 = pneg %p83
      %p193 = pneg %p80
      %p194 = pneg %p104
      %p195 = pneg %p101
      %p196 = pneg %p130
      %p197 = pneg %p127
      %p198 = scmp.lt.s32.totalorder %s15, 1
      %s199 = scalar_select %p198, %s15, 1
      %s200 = smul.addr %s199, 8
      %s201 = smul.addr %s200, 8
      %s202 = scalar_lea.vmem %s4, %s201
      %p203 = scmp.lt.s32.totalorder %s15, 1
      %s204 = scalar_select %p203, %s15, 1
      %s205 = smul.addr %s204, 8
      %s206 = smul.addr %s205, 8
      %s207 = scalar_lea.vmem %s0, %s206
      %p208 = scmp.lt.s32.totalorder %s15, 1
      %s209 = scalar_select %p208, %s15, 1
      %s210 = smul.addr %s209, 8
      %s211 = smul.addr %s210, 4
      %s212 = scalar_lea.vmem %s2, %s211
      %p213 = scmp.lt.s32.totalorder %s15, 1
      %s214 = scalar_select %p213, %s15, 1
      %s215 = smul.addr %s214, 8
      %s216 = smul.addr %s215, 8
      %s217 = scalar_lea.vmem %s4, %s216
      %v218 = vld [vmem:[%s212] sm:$0xf]
      %v219 = vld [vmem:[%s212 + $0x4] sm:$0xf]
      %v220 = vld [vmem:[%s212 + $0x8] sm:$0xf]
      %v221 = vld [vmem:[%s212 + $0xc] sm:$0xf]
      %v222 = vld [vmem:[%s212 + $0x10] sm:$0xf]
      %v223 = vld [vmem:[%s212 + $0x14] sm:$0xf]
      %v224 = vld [vmem:[%s212 + $0x18] sm:$0xf]
      %v225 = vld [vmem:[%s212 + $0x1c] sm:$0xf]
      %v226 = vld [vmem:[%s3] sm:$0x1]
      %v227 = vunpack.c.l.bf16 %v218
      %v228 = vunpack.c.l.bf16 %v219
      %v229 = vunpack.c.l.bf16 %v220
      %v230 = vunpack.c.l.bf16 %v221
      %v231 = vunpack.c.l.bf16 %v222
      %v232 = vunpack.c.l.bf16 %v223
      %v233 = vunpack.c.l.bf16 %v224
      %v234 = vunpack.c.l.bf16 %v225
      %v235 = vlaneseq
      %v236 = vshrl.u32 %v235, 7
      %v237 = vsub.s32 0, %v236
      %v238 = vrot.slane %v226, %v237
      %v239 = vmul.f32 %v227, %v238
      %v240 = vmul.f32 %v228, %v238
      %v241 = vmul.f32 %v229, %v238
      %v242 = vmul.f32 %v230, %v238
      %v243 = vmul.f32 %v231, %v238
      %v244 = vmul.f32 %v232, %v238
      %v245 = vmul.f32 %v233, %v238
      %v246 = vmul.f32 %v234, %v238
      %v247 = vld [vmem:[%s3 + $0x1] sm:$0x1]
      %v248 = vlaneseq
      %v249 = vshrl.u32 %v248, 7
      %v250 = vsub.s32 0, %v249
      %v251 = vrot.slane %v247, %v250
      %v252 = vadd.f32 %v239, %v251
      %v253 = vadd.f32 %v240, %v251
      %v254 = vadd.f32 %v241, %v251
      %v255 = vadd.f32 %v242, %v251
      %v256 = vadd.f32 %v243, %v251
      %v257 = vadd.f32 %v244, %v251
      %v258 = vadd.f32 %v245, %v251
      %v259 = vadd.f32 %v246, %v251
      %v260 = vld [vmem:[%s207] sm:$0xff]
      %v261 = vld [vmem:[%s207 + $0x8] sm:$0xff]
      %v262 = vld [vmem:[%s207 + $0x10] sm:$0xff]
      %v263 = vld [vmem:[%s207 + $0x18] sm:$0xff]
      %v264 = vld [vmem:[%s207 + $0x20] sm:$0xff]
      %v265 = vld [vmem:[%s207 + $0x28] sm:$0xff]
      %v266 = vld [vmem:[%s207 + $0x30] sm:$0xff]
      %v267 = vld [vmem:[%s207 + $0x38] sm:$0xff]
      %v268 = vld [vmem:[%s1] sm:$0x1]
      %v269 = vlaneseq
      %v270 = vshrl.u32 %v269, 7
      %v271 = vsub.s32 0, %v270
      %v272 = vrot.slane %v268, %v271
      %v273 = vmul.f32 %v260, %v272
      %v274 = vmul.f32 %v261, %v272
      %v275 = vmul.f32 %v262, %v272
      %v276 = vmul.f32 %v263, %v272
      %v277 = vmul.f32 %v264, %v272
      %v278 = vmul.f32 %v265, %v272
      %v279 = vmul.f32 %v266, %v272
      %v280 = vmul.f32 %v267, %v272
      %v281 = vld [vmem:[%s1 + $0x1] sm:$0x1]
      %v282 = vlaneseq
      %v283 = vshrl.u32 %v282, 7
      %v284 = vsub.s32 0, %v283
      %v285 = vrot.slane %v281, %v284
      %v286 = vadd.f32 %v273, %v285
      %v287 = vadd.f32 %v274, %v285
      %v288 = vadd.f32 %v275, %v285
      %v289 = vadd.f32 %v276, %v285
      %v290 = vadd.f32 %v277, %v285
      %v291 = vadd.f32 %v278, %v285
      %v292 = vadd.f32 %v279, %v285
      %v293 = vadd.f32 %v280, %v285
      %v294 = vadd.f32 %v286, %v252
      %v295 = vadd.f32 %v287, %v253
      %v296 = vadd.f32 %v288, %v254
      %v297 = vadd.f32 %v289, %v255
      %v298 = vadd.f32 %v290, %v256
      %v299 = vadd.f32 %v291, %v257
      %v300 = vadd.f32 %v292, %v258
      %v301 = vadd.f32 %v293, %v259
      %v302 = vmax.f32 %v294, 0.0
      %v303 = vmax.f32 %v295, 0.0
      %v304 = vmax.f32 %v296, 0.0
      %v305 = vmax.f32 %v297, 0.0
      %v306 = vmax.f32 %v298, 0.0
      %v307 = vmax.f32 %v299, 0.0
      %v308 = vmax.f32 %v300, 0.0
      %v309 = vmax.f32 %v301, 0.0
      %310 = vst [vmem:[%s217] sm:$0xff] %v302
      %311 = vst [vmem:[%s217 + $0x8] sm:$0xff] %v303
      %312 = vst [vmem:[%s217 + $0x10] sm:$0xff] %v304
      %313 = vst [vmem:[%s217 + $0x18] sm:$0xff] %v305
      %314 = vst [vmem:[%s217 + $0x20] sm:$0xff] %v306
      %315 = vst [vmem:[%s217 + $0x28] sm:$0xff] %v307
      %316 = vst [vmem:[%s217 + $0x30] sm:$0xff] %v308
      %317 = vst [vmem:[%s217 + $0x38] sm:$0xff] %v309
      %p318 = scmp.lt.s32.totalorder %s15, 1
      %s319 = scalar_select %p318, %s15, 1
      %s320 = smul.addr %s319, 8
      %s321 = smul.addr %s320, 8
      %s322 = scalar_lea.vmem %s4, %s321
      // Predicated region
      $region37: #{_basic_block_fwd.5} parent=35 // pred_check
        %p323 = pneg %p127
      $region38: #{_basic_block_fwd.5} parent=35 // pred_check_branch
        %325 = sbr.rel (%p323) target = $region40
      $region39: #{_basic_block_fwd.5} parent=35 // pred_region
        _
      $region40: #{_basic_block_fwd.5} parent=35 // pred_fallthru
        _
    $region36: #{_basic_block_fwd.5} parent=5 // pred_fallthru
      _
    %p326 = scmp.le.s32.totalorder 2, %s10
    // Predicated region
    $region41: #{_basic_block_fwd.5} parent=5 // pred_check
      %p327 = pneg %p326
    $region42: #{_basic_block_fwd.5} parent=5 // pred_check_branch
      %329 = sbr.rel (%p327) target = $region44
    $region43: #{_basic_block_fwd.5} parent=5 // pred_region
      %s330 = ssub.s32 %s10, 2
      // Predicated region
      $region45: #{_basic_block_fwd.5} parent=43 // pred_check
        %p331 = pneg %p133
      $region46: #{_basic_block_fwd.5} parent=43 // pred_check_branch
        %333 = sbr.rel (%p331) target = $region48
      $region47: #{_basic_block_fwd.5} parent=43 // pred_region
        %p334 = scmp.lt.s32.totalorder %s16, 1
        %s335 = scalar_select %p334, %s16, 1
        %s336 = smul.addr %s335, 8
        %s337 = smul.addr %s336, 8
        %s338 = scalar_lea.vmem %s4, %s337
      $region48: #{_basic_block_fwd.5} parent=43 // pred_fallthru
        _
    $region44: #{_basic_block_fwd.5} parent=5 // pred_fallthru
      _
  $region6: #{_basic_block_fwd.5} parent=0 // loop_footer
    %s14 = sadd.s32 1, %s10
  $region7: #{_basic_block_fwd.5} parent=0 // loop_footer_branch
    %9 = sbr.rel target = $region3
  $region8: #{_basic_block_fwd.5} parent=0 // loop_exit
    _

// kernel: _basic_block_fwd.3
$region0: #{_basic_block_fwd.3}
  #allocation0 [shape = 'u32[]', space=smem, size = 0x4, offset = 0x4, fixed_abs, tag = 'smem constant byte address 0x4 - core index']
  #allocation1 [shape = 'u32[144,128]{1,0:T(1,128)}', space=vmem, size = 0x12000, scoped, tag = 'internal scratch']
  #allocation2 [shape = 'bf16[64,1152]{1,0:T(8,128)(2,1)}', space=vmem, size = 0x24000, scoped, tag = 'scratch operand']
  %s0 = inlined_call_operand.vmem [shape: bf16[2,64,128], index: 0, kind: input, shape index: {}]
  %s1 = inlined_call_operand.vmem [shape: bf16[2,64,128], index: 1, kind: input, shape index: {}]
  %s2 = inlined_call_operand.vmem [shape: bf16[2,64,128], index: 2, kind: input, shape index: {}]
  %s3 = inlined_call_operand.vmem [shape: bf16[2,64,128], index: 3, kind: input, shape index: {}]
  %s4 = inlined_call_operand.vmem [shape: bf16[2,64,128], index: 4, kind: input, shape index: {}]
  %s5 = inlined_call_operand.vmem [shape: bf16[2,64,128], index: 5, kind: input, shape index: {}]
  %s6 = inlined_call_operand.vmem [shape: bf16[2,64,128], index: 6, kind: input, shape index: {}]
  %s7 = inlined_call_operand.vmem [shape: bf16[2,64,128], index: 7, kind: input, shape index: {}]
  %s8 = inlined_call_operand.vmem [shape: bf16[2,64,128], index: 8, kind: input, shape index: {}]
  %s9 = inlined_call_operand.vmem [shape: bf16[1152,128], index: 9, kind: input, shape index: {}]
  %s10 = inlined_call_operand.vmem [shape: bf16[128,128], index: 10, kind: input, shape index: {}]
  %s11 = inlined_call_operand.vmem [shape: bf16[2,64,128], index: 11, kind: output, shape index: {0}]
  %s12 = inlined_call_operand.vmem [shape: f32[2,2,128], index: 12, kind: output, shape index: {1}]
  %s13 = inlined_call_operand.vmem [shape: bf16[2,64,128], index: 13, kind: output, shape index: {2}]
  %s14 = inlined_call_operand.vmem [shape: f32[2,2,128], index: 14, kind: output, shape index: {3}]
  %15 = xla_tuple %s11, %s12, %s13, %s14
  %s16 = sld [smem:[#allocation0]]
  $region101: #{_basic_block_fwd.3} parent=0
    _
  %s18 = ssub.s32 1, %s16
  %s19 = scalar_select 0, %s18, %s16
  loop: start=0, step=1, limit=4
  $region2: #{_basic_block_fwd.3} parent=0 // loop_pre_header
    _
  $region3: #{_basic_block_fwd.3} parent=0 // loop_header
    %s21 = sphi 0, %s25
    %p22 = scmp.ge.s32.totalorder %s21, 4
    %s31 = sphi 0, %s33
    %s34 = sphi 0, %s31
    %s35 = sphi 0, %s34
    %s51 = sphi 0, %s35
    %s57 = sphi 0, %s59
    %s60 = sphi 0, %s57
    %s61 = sphi 0, %s60
    %s77 = sphi 0, %s61
    %s83 = sphi 0, %s85
    %s86 = sphi 0, %s83
    %s87 = sphi 0, %s86
    %s103 = sphi 0, %s87
    %s109 = sphi 0, %s111
    %s112 = sphi 0, %s109
    %s113 = sphi 0, %s112
    %s129 = sphi 0, %s113
    %s135 = sphi 0, %s137
    %s138 = sphi 0, %s135
    %s139 = sphi 0, %s138
    %s155 = sphi 0, %s139
    %s161 = sphi 0, %s163
    %s164 = sphi 0, %s161
    %s165 = sphi 0, %s164
    %s181 = sphi 0, %s165
    %s187 = sphi 0, %s189
    %s190 = sphi 0, %s187
    %s191 = sphi 0, %s190
    %s207 = sphi 0, %s191
    %s213 = sphi 0, %s215
    %s216 = sphi 0, %s213
    %s217 = sphi 0, %s216
    %s233 = sphi 0, %s217
    %s239 = sphi 0, %s241
    %s242 = sphi 0, %s239
    %s243 = sphi 0, %s242
    %s259 = sphi 0, %s243
    %s263 = sphi 0, %s263
    %s265 = sphi 0, %s263
    %s266 = sphi 0, %s265
    %s280 = sphi 0, %s266
    %s284 = sphi 0, %s284
    %s286 = sphi 0, %s284
    %s287 = sphi 0, %s286
    %s301 = sphi 0, %s287
    %s307 = sphi 0, %s309
    %s310 = sphi 0, %s307
    %s311 = sphi 0, %s310
    %s327 = sphi 0, %s311
    %s333 = sphi 0, %s335
    %s336 = sphi 0, %s333
    %s337 = sphi 0, %s336
    %s353 = sphi 0, %s337
    %s359 = sphi 0, %s361
    %s362 = sphi 0, %s359
    %s363 = sphi 0, %s362
    %s379 = sphi 0, %s363
    %s385 = sphi 0, %s387
    %s388 = sphi 0, %s385
    %s389 = sphi 0, %s388
    %s405 = sphi 0, %s389
  $region4: #{_basic_block_fwd.3} parent=0 // loop_header_branch
    %24 = sbr.rel (%p22) target = $region8
  $region5: #{_basic_block_fwd.3} parent=0 // loop_body
    %s26 = ssub.s32 %s21, 1
    %s27 = ssub.s32 %s21, 2
    %s28 = sadd.s32 %s21, 1
    %s29 = ssub.s32 %s21, %s28
    %p30 = scmp.eq.s32.totalorder %s29, 0
    %s32 = sadd.s32 %s31, 1
    %s33 = scalar_select %p30, %s31, %s32
    %p36 = pneg %p30
    %p37 = scmp.eq.s32.totalorder %s21, 1
    %p38 = por %p36, %p37
    %p39 = scmp.ne.s32.totalorder %s31, %s34
    %p40 = scmp.eq.s32.totalorder %s21, 0
    %p41 = por %p39, %p40
    %p42 = scmp.ne.s32.totalorder %s31, %s34
    %p43 = scmp.eq.s32.totalorder %s26, 1
    %p44 = por %p42, %p43
    %p45 = scmp.ne.s32.totalorder %s34, %s35
    %p46 = scmp.eq.s32.totalorder %s26, 0
    %p47 = por %p45, %p46
    %p48 = scmp.ne.s32.totalorder %s34, %s35
    %p49 = scmp.eq.s32.totalorder %s27, 1
    %p50 = por %p48, %p49
    %p52 = scmp.ne.s32.totalorder %s35, %s51
    %p53 = scmp.eq.s32.totalorder %s27, 0
    %p54 = por %p52, %p53
    %s55 = ssub.s32 %s21, %s28
    %p56 = scmp.eq.s32.totalorder %s55, 0
    %s58 = sadd.s32 %s57, 1
    %s59 = scalar_select %p56, %s57, %s58
    %p62 = pneg %p56
    %p63 = scmp.eq.s32.totalorder %s21, 1
    %p64 = por %p62, %p63
    %p65 = scmp.ne.s32.totalorder %s57, %s60
    %p66 = scmp.eq.s32.totalorder %s21, 0
    %p67 = por %p65, %p66
    %p68 = scmp.ne.s32.totalorder %s57, %s60
    %p69 = scmp.eq.s32.totalorder %s26, 1
    %p70 = por %p68, %p69
    %p71 = scmp.ne.s32.totalorder %s60, %s61
    %p72 = scmp.eq.s32.totalorder %s26, 0
    %p73 = por %p71, %p72
    %p74 = scmp.ne.s32.totalorder %s60, %s61
    %p75 = scmp.eq.s32.totalorder %s27, 1
    %p76 = por %p74, %p75
    %p78 = scmp.ne.s32.totalorder %s61, %s77
    %p79 = scmp.eq.s32.totalorder %s27, 0
    %p80 = por %p78, %p79
    %s81 = ssub.s32 %s21, %s28
    %p82 = scmp.eq.s32.totalorder %s81, 0
    %s84 = sadd.s32 %s83, 1
    %s85 = scalar_select %p82, %s83, %s84
    %p88 = pneg %p82
    %p89 = scmp.eq.s32.totalorder %s21, 1
    %p90 = por %p88, %p89
    %p91 = scmp.ne.s32.totalorder %s83, %s86
    %p92 = scmp.eq.s32.totalorder %s21, 0
    %p93 = por %p91, %p92
    %p94 = scmp.ne.s32.totalorder %s83, %s86
    %p95 = scmp.eq.s32.totalorder %s26, 1
    %p96 = por %p94, %p95
    %p97 = scmp.ne.s32.totalorder %s86, %s87
    %p98 = scmp.eq.s32.totalorder %s26, 0
    %p99 = por %p97, %p98
    %p100 = scmp.ne.s32.totalorder %s86, %s87
    %p101 = scmp.eq.s32.totalorder %s27, 1
    %p102 = por %p100, %p101
    %p104 = scmp.ne.s32.totalorder %s87, %s103
    %p105 = scmp.eq.s32.totalorder %s27, 0
    %p106 = por %p104, %p105
    %s107 = ssub.s32 %s21, %s28
    %p108 = scmp.eq.s32.totalorder %s107, 0
    %s110 = sadd.s32 %s109, 1
    %s111 = scalar_select %p108, %s109, %s110
    %p114 = pneg %p108
    %p115 = scmp.eq.s32.totalorder %s21, 1
    %p116 = por %p114, %p115
    %p117 = scmp.ne.s32.totalorder %s109, %s112
    %p118 = scmp.eq.s32.totalorder %s21, 0
    %p119 = por %p117, %p118
    %p120 = scmp.ne.s32.totalorder %s109, %s112
    %p121 = scmp.eq.s32.totalorder %s26, 1
    %p122 = por %p120, %p121
    %p123 = scmp.ne.s32.totalorder %s112, %s113
    %p124 = scmp.eq.s32.totalorder %s26, 0
    %p125 = por %p123, %p124
    %p126 = scmp.ne.s32.totalorder %s112, %s113
    %p127 = scmp.eq.s32.totalorder %s27, 1
    %p128 = por %p126, %p127
    %p130 = scmp.ne.s32.totalorder %s113, %s129
    %p131 = scmp.eq.s32.totalorder %s27, 0
    %p132 = por %p130, %p131
    %s133 = ssub.s32 %s21, %s28
    %p134 = scmp.eq.s32.totalorder %s133, 0
    %s136 = sadd.s32 %s135, 1
    %s137 = scalar_select %p134, %s135, %s136
    %p140 = pneg %p134
    %p141 = scmp.eq.s32.totalorder %s21, 1
    %p142 = por %p140, %p141
    %p143 = scmp.ne.s32.totalorder %s135, %s138
    %p144 = scmp.eq.s32.totalorder %s21, 0
    %p145 = por %p143, %p144
    %p146 = scmp.ne.s32.totalorder %s135, %s138
    %p147 = scmp.eq.s32.totalorder %s26, 1
    %p148 = por %p146, %p147
    %p149 = scmp.ne.s32.totalorder %s138, %s139
    %p150 = scmp.eq.s32.totalorder %s26, 0
    %p151 = por %p149, %p150
    %p152 = scmp.ne.s32.totalorder %s138, %s139
    %p153 = scmp.eq.s32.totalorder %s27, 1
    %p154 = por %p152, %p153
    %p156 = scmp.ne.s32.totalorder %s139, %s155
    %p157 = scmp.eq.s32.totalorder %s27, 0
    %p158 = por %p156, %p157
    %s159 = ssub.s32 %s21, %s28
    %p160 = scmp.eq.s32.totalorder %s159, 0
    %s162 = sadd.s32 %s161, 1
    %s163 = scalar_select %p160, %s161, %s162
    %p166 = pneg %p160
    %p167 = scmp.eq.s32.totalorder %s21, 1
    %p168 = por %p166, %p167
    %p169 = scmp.ne.s32.totalorder %s161, %s164
    %p170 = scmp.eq.s32.totalorder %s21, 0
    %p171 = por %p169, %p170
    %p172 = scmp.ne.s32.totalorder %s161, %s164
    %p173 = scmp.eq.s32.totalorder %s26, 1
    %p174 = por %p172, %p173
    %p175 = scmp.ne.s32.totalorder %s164, %s165
    %p176 = scmp.eq.s32.totalorder %s26, 0
    %p177 = por %p175, %p176
    %p178 = scmp.ne.s32.totalorder %s164, %s165
    %p179 = scmp.eq.s32.totalorder %s27, 1
    %p180 = por %p178, %p179
    %p182 = scmp.ne.s32.totalorder %s165, %s181
    %p183 = scmp.eq.s32.totalorder %s27, 0
    %p184 = por %p182, %p183
    %s185 = ssub.s32 %s21, %s28
    %p186 = scmp.eq.s32.totalorder %s185, 0
    %s188 = sadd.s32 %s187, 1
    %s189 = scalar_select %p186, %s187, %s188
    %p192 = pneg %p186
    %p193 = scmp.eq.s32.totalorder %s21, 1
    %p194 = por %p192, %p193
    %p195 = scmp.ne.s32.totalorder %s187, %s190
    %p196 = scmp.eq.s32.totalorder %s21, 0
    %p197 = por %p195, %p196
    %p198 = scmp.ne.s32.totalorder %s187, %s190
    %p199 = scmp.eq.s32.totalorder %s26, 1
    %p200 = por %p198, %p199
    %p201 = scmp.ne.s32.totalorder %s190, %s191
    %p202 = scmp.eq.s32.totalorder %s26, 0
    %p203 = por %p201, %p202
    %p204 = scmp.ne.s32.totalorder %s190, %s191
    %p205 = scmp.eq.s32.totalorder %s27, 1
    %p206 = por %p204, %p205
    %p208 = scmp.ne.s32.totalorder %s191, %s207
    %p209 = scmp.eq.s32.totalorder %s27, 0
    %p210 = por %p208, %p209
    %s211 = ssub.s32 %s21, %s28
    %p212 = scmp.eq.s32.totalorder %s211, 0
    %s214 = sadd.s32 %s213, 1
    %s215 = scalar_select %p212, %s213, %s214
    %p218 = pneg %p212
    %p219 = scmp.eq.s32.totalorder %s21, 1
    %p220 = por %p218, %p219
    %p221 = scmp.ne.s32.totalorder %s213, %s216
    %p222 = scmp.eq.s32.totalorder %s21, 0
    %p223 = por %p221, %p222
    %p224 = scmp.ne.s32.totalorder %s213, %s216
    %p225 = scmp.eq.s32.totalorder %s26, 1
    %p226 = por %p224, %p225
    %p227 = scmp.ne.s32.totalorder %s216, %s217
    %p228 = scmp.eq.s32.totalorder %s26, 0
    %p229 = por %p227, %p228
    %p230 = scmp.ne.s32.totalorder %s216, %s217
    %p231 = scmp.eq.s32.totalorder %s27, 1
    %p232 = por %p230, %p231
    %p234 = scmp.ne.s32.totalorder %s217, %s233
    %p235 = scmp.eq.s32.totalorder %s27, 0
    %p236 = por %p234, %p235
    %s237 = ssub.s32 %s21, %s28
    %p238 = scmp.eq.s32.totalorder %s237, 0
    %s240 = sadd.s32 %s239, 1
    %s241 = scalar_select %p238, %s239, %s240
    %p244 = pneg %p238
    %p245 = scmp.eq.s32.totalorder %s21, 1
    %p246 = por %p244, %p245
    %p247 = scmp.ne.s32.totalorder %s239, %s242
    %p248 = scmp.eq.s32.totalorder %s21, 0
    %p249 = por %p247, %p248
    %p250 = scmp.ne.s32.totalorder %s239, %s242
    %p251 = scmp.eq.s32.totalorder %s26, 1
    %p252 = por %p250, %p251
    %p253 = scmp.ne.s32.totalorder %s242, %s243
    %p254 = scmp.eq.s32.totalorder %s26, 0
    %p255 = por %p253, %p254
    %p256 = scmp.ne.s32.totalorder %s242, %s243
    %p257 = scmp.eq.s32.totalorder %s27, 1
    %p258 = por %p256, %p257
    %p260 = scmp.ne.s32.totalorder %s243, %s259
    %p261 = scmp.eq.s32.totalorder %s27, 0
    %p262 = por %p260, %p261
    %s264 = sadd.s32 %s263, 1
    %p267 = scmp.eq.s32.totalorder %s21, 1
    %p268 = scmp.ne.s32.totalorder %s263, %s265
    %p269 = scmp.eq.s32.totalorder %s21, 0
    %p270 = por %p268, %p269
    %p271 = scmp.ne.s32.totalorder %s263, %s265
    %p272 = scmp.eq.s32.totalorder %s26, 1
    %p273 = por %p271, %p272
    %p274 = scmp.ne.s32.totalorder %s265, %s266
    %p275 = scmp.eq.s32.totalorder %s26, 0
    %p276 = por %p274, %p275
    %p277 = scmp.ne.s32.totalorder %s265, %s266
    %p278 = scmp.eq.s32.totalorder %s27, 1
    %p279 = por %p277, %p278
    %p281 = scmp.ne.s32.totalorder %s266, %s280
    %p282 = scmp.eq.s32.totalorder %s27, 0
    %p283 = por %p281, %p282
    %s285 = sadd.s32 %s284, 1
    %p288 = scmp.eq.s32.totalorder %s21, 1
    %p289 = scmp.ne.s32.totalorder %s284, %s286
    %p290 = scmp.eq.s32.totalorder %s21, 0
    %p291 = por %p289, %p290
    %p292 = scmp.ne.s32.totalorder %s284, %s286
    %p293 = scmp.eq.s32.totalorder %s26, 1
    %p294 = por %p292, %p293
    %p295 = scmp.ne.s32.totalorder %s286, %s287
    %p296 = scmp.eq.s32.totalorder %s26, 0
    %p297 = por %p295, %p296
    %p298 = scmp.ne.s32.totalorder %s286, %s287
    %p299 = scmp.eq.s32.totalorder %s27, 1
    %p300 = por %p298, %p299
    %p302 = scmp.ne.s32.totalorder %s287, %s301
    %p303 = scmp.eq.s32.totalorder %s27, 0
    %p304 = por %p302, %p303
    %s305 = ssub.s32 %s21, %s28
    %p306 = scmp.eq.s32.totalorder %s305, 0
    %s308 = sadd.s32 %s307, 1
    %s309 = scalar_select %p306, %s307, %s308
    %p312 = pneg %p306
    %p313 = scmp.eq.s32.totalorder %s21, 1
    %p314 = por %p312, %p313
    %p315 = scmp.ne.s32.totalorder %s307, %s310
    %p316 = scmp.eq.s32.totalorder %s21, 0
    %p317 = por %p315, %p316
    %p318 = scmp.ne.s32.totalorder %s307, %s310
    %p319 = scmp.eq.s32.totalorder %s26, 1
    %p320 = por %p318, %p319
    %p321 = scmp.ne.s32.totalorder %s310, %s311
    %p322 = scmp.eq.s32.totalorder %s26, 0
    %p323 = por %p321, %p322
    %p324 = scmp.ne.s32.totalorder %s310, %s311
    %p325 = scmp.eq.s32.totalorder %s27, 1
    %p326 = por %p324, %p325
    %p328 = scmp.ne.s32.totalorder %s311, %s327
    %p329 = scmp.eq.s32.totalorder %s27, 0
    %p330 = por %p328, %p329
    %s331 = ssub.s32 %s21, %s28
    %p332 = scmp.eq.s32.totalorder %s331, 0
    %s334 = sadd.s32 %s333, 1
    %s335 = scalar_select %p332, %s333, %s334
    %p338 = pneg %p332
    %p339 = scmp.eq.s32.totalorder %s21, 1
    %p340 = por %p338, %p339
    %p341 = scmp.ne.s32.totalorder %s333, %s336
    %p342 = scmp.eq.s32.totalorder %s21, 0
    %p343 = por %p341, %p342
    %p344 = scmp.ne.s32.totalorder %s333, %s336
    %p345 = scmp.eq.s32.totalorder %s26, 1
    %p346 = por %p344, %p345
    %p347 = scmp.ne.s32.totalorder %s336, %s337
    %p348 = scmp.eq.s32.totalorder %s26, 0
    %p349 = por %p347, %p348
    %p350 = scmp.ne.s32.totalorder %s336, %s337
    %p351 = scmp.eq.s32.totalorder %s27, 1
    %p352 = por %p350, %p351
    %p354 = scmp.ne.s32.totalorder %s337, %s353
    %p355 = scmp.eq.s32.totalorder %s27, 0
    %p356 = por %p354, %p355
    %s357 = ssub.s32 %s21, %s28
    %p358 = scmp.eq.s32.totalorder %s357, 0
    %s360 = sadd.s32 %s359, 1
    %s361 = scalar_select %p358, %s359, %s360
    %p364 = pneg %p358
    %p365 = scmp.eq.s32.totalorder %s21, 1
    %p366 = por %p364, %p365
    %p367 = scmp.ne.s32.totalorder %s359, %s362
    %p368 = scmp.eq.s32.totalorder %s21, 0
    %p369 = por %p367, %p368
    %p370 = scmp.ne.s32.totalorder %s359, %s362
    %p371 = scmp.eq.s32.totalorder %s26, 1
    %p372 = por %p370, %p371
    %p373 = scmp.ne.s32.totalorder %s362, %s363
    %p374 = scmp.eq.s32.totalorder %s26, 0
    %p375 = por %p373, %p374
    %p376 = scmp.ne.s32.totalorder %s362, %s363
    %p377 = scmp.eq.s32.totalorder %s27, 1
    %p378 = por %p376, %p377
    %p380 = scmp.ne.s32.totalorder %s363, %s379
    %p381 = scmp.eq.s32.totalorder %s27, 0
    %p382 = por %p380, %p381
    %s383 = ssub.s32 %s21, %s28
    %p384 = scmp.eq.s32.totalorder %s383, 0
    %s386 = sadd.s32 %s385, 1
    %s387 = scalar_select %p384, %s385, %s386
    %p390 = pneg %p384
    %p391 = scmp.eq.s32.totalorder %s21, 1
    %p392 = por %p390, %p391
    %p393 = scmp.ne.s32.totalorder %s385, %s388
    %p394 = scmp.eq.s32.totalorder %s21, 0
    %p395 = por %p393, %p394
    %p396 = scmp.ne.s32.totalorder %s385, %s388
    %p397 = scmp.eq.s32.totalorder %s26, 1
    %p398 = por %p396, %p397
    %p399 = scmp.ne.s32.totalorder %s388, %s389
    %p400 = scmp.eq.s32.totalorder %s26, 0
    %p401 = por %p399, %p400
    %p402 = scmp.ne.s32.totalorder %s388, %s389
    %p403 = scmp.eq.s32.totalorder %s27, 1
    %p404 = por %p402, %p403
    %p406 = scmp.ne.s32.totalorder %s389, %s405
    %p407 = scmp.eq.s32.totalorder %s27, 0
    %p408 = por %p406, %p407
    %p409 = scmp.le.s32.totalorder 1, %s21
    %p410 = scmp.lt.s32.totalorder %s21, 3
    %p411 = pnand %p409, %p410
    %p412 = pneg %p411
    // Predicated region
    $region9: #{_basic_block_fwd.3} parent=5 // pred_check
      _
    $region10: #{_basic_block_fwd.3} parent=5 // pred_check_branch
      %414 = sbr.rel (%p411) target = $region12
    $region11: #{_basic_block_fwd.3} parent=5 // pred_region
      %s415 = ssub.s32 %s21, 1
      // Predicated region
      $region13: #{_basic_block_fwd.3} parent=11 // pred_check
        %p416 = pneg %p276
      $region14: #{_basic_block_fwd.3} parent=11 // pred_check_branch
        %418 = sbr.rel (%p416) target = $region16
      $region15: #{_basic_block_fwd.3} parent=11 // pred_region
        _
      $region16: #{_basic_block_fwd.3} parent=11 // pred_fallthru
        _
      // Predicated region
      $region17: #{_basic_block_fwd.3} parent=11 // pred_check
        %p419 = pneg %p297
      $region18: #{_basic_block_fwd.3} parent=11 // pred_check_branch
        %421 = sbr.rel (%p419) target = $region20
      $region19: #{_basic_block_fwd.3} parent=11 // pred_region
        _
      $region20: #{_basic_block_fwd.3} parent=11 // pred_fallthru
        _
    $region12: #{_basic_block_fwd.3} parent=5 // pred_fallthru
      _
    %p422 = scmp.lt.s32.totalorder %s21, 2
    // Predicated region
    $region21: #{_basic_block_fwd.3} parent=5 // pred_check
      %p423 = pneg %p422
    $region22: #{_basic_block_fwd.3} parent=5 // pred_check_branch
      %425 = sbr.rel (%p423) target = $region24
    $region23: #{_basic_block_fwd.3} parent=5 // pred_region
      // Predicated region
      $region25: #{_basic_block_fwd.3} parent=23 // pred_check
        %p426 = pneg %p41
      $region26: #{_basic_block_fwd.3} parent=23 // pred_check_branch
        %428 = sbr.rel (%p426) target = $region28
      $region27: #{_basic_block_fwd.3} parent=23 // pred_region
        %p429 = scmp.lt.s32.totalorder %s21, 1
        %s430 = scalar_select %p429, %s21, 1
        %s431 = smul.addr %s430, 8
        %s432 = smul.addr %s431, 4
        %s433 = scalar_lea.vmem %s0, %s432
      $region28: #{_basic_block_fwd.3} parent=23 // pred_fallthru
        _
      // Predicated region
      $region29: #{_basic_block_fwd.3} parent=23 // pred_check
        %p434 = pneg %p67
      $region30: #{_basic_block_fwd.3} parent=23 // pred_check_branch
        %436 = sbr.rel (%p434) target = $region32
      $region31: #{_basic_block_fwd.3} parent=23 // pred_region
        %p437 = scmp.lt.s32.totalorder %s21, 1
        %s438 = scalar_select %p437, %s21, 1
        %s439 = smul.addr %s438, 8
        %s440 = smul.addr %s439, 4
        %s441 = scalar_lea.vmem %s1, %s440
      $region32: #{_basic_block_fwd.3} parent=23 // pred_fallthru
        _
      // Predicated region
      $region33: #{_basic_block_fwd.3} parent=23 // pred_check
        %p442 = pneg %p93
      $region34: #{_basic_block_fwd.3} parent=23 // pred_check_branch
        %444 = sbr.rel (%p442) target = $region36
      $region35: #{_basic_block_fwd.3} parent=23 // pred_region
        %p445 = scmp.lt.s32.totalorder %s21, 1
        %s446 = scalar_select %p445, %s21, 1
        %s447 = smul.addr %s446, 8
        %s448 = smul.addr %s447, 4
        %s449 = scalar_lea.vmem %s2, %s448
      $region36: #{_basic_block_fwd.3} parent=23 // pred_fallthru
        _
      // Predicated region
      $region37: #{_basic_block_fwd.3} parent=23 // pred_check
        %p450 = pneg %p119
      $region38: #{_basic_block_fwd.3} parent=23 // pred_check_branch
        %452 = sbr.rel (%p450) target = $region40
      $region39: #{_basic_block_fwd.3} parent=23 // pred_region
        %p453 = scmp.lt.s32.totalorder %s21, 1
        %s454 = scalar_select %p453, %s21, 1
        %s455 = smul.addr %s454, 8
        %s456 = smul.addr %s455, 4
        %s457 = scalar_lea.vmem %s3, %s456
      $region40: #{_basic_block_fwd.3} parent=23 // pred_fallthru
        _
      // Predicated region
      $region41: #{_basic_block_fwd.3} parent=23 // pred_check
        %p458 = pneg %p145
      $region42: #{_basic_block_fwd.3} parent=23 // pred_check_branch
        %460 = sbr.rel (%p458) target = $region44
      $region43: #{_basic_block_fwd.3} parent=23 // pred_region
        %p461 = scmp.lt.s32.totalorder %s21, 1
        %s462 = scalar_select %p461, %s21, 1
        %s463 = smul.addr %s462, 8
        %s464 = smul.addr %s463, 4
        %s465 = scalar_lea.vmem %s4, %s464
      $region44: #{_basic_block_fwd.3} parent=23 // pred_fallthru
        _
      // Predicated region
      $region45: #{_basic_block_fwd.3} parent=23 // pred_check
        %p466 = pneg %p171
      $region46: #{_basic_block_fwd.3} parent=23 // pred_check_branch
        %468 = sbr.rel (%p466) target = $region48
      $region47: #{_basic_block_fwd.3} parent=23 // pred_region
        %p469 = scmp.lt.s32.totalorder %s21, 1
        %s470 = scalar_select %p469, %s21, 1
        %s471 = smul.addr %s470, 8
        %s472 = smul.addr %s471, 4
        %s473 = scalar_lea.vmem %s5, %s472
      $region48: #{_basic_block_fwd.3} parent=23 // pred_fallthru
        _
      // Predicated region
      $region49: #{_basic_block_fwd.3} parent=23 // pred_check
        %p474 = pneg %p197
      $region50: #{_basic_block_fwd.3} parent=23 // pred_check_branch
        %476 = sbr.rel (%p474) target = $region52
      $region51: #{_basic_block_fwd.3} parent=23 // pred_region
        %p477 = scmp.lt.s32.totalorder %s21, 1
        %s478 = scalar_select %p477, %s21, 1
        %s479 = smul.addr %s478, 8
        %s480 = smul.addr %s479, 4
        %s481 = scalar_lea.vmem %s6, %s480
      $region52: #{_basic_block_fwd.3} parent=23 // pred_fallthru
        _
      // Predicated region
      $region53: #{_basic_block_fwd.3} parent=23 // pred_check
        %p482 = pneg %p223
      $region54: #{_basic_block_fwd.3} parent=23 // pred_check_branch
        %484 = sbr.rel (%p482) target = $region56
      $region55: #{_basic_block_fwd.3} parent=23 // pred_region
        %p485 = scmp.lt.s32.totalorder %s21, 1
        %s486 = scalar_select %p485, %s21, 1
        %s487 = smul.addr %s486, 8
        %s488 = smul.addr %s487, 4
        %s489 = scalar_lea.vmem %s7, %s488
      $region56: #{_basic_block_fwd.3} parent=23 // pred_fallthru
        _
      // Predicated region
      $region57: #{_basic_block_fwd.3} parent=23 // pred_check
        %p490 = pneg %p249
      $region58: #{_basic_block_fwd.3} parent=23 // pred_check_branch
        %492 = sbr.rel (%p490) target = $region60
      $region59: #{_basic_block_fwd.3} parent=23 // pred_region
        %p493 = scmp.lt.s32.totalorder %s21, 1
        %s494 = scalar_select %p493, %s21, 1
        %s495 = smul.addr %s494, 8
        %s496 = smul.addr %s495, 4
        %s497 = scalar_lea.vmem %s8, %s496
      $region60: #{_basic_block_fwd.3} parent=23 // pred_fallthru
        _
    $region24: #{_basic_block_fwd.3} parent=5 // pred_fallthru
      _
    %p498 = scmp.le.s32.totalorder 1, %s21
    %p499 = scmp.lt.s32.totalorder %s21, 3
    %p500 = pnand %p498, %p499
    %p501 = pneg %p500
    // Predicated region
    $region61: #{_basic_block_fwd.3} parent=5 // pred_check
      _
    $region62: #{_basic_block_fwd.3} parent=5 // pred_check_branch
      %503 = sbr.rel (%p500) target = $region64
    $region63: #{_basic_block_fwd.3} parent=5 // pred_region
      %s504 = ssub.s32 %s21, 1
      %p505 = scmp.lt.s32.totalorder %s26, 1
      %s506 = scalar_select %p505, %s26, 1
      %s507 = smul.addr %s506, 8
      %s508 = smul.addr %s507, 4
      %s509 = scalar_lea.vmem %s0, %s508
      %p510 = pneg %p47
      %p511 = pneg %p44
      %p512 = scmp.lt.s32.totalorder %s26, 1
      %s513 = scalar_select %p512, %s26, 1
      %s514 = smul.addr %s513, 8
      %s515 = smul.addr %s514, 4
      %s516 = scalar_lea.vmem %s1, %s515
      %p517 = pneg %p73
      %p518 = pneg %p70
      %p519 = scmp.lt.s32.totalorder %s26, 1
      %s520 = scalar_select %p519, %s26, 1
      %s521 = smul.addr %s520, 8
      %s522 = smul.addr %s521, 4
      %s523 = scalar_lea.vmem %s2, %s522
      %p524 = pneg %p99
      %p525 = pneg %p96
      %p526 = scmp.lt.s32.totalorder %s26, 1
      %s527 = scalar_select %p526, %s26, 1
      %s528 = smul.addr %s527, 8
      %s529 = smul.addr %s528, 4
      %s530 = scalar_lea.vmem %s3, %s529
      %p531 = pneg %p125
      %p532 = pneg %p122
      %p533 = scmp.lt.s32.totalorder %s26, 1
      %s534 = scalar_select %p533, %s26, 1
      %s535 = smul.addr %s534, 8
      %s536 = smul.addr %s535, 4
      %s537 = scalar_lea.vmem %s4, %s536
      %p538 = pneg %p151
      %p539 = pneg %p148
      %p540 = scmp.lt.s32.totalorder %s26, 1
      %s541 = scalar_select %p540, %s26, 1
      %s542 = smul.addr %s541, 8
      %s543 = smul.addr %s542, 4
      %s544 = scalar_lea.vmem %s5, %s543
      %p545 = pneg %p177
      %p546 = pneg %p174
      %p547 = scmp.lt.s32.totalorder %s26, 1
      %s548 = scalar_select %p547, %s26, 1
      %s549 = smul.addr %s548, 8
      %s550 = smul.addr %s549, 4
      %s551 = scalar_lea.vmem %s6, %s550
      %p552 = pneg %p203
      %p553 = pneg %p200
      %p554 = scmp.lt.s32.totalorder %s26, 1
      %s555 = scalar_select %p554, %s26, 1
      %s556 = smul.addr %s555, 8
      %s557 = smul.addr %s556, 4
      %s558 = scalar_lea.vmem %s7, %s557
      %p559 = pneg %p229
      %p560 = pneg %p226
      %p561 = scmp.lt.s32.totalorder %s26, 1
      %s562 = scalar_select %p561, %s26, 1
      %s563 = smul.addr %s562, 8
      %s564 = smul.addr %s563, 4
      %s565 = scalar_lea.vmem %s8, %s564
      %p566 = pneg %p255
      %p567 = pneg %p252
      %p568 = pneg %p276
      %p569 = pneg %p273
      %p570 = pneg %p297
      %p571 = pneg %p294
      %p572 = pneg %p323
      %p573 = pneg %p320
      %p574 = scmp.lt.s32.totalorder %s26, 1
      %s575 = scalar_select %p574, %s26, 1
      %s576 = smul.addr %s575, 8
      %s577 = smul.addr %s576, 4
      %s578 = scalar_lea.vmem %s11, %s577
      %p579 = pneg %p349
      %p580 = pneg %p346
      %p581 = scmp.lt.s32.totalorder %s26, 1
      %s582 = scalar_select %p581, %s26, 1
      %s583 = smul.addr %s582, 2
      %s584 = scalar_lea.vmem %s12, %s583
      %p585 = pneg %p375
      %p586 = pneg %p372
      %p587 = scmp.lt.s32.totalorder %s26, 1
      %s588 = scalar_select %p587, %s26, 1
      %s589 = smul.addr %s588, 8
      %s590 = smul.addr %s589, 4
      %s591 = scalar_lea.vmem %s13, %s590
      %p592 = pneg %p401
      %p593 = pneg %p398
      %p594 = scmp.lt.s32.totalorder %s26, 1
      %s595 = scalar_select %p594, %s26, 1
      %s596 = smul.addr %s595, 2
      %s597 = scalar_lea.vmem %s14, %s596
      %p598 = scmp.lt.s32.totalorder %s26, 1
      %s599 = scalar_select %p598, %s26, 1
      %s600 = smul.addr %s599, 8
      %s601 = smul.addr %s600, 4
      %s602 = scalar_lea.vmem %s0, %s601
      %p603 = scmp.lt.s32.totalorder %s26, 1
      %s604 = scalar_select %p603, %s26, 1
      %s605 = smul.addr %s604, 8
      %s606 = smul.addr %s605, 4
      %s607 = scalar_lea.vmem %s1, %s606
      %p608 = scmp.lt.s32.totalorder %s26, 1
      %s609 = scalar_select %p608, %s26, 1
      %s610 = smul.addr %s609, 8
      %s611 = smul.addr %s610, 4
      %s612 = scalar_lea.vmem %s2, %s611
      %p613 = scmp.lt.s32.totalorder %s26, 1
      %s614 = scalar_select %p613, %s26, 1
      %s615 = smul.addr %s614, 8
      %s616 = smul.addr %s615, 4
      %s617 = scalar_lea.vmem %s3, %s616
      %p618 = scmp.lt.s32.totalorder %s26, 1
      %s619 = scalar_select %p618, %s26, 1
      %s620 = smul.addr %s619, 8
      %s621 = smul.addr %s620, 4
      %s622 = scalar_lea.vmem %s4, %s621
      %p623 = scmp.lt.s32.totalorder %s26, 1
      %s624 = scalar_select %p623, %s26, 1
      %s625 = smul.addr %s624, 8
      %s626 = smul.addr %s625, 4
      %s627 = scalar_lea.vmem %s5, %s626
      %p628 = scmp.lt.s32.totalorder %s26, 1
      %s629 = scalar_select %p628, %s26, 1
      %s630 = smul.addr %s629, 8
      %s631 = smul.addr %s630, 4
      %s632 = scalar_lea.vmem %s6, %s631
      %p633 = scmp.lt.s32.totalorder %s26, 1
      %s634 = scalar_select %p633, %s26, 1
      %s635 = smul.addr %s634, 8
      %s636 = smul.addr %s635, 4
      %s637 = scalar_lea.vmem %s7, %s636
      %p638 = scmp.lt.s32.totalorder %s26, 1
      %s639 = scalar_select %p638, %s26, 1
      %s640 = smul.addr %s639, 8
      %s641 = smul.addr %s640, 4
      %s642 = scalar_lea.vmem %s8, %s641
      %p643 = scmp.lt.s32.totalorder %s26, 1
      %s644 = scalar_select %p643, %s26, 1
      %s645 = smul.addr %s644, 8
      %s646 = smul.addr %s645, 4
      %s647 = scalar_lea.vmem %s11, %s646
      %p648 = scmp.lt.s32.totalorder %s26, 1
      %s649 = scalar_select %p648, %s26, 1
      %s650 = smul.addr %s649, 2
      %s651 = scalar_lea.vmem %s12, %s650
      %p652 = scmp.lt.s32.totalorder %s26, 1
      %s653 = scalar_select %p652, %s26, 1
      %s654 = smul.addr %s653, 8
      %s655 = smul.addr %s654, 4
      %s656 = scalar_lea.vmem %s13, %s655
      %p657 = scmp.lt.s32.totalorder %s26, 1
      %s658 = scalar_select %p657, %s26, 1
      %s659 = smul.addr %s658, 2
      %s660 = scalar_lea.vmem %s14, %s659
      %v662 = vld [vmem:[%s602] sm:$0xf]
      %v663 = vld [vmem:[%s602 + $0x4] sm:$0xf]
      %v664 = vld [vmem:[%s602 + $0x8] sm:$0xf]
      %v665 = vld [vmem:[%s602 + $0xc] sm:$0xf]
      %v666 = vld [vmem:[%s602 + $0x10] sm:$0xf]
      %v667 = vld [vmem:[%s602 + $0x14] sm:$0xf]
      %v668 = vld [vmem:[%s602 + $0x18] sm:$0xf]
      %v669 = vld [vmem:[%s602 + $0x1c] sm:$0xf]
      %670 = vst [vmem:[#allocation2] sm:$0xf] %v662
      %671 = vst [vmem:[#allocation2 + $0x24] sm:$0xf] %v663
      %672 = vst [vmem:[#allocation2 + $0x48] sm:$0xf] %v664
      %673 = vst [vmem:[#allocation2 + $0x6c] sm:$0xf] %v665
      %674 = vst [vmem:[#allocation2 + $0x90] sm:$0xf] %v666
      %675 = vst [vmem:[#allocation2 + $0xb4] sm:$0xf] %v667
      %676 = vst [vmem:[#allocation2 + $0xd8] sm:$0xf] %v668
      %677 = vst [vmem:[#allocation2 + $0xfc] sm:$0xf] %v669
      %v678 = vld [vmem:[%s607] sm:$0xf]
      %v679 = vld [vmem:[%s607 + $0x4] sm:$0xf]
      %v680 = vld [vmem:[%s607 + $0x8] sm:$0xf]
      %v681 = vld [vmem:[%s607 + $0xc] sm:$0xf]
      %v682 = vld [vmem:[%s607 + $0x10] sm:$0xf]
      %v683 = vld [vmem:[%s607 + $0x14] sm:$0xf]
      %v684 = vld [vmem:[%s607 + $0x18] sm:$0xf]
      %v685 = vld [vmem:[%s607 + $0x1c] sm:$0xf]
      %686 = vst [vmem:[#allocation2 + $0x4] sm:$0xf] %v678
      %687 = vst [vmem:[#allocation2 + $0x28] sm:$0xf] %v679
      %688 = vst [vmem:[#allocation2 + $0x4c] sm:$0xf] %v680
      %689 = vst [vmem:[#allocation2 + $0x70] sm:$0xf] %v681
      %690 = vst [vmem:[#allocation2 + $0x94] sm:$0xf] %v682
      %691 = vst [vmem:[#allocation2 + $0xb8] sm:$0xf] %v683
      %692 = vst [vmem:[#allocation2 + $0xdc] sm:$0xf] %v684
      %693 = vst [vmem:[#allocation2 + $0x100] sm:$0xf] %v685
      %v694 = vld [vmem:[%s612] sm:$0xf]
      %v695 = vld [vmem:[%s612 + $0x4] sm:$0xf]
      %v696 = vld [vmem:[%s612 + $0x8] sm:$0xf]
      %v697 = vld [vmem:[%s612 + $0xc] sm:$0xf]
      %v698 = vld [vmem:[%s612 + $0x10] sm:$0xf]
      %v699 = vld [vmem:[%s612 + $0x14] sm:$0xf]
      %v700 = vld [vmem:[%s612 + $0x18] sm:$0xf]
      %v701 = vld [vmem:[%s612 + $0x1c] sm:$0xf]
      %702 = vst [vmem:[#allocation2 + $0x8] sm:$0xf] %v694
      %703 = vst [vmem:[#allocation2 + $0x2c] sm:$0xf] %v695
      %704 = vst [vmem:[#allocation2 + $0x50] sm:$0xf] %v696
      %705 = vst [vmem:[#allocation2 + $0x74] sm:$0xf] %v697
      %706 = vst [vmem:[#allocation2 + $0x98] sm:$0xf] %v698
      %707 = vst [vmem:[#allocation2 + $0xbc] sm:$0xf] %v699
      %708 = vst [vmem:[#allocation2 + $0xe0] sm:$0xf] %v700
      %709 = vst [vmem:[#allocation2 + $0x104] sm:$0xf] %v701
      %v710 = vld [vmem:[%s617] sm:$0xf]
      %v711 = vld [vmem:[%s617 + $0x4] sm:$0xf]
      %v712 = vld [vmem:[%s617 + $0x8] sm:$0xf]
      %v713 = vld [vmem:[%s617 + $0xc] sm:$0xf]
      %v714 = vld [vmem:[%s617 + $0x10] sm:$0xf]
      %v715 = vld [vmem:[%s617 + $0x14] sm:$0xf]
      %v716 = vld [vmem:[%s617 + $0x18] sm:$0xf]
      %v717 = vld [vmem:[%s617 + $0x1c] sm:$0xf]
      %718 = vst [vmem:[#allocation2 + $0xc] sm:$0xf] %v710
      %719 = vst [vmem:[#allocation2 + $0x30] sm:$0xf] %v711
      %720 = vst [vmem:[#allocation2 + $0x54] sm:$0xf] %v712
      %721 = vst [vmem:[#allocation2 + $0x78] sm:$0xf] %v713
      %722 = vst [vmem:[#allocation2 + $0x9c] sm:$0xf] %v714
      %723 = vst [vmem:[#allocation2 + $0xc0] sm:$0xf] %v715
      %724 = vst [vmem:[#allocation2 + $0xe4] sm:$0xf] %v716
      %725 = vst [vmem:[#allocation2 + $0x108] sm:$0xf] %v717
      %v726 = vld [vmem:[%s622] sm:$0xf]
      %v727 = vld [vmem:[%s622 + $0x4] sm:$0xf]
      %v728 = vld [vmem:[%s622 + $0x8] sm:$0xf]
      %v729 = vld [vmem:[%s622 + $0xc] sm:$0xf]
      %v730 = vld [vmem:[%s622 + $0x10] sm:$0xf]
      %v731 = vld [vmem:[%s622 + $0x14] sm:$0xf]
      %v732 = vld [vmem:[%s622 + $0x18] sm:$0xf]
      %v733 = vld [vmem:[%s622 + $0x1c] sm:$0xf]
      %734 = vst [vmem:[#allocation2 + $0x10] sm:$0xf] %v726
      %735 = vst [vmem:[#allocation2 + $0x34] sm:$0xf] %v727
      %736 = vst [vmem:[#allocation2 + $0x58] sm:$0xf] %v728
      %737 = vst [vmem:[#allocation2 + $0x7c] sm:$0xf] %v729
      %738 = vst [vmem:[#allocation2 + $0xa0] sm:$0xf] %v730
      %739 = vst [vmem:[#allocation2 + $0xc4] sm:$0xf] %v731
      %740 = vst [vmem:[#allocation2 + $0xe8] sm:$0xf] %v732
      %741 = vst [vmem:[#allocation2 + $0x10c] sm:$0xf] %v733
      %v742 = vld [vmem:[%s627] sm:$0xf]
      %v743 = vld [vmem:[%s627 + $0x4] sm:$0xf]
      %v744 = vld [vmem:[%s627 + $0x8] sm:$0xf]
      %v745 = vld [vmem:[%s627 + $0xc] sm:$0xf]
      %v746 = vld [vmem:[%s627 + $0x10] sm:$0xf]
      %v747 = vld [vmem:[%s627 + $0x14] sm:$0xf]
      %v748 = vld [vmem:[%s627 + $0x18] sm:$0xf]
      %v749 = vld [vmem:[%s627 + $0x1c] sm:$0xf]
      %750 = vst [vmem:[#allocation2 + $0x14] sm:$0xf] %v742
      %751 = vst [vmem:[#allocation2 + $0x38] sm:$0xf] %v743
      %752 = vst [vmem:[#allocation2 + $0x5c] sm:$0xf] %v744
      %753 = vst [vmem:[#allocation2 + $0x80] sm:$0xf] %v745
      %754 = vst [vmem:[#allocation2 + $0xa4] sm:$0xf] %v746
      %755 = vst [vmem:[#allocation2 + $0xc8] sm:$0xf] %v747
      %756 = vst [vmem:[#allocation2 + $0xec] sm:$0xf] %v748
      %757 = vst [vmem:[#allocation2 + $0x110] sm:$0xf] %v749
      %v758 = vld [vmem:[%s632] sm:$0xf]
      %v759 = vld [vmem:[%s632 + $0x4] sm:$0xf]
      %v760 = vld [vmem:[%s632 + $0x8] sm:$0xf]
      %v761 = vld [vmem:[%s632 + $0xc] sm:$0xf]
      %v762 = vld [vmem:[%s632 + $0x10] sm:$0xf]
      %v763 = vld [vmem:[%s632 + $0x14] sm:$0xf]
      %v764 = vld [vmem:[%s632 + $0x18] sm:$0xf]
      %v765 = vld [vmem:[%s632 + $0x1c] sm:$0xf]
      %766 = vst [vmem:[#allocation2 + $0x18] sm:$0xf] %v758
      %767 = vst [vmem:[#allocation2 + $0x3c] sm:$0xf] %v759
      %768 = vst [vmem:[#allocation2 + $0x60] sm:$0xf] %v760
      %769 = vst [vmem:[#allocation2 + $0x84] sm:$0xf] %v761
      %770 = vst [vmem:[#allocation2 + $0xa8] sm:$0xf] %v762
      %771 = vst [vmem:[#allocation2 + $0xcc] sm:$0xf] %v763
      %772 = vst [vmem:[#allocation2 + $0xf0] sm:$0xf] %v764
      %773 = vst [vmem:[#allocation2 + $0x114] sm:$0xf] %v765
      %v774 = vld [vmem:[%s637] sm:$0xf]
      %v775 = vld [vmem:[%s637 + $0x4] sm:$0xf]
      %v776 = vld [vmem:[%s637 + $0x8] sm:$0xf]
      %v777 = vld [vmem:[%s637 + $0xc] sm:$0xf]
      %v778 = vld [vmem:[%s637 + $0x10] sm:$0xf]
      %v779 = vld [vmem:[%s637 + $0x14] sm:$0xf]
      %v780 = vld [vmem:[%s637 + $0x18] sm:$0xf]
      %v781 = vld [vmem:[%s637 + $0x1c] sm:$0xf]
      %782 = vst [vmem:[#allocation2 + $0x1c] sm:$0xf] %v774
      %783 = vst [vmem:[#allocation2 + $0x40] sm:$0xf] %v775
      %784 = vst [vmem:[#allocation2 + $0x64] sm:$0xf] %v776
      %785 = vst [vmem:[#allocation2 + $0x88] sm:$0xf] %v777
      %786 = vst [vmem:[#allocation2 + $0xac] sm:$0xf] %v778
      %787 = vst [vmem:[#allocation2 + $0xd0] sm:$0xf] %v779
      %788 = vst [vmem:[#allocation2 + $0xf4] sm:$0xf] %v780
      %789 = vst [vmem:[#allocation2 + $0x118] sm:$0xf] %v781
      %v790 = vld [vmem:[%s642] sm:$0xf]
      %v791 = vld [vmem:[%s642 + $0x4] sm:$0xf]
      %v792 = vld [vmem:[%s642 + $0x8] sm:$0xf]
      %v793 = vld [vmem:[%s642 + $0xc] sm:$0xf]
      %v794 = vld [vmem:[%s642 + $0x10] sm:$0xf]
      %v795 = vld [vmem:[%s642 + $0x14] sm:$0xf]
      %v796 = vld [vmem:[%s642 + $0x18] sm:$0xf]
      %v797 = vld [vmem:[%s642 + $0x1c] sm:$0xf]
      %798 = vst [vmem:[#allocation2 + $0x20] sm:$0xf] %v790
      %799 = vst [vmem:[#allocation2 + $0x44] sm:$0xf] %v791
      %800 = vst [vmem:[#allocation2 + $0x68] sm:$0xf] %v792
      %801 = vst [vmem:[#allocation2 + $0x8c] sm:$0xf] %v793
      %802 = vst [vmem:[#allocation2 + $0xb0] sm:$0xf] %v794
      %803 = vst [vmem:[#allocation2 + $0xd4] sm:$0xf] %v795
      %804 = vst [vmem:[#allocation2 + $0xf8] sm:$0xf] %v796
      %805 = vst [vmem:[#allocation2 + $0x11c] sm:$0xf] %v797
      %v806 = vld [vmem:[#allocation2] sm:$0xff]
      %v807 = vld [vmem:[#allocation2 + $0x8] sm:$0xff]
      %v808 = vld [vmem:[#allocation2 + $0x10] sm:$0xff]
      %v809 = vld [vmem:[#allocation2 + $0x18] sm:$0xff]
      %v810 = vld [vmem:[#allocation2 + $0x20] sm:$0xf]
      %v811 = vld [vmem:[#allocation2 + $0x24] sm:$0xff]
      %v812 = vld [vmem:[#allocation2 + $0x2c] sm:$0xff]
      %v813 = vld [vmem:[#allocation2 + $0x34] sm:$0xff]
      %v814 = vld [vmem:[#allocation2 + $0x3c] sm:$0xff]
      %v815 = vld [vmem:[#allocation2 + $0x44] sm:$0xf]
      %v816 = vld [vmem:[#allocation2 + $0x48] sm:$0xff]
      %v817 = vld [vmem:[#allocation2 + $0x50] sm:$0xff]
      %v818 = vld [vmem:[#allocation2 + $0x58] sm:$0xff]
      %v819 = vld [vmem:[#allocation2 + $0x60] sm:$0xff]
      %v820 = vld [vmem:[#allocation2 + $0x68] sm:$0xf]
      %v821 = vld [vmem:[#allocation2 + $0x6c] sm:$0xff]
      %v822 = vld [vmem:[#allocation2 + $0x74] sm:$0xff]
      %v823 = vld [vmem:[#allocation2 + $0x7c] sm:$0xff]
      %v824 = vld [vmem:[#allocation2 + $0x84] sm:$0xff]
      %v825 = vld [vmem:[#allocation2 + $0x8c] sm:$0xf]
      %v826 = vld [vmem:[#allocation2 + $0x90] sm:$0xff]
      %v827 = vld [vmem:[#allocation2 + $0x98] sm:$0xff]
      %v828 = vld [vmem:[#allocation2 + $0xa0] sm:$0xff]
      %v829 = vld [vmem:[#allocation2 + $0xa8] sm:$0xff]
      %v830 = vld [vmem:[#allocation2 + $0xb0] sm:$0xf]
      %v831 = vld [vmem:[#allocation2 + $0xb4] sm:$0xff]
      %v832 = vld [vmem:[#allocation2 + $0xbc] sm:$0xff]
      %v833 = vld [vmem:[#allocation2 + $0xc4] sm:$0xff]
      %v834 = vld [vmem:[#allocation2 + $0xcc] sm:$0xff]
      %v835 = vld [vmem:[#allocation2 + $0xd4] sm:$0xf]
      %v836 = vld [vmem:[#allocation2 + $0xd8] sm:$0xff]
      %v837 = vld [vmem:[#allocation2 + $0xe0] sm:$0xff]
      %v838 = vld [vmem:[#allocation2 + $0xe8] sm:$0xff]
      %v839 = vld [vmem:[#allocation2 + $0xf0] sm:$0xff]
      %v840 = vld [vmem:[#allocation2 + $0xf8] sm:$0xf]
      %v841 = vld [vmem:[#allocation2 + $0xfc] sm:$0xff]
      %v842 = vld [vmem:[#allocation2 + $0x104] sm:$0xff]
      %v843 = vld [vmem:[#allocation2 + $0x10c] sm:$0xff]
      %v844 = vld [vmem:[#allocation2 + $0x114] sm:$0xff]
      %v845 = vld [vmem:[#allocation2 + $0x11c] sm:$0xf]
      %v846 = vld [vmem:[%s9] sm:$0xf]
      %v847 = vld [vmem:[%s9 + $0x4] sm:$0xf]
      %v848 = vld [vmem:[%s9 + $0x8] sm:$0xf]
      %v849 = vld [vmem:[%s9 + $0xc] sm:$0xf]
      %v850 = vld [vmem:[%s9 + $0x10] sm:$0xf]
      %v851 = vld [vmem:[%s9 + $0x14] sm:$0xf]
      %v852 = vld [vmem:[%s9 + $0x18] sm:$0xf]
      %v853 = vld [vmem:[%s9 + $0x1c] sm:$0xf]
      %v854 = vld [vmem:[%s9 + $0x20] sm:$0xf]
      %v855 = vld [vmem:[%s9 + $0x24] sm:$0xf]
      %v856 = vld [vmem:[%s9 + $0x28] sm:$0xf]
      %v857 = vld [vmem:[%s9 + $0x2c] sm:$0xf]
      %v858 = vld [vmem:[%s9 + $0x30] sm:$0xf]
      %v859 = vld [vmem:[%s9 + $0x34] sm:$0xf]
      %v860 = vld [vmem:[%s9 + $0x38] sm:$0xf]
      %v861 = vld [vmem:[%s9 + $0x3c] sm:$0xf]
      %v862 = vld [vmem:[%s9 + $0x40] sm:$0xf]
      %v863 = vld [vmem:[%s9 + $0x44] sm:$0xf]
      %v864 = vld [vmem:[%s9 + $0x48] sm:$0xf]
      %v865 = vld [vmem:[%s9 + $0x4c] sm:$0xf]
      %v866 = vld [vmem:[%s9 + $0x50] sm:$0xf]
      %v867 = vld [vmem:[%s9 + $0x54] sm:$0xf]
      %v868 = vld [vmem:[%s9 + $0x58] sm:$0xf]
      %v869 = vld [vmem:[%s9 + $0x5c] sm:$0xf]
      %v870 = vld [vmem:[%s9 + $0x60] sm:$0xf]
      %v871 = vld [vmem:[%s9 + $0x64] sm:$0xf]
      %v872 = vld [vmem:[%s9 + $0x68] sm:$0xf]
      %v873 = vld [vmem:[%s9 + $0x6c] sm:$0xf]
      %v874 = vld [vmem:[%s9 + $0x70] sm:$0xf]
      %v875 = vld [vmem:[%s9 + $0x74] sm:$0xf]
      %v876 = vld [vmem:[%s9 + $0x78] sm:$0xf]
      %v877 = vld [vmem:[%s9 + $0x7c] sm:$0xf]
      %v878 = vld [vmem:[%s9 + $0x80] sm:$0xf]
      %v879 = vld [vmem:[%s9 + $0x84] sm:$0xf]
      %v880 = vld [vmem:[%s9 + $0x88] sm:$0xf]
      %v881 = vld [vmem:[%s9 + $0x8c] sm:$0xf]
      %v882 = vld [vmem:[%s9 + $0x90] sm:$0xf]
      %v883 = vld [vmem:[%s9 + $0x94] sm:$0xf]
      %v884 = vld [vmem:[%s9 + $0x98] sm:$0xf]
      %v885 = vld [vmem:[%s9 + $0x9c] sm:$0xf]
      %v886 = vld [vmem:[%s9 + $0xa0] sm:$0xf]
      %v887 = vld [vmem:[%s9 + $0xa4] sm:$0xf]
      %v888 = vld [vmem:[%s9 + $0xa8] sm:$0xf]
      %v889 = vld [vmem:[%s9 + $0xac] sm:$0xf]
      %v890 = vld [vmem:[%s9 + $0xb0] sm:$0xf]
      %v891 = vld [vmem:[%s9 + $0xb4] sm:$0xf]
      %v892 = vld [vmem:[%s9 + $0xb8] sm:$0xf]
      %v893 = vld [vmem:[%s9 + $0xbc] sm:$0xf]
      %v894 = vld [vmem:[%s9 + $0xc0] sm:$0xf]
      %v895 = vld [vmem:[%s9 + $0xc4] sm:$0xf]
      %v896 = vld [vmem:[%s9 + $0xc8] sm:$0xf]
      %v897 = vld [vmem:[%s9 + $0xcc] sm:$0xf]
      %v898 = vld [vmem:[%s9 + $0xd0] sm:$0xf]
      %v899 = vld [vmem:[%s9 + $0xd4] sm:$0xf]
      %v900 = vld [vmem:[%s9 + $0xd8] sm:$0xf]
      %v901 = vld [vmem:[%s9 + $0xdc] sm:$0xf]
      %v902 = vld [vmem:[%s9 + $0xe0] sm:$0xf]
      %v903 = vld [vmem:[%s9 + $0xe4] sm:$0xf]
      %v904 = vld [vmem:[%s9 + $0xe8] sm:$0xf]
      %v905 = vld [vmem:[%s9 + $0xec] sm:$0xf]
      %v906 = vld [vmem:[%s9 + $0xf0] sm:$0xf]
      %v907 = vld [vmem:[%s9 + $0xf4] sm:$0xf]
      %v908 = vld [vmem:[%s9 + $0xf8] sm:$0xf]
      %v909 = vld [vmem:[%s9 + $0xfc] sm:$0xf]
      %v910 = vld [vmem:[%s9 + $0x100] sm:$0xf]
      %v911 = vld [vmem:[%s9 + $0x104] sm:$0xf]
      %v912 = vld [vmem:[%s9 + $0x108] sm:$0xf]
      %v913 = vld [vmem:[%s9 + $0x10c] sm:$0xf]
      %v914 = vld [vmem:[%s9 + $0x110] sm:$0xf]
      %v915 = vld [vmem:[%s9 + $0x114] sm:$0xf]
      %v916 = vld [vmem:[%s9 + $0x118] sm:$0xf]
      %v917 = vld [vmem:[%s9 + $0x11c] sm:$0xf]
      %v918 = vld [vmem:[%s9 + $0x120] sm:$0xf]
      %v919 = vld [vmem:[%s9 + $0x124] sm:$0xf]
      %v920 = vld [vmem:[%s9 + $0x128] sm:$0xf]
      %v921 = vld [vmem:[%s9 + $0x12c] sm:$0xf]
      %v922 = vld [vmem:[%s9 + $0x130] sm:$0xf]
      %v923 = vld [vmem:[%s9 + $0x134] sm:$0xf]
      %v924 = vld [vmem:[%s9 + $0x138] sm:$0xf]
      %v925 = vld [vmem:[%s9 + $0x13c] sm:$0xf]
      %v926 = vld [vmem:[%s9 + $0x140] sm:$0xf]
      %v927 = vld [vmem:[%s9 + $0x144] sm:$0xf]
      %v928 = vld [vmem:[%s9 + $0x148] sm:$0xf]
      %v929 = vld [vmem:[%s9 + $0x14c] sm:$0xf]
      %v930 = vld [vmem:[%s9 + $0x150] sm:$0xf]
      %v931 = vld [vmem:[%s9 + $0x154] sm:$0xf]
      %v932 = vld [vmem:[%s9 + $0x158] sm:$0xf]
      %v933 = vld [vmem:[%s9 + $0x15c] sm:$0xf]
      %v934 = vld [vmem:[%s9 + $0x160] sm:$0xf]
      %v935 = vld [vmem:[%s9 + $0x164] sm:$0xf]
      %v936 = vld [vmem:[%s9 + $0x168] sm:$0xf]
      %v937 = vld [vmem:[%s9 + $0x16c] sm:$0xf]
      %v938 = vld [vmem:[%s9 + $0x170] sm:$0xf]
      %v939 = vld [vmem:[%s9 + $0x174] sm:$0xf]
      %v940 = vld [vmem:[%s9 + $0x178] sm:$0xf]
      %v941 = vld [vmem:[%s9 + $0x17c] sm:$0xf]
      %v942 = vld [vmem:[%s9 + $0x180] sm:$0xf]
      %v943 = vld [vmem:[%s9 + $0x184] sm:$0xf]
      %v944 = vld [vmem:[%s9 + $0x188] sm:$0xf]
      %v945 = vld [vmem:[%s9 + $0x18c] sm:$0xf]
      %v946 = vld [vmem:[%s9 + $0x190] sm:$0xf]
      %v947 = vld [vmem:[%s9 + $0x194] sm:$0xf]
      %v948 = vld [vmem:[%s9 + $0x198] sm:$0xf]
      %v949 = vld [vmem:[%s9 + $0x19c] sm:$0xf]
      %v950 = vld [vmem:[%s9 + $0x1a0] sm:$0xf]
      %v951 = vld [vmem:[%s9 + $0x1a4] sm:$0xf]
      %v952 = vld [vmem:[%s9 + $0x1a8] sm:$0xf]
      %v953 = vld [vmem:[%s9 + $0x1ac] sm:$0xf]
      %v954 = vld [vmem:[%s9 + $0x1b0] sm:$0xf]
      %v955 = vld [vmem:[%s9 + $0x1b4] sm:$0xf]
      %v956 = vld [vmem:[%s9 + $0x1b8] sm:$0xf]
      %v957 = vld [vmem:[%s9 + $0x1bc] sm:$0xf]
      %v958 = vld [vmem:[%s9 + $0x1c0] sm:$0xf]
      %v959 = vld [vmem:[%s9 + $0x1c4] sm:$0xf]
      %v960 = vld [vmem:[%s9 + $0x1c8] sm:$0xf]
      %v961 = vld [vmem:[%s9 + $0x1cc] sm:$0xf]
      %v962 = vld [vmem:[%s9 + $0x1d0] sm:$0xf]
      %v963 = vld [vmem:[%s9 + $0x1d4] sm:$0xf]
      %v964 = vld [vmem:[%s9 + $0x1d8] sm:$0xf]
      %v965 = vld [vmem:[%s9 + $0x1dc] sm:$0xf]
      %v966 = vld [vmem:[%s9 + $0x1e0] sm:$0xf]
      %v967 = vld [vmem:[%s9 + $0x1e4] sm:$0xf]
      %v968 = vld [vmem:[%s9 + $0x1e8] sm:$0xf]
      %v969 = vld [vmem:[%s9 + $0x1ec] sm:$0xf]
      %v970 = vld [vmem:[%s9 + $0x1f0] sm:$0xf]
      %v971 = vld [vmem:[%s9 + $0x1f4] sm:$0xf]
      %v972 = vld [vmem:[%s9 + $0x1f8] sm:$0xf]
      %v973 = vld [vmem:[%s9 + $0x1fc] sm:$0xf]
      %v974 = vld [vmem:[%s9 + $0x200] sm:$0xf]
      %v975 = vld [vmem:[%s9 + $0x204] sm:$0xf]
      %v976 = vld [vmem:[%s9 + $0x208] sm:$0xf]
      %v977 = vld [vmem:[%s9 + $0x20c] sm:$0xf]
      %v978 = vld [vmem:[%s9 + $0x210] sm:$0xf]
      %v979 = vld [vmem:[%s9 + $0x214] sm:$0xf]
      %v980 = vld [vmem:[%s9 + $0x218] sm:$0xf]
      %v981 = vld [vmem:[%s9 + $0x21c] sm:$0xf]
      %v982 = vld [vmem:[%s9 + $0x220] sm:$0xf]
      %v983 = vld [vmem:[%s9 + $0x224] sm:$0xf]
      %v984 = vld [vmem:[%s9 + $0x228] sm:$0xf]
      %v985 = vld [vmem:[%s9 + $0x22c] sm:$0xf]
      %v986 = vld [vmem:[%s9 + $0x230] sm:$0xf]
      %v987 = vld [vmem:[%s9 + $0x234] sm:$0xf]
      %v988 = vld [vmem:[%s9 + $0x238] sm:$0xf]
      %v989 = vld [vmem:[%s9 + $0x23c] sm:$0xf]
      %v1030 = vunpack.c.l.b16 %v806
      %v1031 = vunpack.c.h.b16 %v806
      %v1032 = vunpack.c.l.b16 %v807
      %v1033 = vunpack.c.h.b16 %v807
      %v1034 = vunpack.c.l.b16 %v808
      %v1035 = vunpack.c.h.b16 %v808
      %v1036 = vunpack.c.l.b16 %v809
      %v1037 = vunpack.c.h.b16 %v809
      %v1038 = vunpack.c.l.b16 %v810
      %v1039 = vunpack.c.l.b16 %v811
      %v1040 = vunpack.c.h.b16 %v811
      %v1041 = vunpack.c.l.b16 %v812
      %v1042 = vunpack.c.h.b16 %v812
      %v1043 = vunpack.c.l.b16 %v813
      %v1044 = vunpack.c.h.b16 %v813
      %v1045 = vunpack.c.l.b16 %v814
      %v1046 = vunpack.c.h.b16 %v814
      %v1047 = vunpack.c.l.b16 %v815
      %v1048 = vunpack.c.l.b16 %v816
      %v1049 = vunpack.c.h.b16 %v816
      %v1050 = vunpack.c.l.b16 %v817
      %v1051 = vunpack.c.h.b16 %v817
      %v1052 = vunpack.c.l.b16 %v818
      %v1053 = vunpack.c.h.b16 %v818
      %v1054 = vunpack.c.l.b16 %v819
      %v1055 = vunpack.c.h.b16 %v819
      %v1056 = vunpack.c.l.b16 %v820
      %v1057 = vunpack.c.l.b16 %v821
      %v1058 = vunpack.c.h.b16 %v821
      %v1059 = vunpack.c.l.b16 %v822
      %v1060 = vunpack.c.h.b16 %v822
      %v1061 = vunpack.c.l.b16 %v823
      %v1062 = vunpack.c.h.b16 %v823
      %v1063 = vunpack.c.l.b16 %v824
      %v1064 = vunpack.c.h.b16 %v824
      %v1065 = vunpack.c.l.b16 %v825
      %v1066 = vunpack.c.l.b16 %v826
      %v1067 = vunpack.c.h.b16 %v826
      %v1068 = vunpack.c.l.b16 %v827
      %v1069 = vunpack.c.h.b16 %v827
      %v1070 = vunpack.c.l.b16 %v828
      %v1071 = vunpack.c.h.b16 %v828
      %v1072 = vunpack.c.l.b16 %v829
      %v1073 = vunpack.c.h.b16 %v829
      %v1074 = vunpack.c.l.b16 %v830
      %v1075 = vunpack.c.l.b16 %v831
      %v1076 = vunpack.c.h.b16 %v831
      %v1077 = vunpack.c.l.b16 %v832
      %v1078 = vunpack.c.h.b16 %v832
      %v1079 = vunpack.c.l.b16 %v833
      %v1080 = vunpack.c.h.b16 %v833
      %v1081 = vunpack.c.l.b16 %v834
      %v1082 = vunpack.c.h.b16 %v834
      %v1083 = vunpack.c.l.b16 %v835
      %v1084 = vunpack.c.l.b16 %v836
      %v1085 = vunpack.c.h.b16 %v836
      %v1086 = vunpack.c.l.b16 %v837
      %v1087 = vunpack.c.h.b16 %v837
      %v1088 = vunpack.c.l.b16 %v838
      %v1089 = vunpack.c.h.b16 %v838
      %v1090 = vunpack.c.l.b16 %v839
      %v1091 = vunpack.c.h.b16 %v839
      %v1092 = vunpack.c.l.b16 %v840
      %v1093 = vunpack.c.l.b16 %v841
      %v1094 = vunpack.c.h.b16 %v841
      %v1095 = vunpack.c.l.b16 %v842
      %v1096 = vunpack.c.h.b16 %v842
      %v1097 = vunpack.c.l.b16 %v843
      %v1098 = vunpack.c.h.b16 %v843
      %v1099 = vunpack.c.l.b16 %v844
      %v1100 = vunpack.c.h.b16 %v844
      %v1101 = vunpack.c.l.b16 %v845
      %v1102 = vpack.c.b16 %v1039, %v1030
      %v1103 = vpack.c.b16 %v1040, %v1031
      %v1104 = vpack.c.b16 %v1041, %v1032
      %v1105 = vpack.c.b16 %v1042, %v1033
      %v1106 = vpack.c.b16 %v1043, %v1034
      %v1107 = vpack.c.b16 %v1044, %v1035
      %v1108 = vpack.c.b16 %v1045, %v1036
      %v1109 = vpack.c.b16 %v1046, %v1037
      %v1110 = vpack.c.b16 %v1047, %v1038
      %v1111 = vpack.c.b16 %v1057, %v1048
      %v1112 = vpack.c.b16 %v1058, %v1049
      %v1113 = vpack.c.b16 %v1059, %v1050
      %v1114 = vpack.c.b16 %v1060, %v1051
      %v1115 = vpack.c.b16 %v1061, %v1052
      %v1116 = vpack.c.b16 %v1062, %v1053
      %v1117 = vpack.c.b16 %v1063, %v1054
      %v1118 = vpack.c.b16 %v1064, %v1055
      %v1119 = vpack.c.b16 %v1065, %v1056
      %v1120 = vpack.c.b16 %v1075, %v1066
      %v1121 = vpack.c.b16 %v1076, %v1067
      %v1122 = vpack.c.b16 %v1077, %v1068
      %v1123 = vpack.c.b16 %v1078, %v1069
      %v1124 = vpack.c.b16 %v1079, %v1070
      %v1125 = vpack.c.b16 %v1080, %v1071
      %v1126 = vpack.c.b16 %v1081, %v1072
      %v1127 = vpack.c.b16 %v1082, %v1073
      %v1128 = vpack.c.b16 %v1083, %v1074
      %v1129 = vpack.c.b16 %v1093, %v1084
      %v1130 = vpack.c.b16 %v1094, %v1085
      %v1131 = vpack.c.b16 %v1095, %v1086
      %v1132 = vpack.c.b16 %v1096, %v1087
      %v1133 = vpack.c.b16 %v1097, %v1088
      %v1134 = vpack.c.b16 %v1098, %v1089
      %v1135 = vpack.c.b16 %v1099, %v1090
      %v1136 = vpack.c.b16 %v1100, %v1091
      %v1137 = vpack.c.b16 %v1101, %v1092
      %v1318 = vunpack.c.l.b16 %v846
      %v1319 = vunpack.c.l.b16 %v847
      %v1320 = vunpack.c.l.b16 %v848
      %v1321 = vunpack.c.l.b16 %v849
      %v1322 = vunpack.c.l.b16 %v850
      %v1323 = vunpack.c.l.b16 %v851
      %v1324 = vunpack.c.l.b16 %v852
      %v1325 = vunpack.c.l.b16 %v853
      %v1326 = vunpack.c.l.b16 %v854
      %v1327 = vunpack.c.l.b16 %v855
      %v1328 = vunpack.c.l.b16 %v856
      %v1329 = vunpack.c.l.b16 %v857
      %v1330 = vunpack.c.l.b16 %v858
      %v1331 = vunpack.c.l.b16 %v859
      %v1332 = vunpack.c.l.b16 %v860
      %v1333 = vunpack.c.l.b16 %v861
      %v1334 = vunpack.c.l.b16 %v862
      %v1335 = vunpack.c.l.b16 %v863
      %v1336 = vunpack.c.l.b16 %v864
      %v1337 = vunpack.c.l.b16 %v865
      %v1338 = vunpack.c.l.b16 %v866
      %v1339 = vunpack.c.l.b16 %v867
      %v1340 = vunpack.c.l.b16 %v868
      %v1341 = vunpack.c.l.b16 %v869
      %v1342 = vunpack.c.l.b16 %v870
      %v1343 = vunpack.c.l.b16 %v871
      %v1344 = vunpack.c.l.b16 %v872
      %v1345 = vunpack.c.l.b16 %v873
      %v1346 = vunpack.c.l.b16 %v874
      %v1347 = vunpack.c.l.b16 %v875
      %v1348 = vunpack.c.l.b16 %v876
      %v1349 = vunpack.c.l.b16 %v877
      %v1350 = vunpack.c.l.b16 %v878
      %v1351 = vunpack.c.l.b16 %v879
      %v1352 = vunpack.c.l.b16 %v880
      %v1353 = vunpack.c.l.b16 %v881
      %v1354 = vunpack.c.l.b16 %v882
      %v1355 = vunpack.c.l.b16 %v883
      %v1356 = vunpack.c.l.b16 %v884
      %v1357 = vunpack.c.l.b16 %v885
      %v1358 = vunpack.c.l.b16 %v886
      %v1359 = vunpack.c.l.b16 %v887
      %v1360 = vunpack.c.l.b16 %v888
      %v1361 = vunpack.c.l.b16 %v889
      %v1362 = vunpack.c.l.b16 %v890
      %v1363 = vunpack.c.l.b16 %v891
      %v1364 = vunpack.c.l.b16 %v892
      %v1365 = vunpack.c.l.b16 %v893
      %v1366 = vunpack.c.l.b16 %v894
      %v1367 = vunpack.c.l.b16 %v895
      %v1368 = vunpack.c.l.b16 %v896
      %v1369 = vunpack.c.l.b16 %v897
      %v1370 = vunpack.c.l.b16 %v898
      %v1371 = vunpack.c.l.b16 %v899
      %v1372 = vunpack.c.l.b16 %v900
      %v1373 = vunpack.c.l.b16 %v901
      %v1374 = vunpack.c.l.b16 %v902
      %v1375 = vunpack.c.l.b16 %v903
      %v1376 = vunpack.c.l.b16 %v904
      %v1377 = vunpack.c.l.b16 %v905
      %v1378 = vunpack.c.l.b16 %v906
      %v1379 = vunpack.c.l.b16 %v907
      %v1380 = vunpack.c.l.b16 %v908
      %v1381 = vunpack.c.l.b16 %v909
      %v1382 = vunpack.c.l.b16 %v910
      %v1383 = vunpack.c.l.b16 %v911
      %v1384 = vunpack.c.l.b16 %v912
      %v1385 = vunpack.c.l.b16 %v913
      %v1386 = vunpack.c.l.b16 %v914
      %v1387 = vunpack.c.l.b16 %v915
      %v1388 = vunpack.c.l.b16 %v916
      %v1389 = vunpack.c.l.b16 %v917
      %v1390 = vunpack.c.l.b16 %v918
      %v1391 = vunpack.c.l.b16 %v919
      %v1392 = vunpack.c.l.b16 %v920
      %v1393 = vunpack.c.l.b16 %v921
      %v1394 = vunpack.c.l.b16 %v922
      %v1395 = vunpack.c.l.b16 %v923
      %v1396 = vunpack.c.l.b16 %v924
      %v1397 = vunpack.c.l.b16 %v925
      %v1398 = vunpack.c.l.b16 %v926
      %v1399 = vunpack.c.l.b16 %v927
      %v1400 = vunpack.c.l.b16 %v928
      %v1401 = vunpack.c.l.b16 %v929
      %v1402 = vunpack.c.l.b16 %v930
      %v1403 = vunpack.c.l.b16 %v931
      %v1404 = vunpack.c.l.b16 %v932
      %v1405 = vunpack.c.l.b16 %v933
      %v1406 = vunpack.c.l.b16 %v934
      %v1407 = vunpack.c.l.b16 %v935
      %v1408 = vunpack.c.l.b16 %v936
      %v1409 = vunpack.c.l.b16 %v937
      %v1410 = vunpack.c.l.b16 %v938
      %v1411 = vunpack.c.l.b16 %v939
      %v1412 = vunpack.c.l.b16 %v940
      %v1413 = vunpack.c.l.b16 %v941
      %v1414 = vunpack.c.l.b16 %v942
      %v1415 = vunpack.c.l.b16 %v943
      %v1416 = vunpack.c.l.b16 %v944
      %v1417 = vunpack.c.l.b16 %v945
      %v1418 = vunpack.c.l.b16 %v946
      %v1419 = vunpack.c.l.b16 %v947
      %v1420 = vunpack.c.l.b16 %v948
      %v1421 = vunpack.c.l.b16 %v949
      %v1422 = vunpack.c.l.b16 %v950
      %v1423 = vunpack.c.l.b16 %v951
      %v1424 = vunpack.c.l.b16 %v952
      %v1425 = vunpack.c.l.b16 %v953
      %v1426 = vunpack.c.l.b16 %v954
      %v1427 = vunpack.c.l.b16 %v955
      %v1428 = vunpack.c.l.b16 %v956
      %v1429 = vunpack.c.l.b16 %v957
      %v1430 = vunpack.c.l.b16 %v958
      %v1431 = vunpack.c.l.b16 %v959
      %v1432 = vunpack.c.l.b16 %v960
      %v1433 = vunpack.c.l.b16 %v961
      %v1434 = vunpack.c.l.b16 %v962
      %v1435 = vunpack.c.l.b16 %v963
      %v1436 = vunpack.c.l.b16 %v964
      %v1437 = vunpack.c.l.b16 %v965
      %v1438 = vunpack.c.l.b16 %v966
      %v1439 = vunpack.c.l.b16 %v967
      %v1440 = vunpack.c.l.b16 %v968
      %v1441 = vunpack.c.l.b16 %v969
      %v1442 = vunpack.c.l.b16 %v970
      %v1443 = vunpack.c.l.b16 %v971
      %v1444 = vunpack.c.l.b16 %v972
      %v1445 = vunpack.c.l.b16 %v973
      %v1446 = vunpack.c.l.b16 %v974
      %v1447 = vunpack.c.l.b16 %v975
      %v1448 = vunpack.c.l.b16 %v976
      %v1449 = vunpack.c.l.b16 %v977
      %v1450 = vunpack.c.l.b16 %v978
      %v1451 = vunpack.c.l.b16 %v979
      %v1452 = vunpack.c.l.b16 %v980
      %v1453 = vunpack.c.l.b16 %v981
      %v1454 = vunpack.c.l.b16 %v982
      %v1455 = vunpack.c.l.b16 %v983
      %v1456 = vunpack.c.l.b16 %v984
      %v1457 = vunpack.c.l.b16 %v985
      %v1458 = vunpack.c.l.b16 %v986
      %v1459 = vunpack.c.l.b16 %v987
      %v1460 = vunpack.c.l.b16 %v988
      %v1461 = vunpack.c.l.b16 %v989
      %v1462 = vpack.c.b16 %v1319, %v1318
      %v1463 = vpack.c.b16 %v1321, %v1320
      %v1464 = vpack.c.b16 %v1323, %v1322
      %v1465 = vpack.c.b16 %v1325, %v1324
      %v1466 = vpack.c.b16 %v1327, %v1326
      %v1467 = vpack.c.b16 %v1329, %v1328
      %v1468 = vpack.c.b16 %v1331, %v1330
      %v1469 = vpack.c.b16 %v1333, %v1332
      %v1470 = vpack.c.b16 %v1335, %v1334
      %v1471 = vpack.c.b16 %v1337, %v1336
      %v1472 = vpack.c.b16 %v1339, %v1338
      %v1473 = vpack.c.b16 %v1341, %v1340
      %v1474 = vpack.c.b16 %v1343, %v1342
      %v1475 = vpack.c.b16 %v1345, %v1344
      %v1476 = vpack.c.b16 %v1347, %v1346
      %v1477 = vpack.c.b16 %v1349, %v1348
      %v1478 = vpack.c.b16 %v1351, %v1350
      %v1479 = vpack.c.b16 %v1353, %v1352
      %v1480 = vpack.c.b16 %v1355, %v1354
      %v1481 = vpack.c.b16 %v1357, %v1356
      %v1482 = vpack.c.b16 %v1359, %v1358
      %v1483 = vpack.c.b16 %v1361, %v1360
      %v1484 = vpack.c.b16 %v1363, %v1362
      %v1485 = vpack.c.b16 %v1365, %v1364
      %v1486 = vpack.c.b16 %v1367, %v1366
      %v1487 = vpack.c.b16 %v1369, %v1368
      %v1488 = vpack.c.b16 %v1371, %v1370
      %v1489 = vpack.c.b16 %v1373, %v1372
      %v1490 = vpack.c.b16 %v1375, %v1374
      %v1491 = vpack.c.b16 %v1377, %v1376
      %v1492 = vpack.c.b16 %v1379, %v1378
      %v1493 = vpack.c.b16 %v1381, %v1380
      %v1494 = vpack.c.b16 %v1383, %v1382
      %v1495 = vpack.c.b16 %v1385, %v1384
      %v1496 = vpack.c.b16 %v1387, %v1386
      %v1497 = vpack.c.b16 %v1389, %v1388
      %v1498 = vpack.c.b16 %v1391, %v1390
      %v1499 = vpack.c.b16 %v1393, %v1392
      %v1500 = vpack.c.b16 %v1395, %v1394
      %v1501 = vpack.c.b16 %v1397, %v1396
      %v1502 = vpack.c.b16 %v1399, %v1398
      %v1503 = vpack.c.b16 %v1401, %v1400
      %v1504 = vpack.c.b16 %v1403, %v1402
      %v1505 = vpack.c.b16 %v1405, %v1404
      %v1506 = vpack.c.b16 %v1407, %v1406
      %v1507 = vpack.c.b16 %v1409, %v1408
      %v1508 = vpack.c.b16 %v1411, %v1410
      %v1509 = vpack.c.b16 %v1413, %v1412
      %v1510 = vpack.c.b16 %v1415, %v1414
      %v1511 = vpack.c.b16 %v1417, %v1416
      %v1512 = vpack.c.b16 %v1419, %v1418
      %v1513 = vpack.c.b16 %v1421, %v1420
      %v1514 = vpack.c.b16 %v1423, %v1422
      %v1515 = vpack.c.b16 %v1425, %v1424
      %v1516 = vpack.c.b16 %v1427, %v1426
      %v1517 = vpack.c.b16 %v1429, %v1428
      %v1518 = vpack.c.b16 %v1431, %v1430
      %v1519 = vpack.c.b16 %v1433, %v1432
      %v1520 = vpack.c.b16 %v1435, %v1434
      %v1521 = vpack.c.b16 %v1437, %v1436
      %v1522 = vpack.c.b16 %v1439, %v1438
      %v1523 = vpack.c.b16 %v1441, %v1440
      %v1524 = vpack.c.b16 %v1443, %v1442
      %v1525 = vpack.c.b16 %v1445, %v1444
      %v1526 = vpack.c.b16 %v1447, %v1446
      %v1527 = vpack.c.b16 %v1449, %v1448
      %v1528 = vpack.c.b16 %v1451, %v1450
      %v1529 = vpack.c.b16 %v1453, %v1452
      %v1530 = vpack.c.b16 %v1455, %v1454
      %v1531 = vpack.c.b16 %v1457, %v1456
      %v1532 = vpack.c.b16 %v1459, %v1458
      %v1533 = vpack.c.b16 %v1461, %v1460
      %1606 = vmatprep.subr.bf16.mxu0 0
      %1607 = vmatpush1.bf16.msra.mxu0 %v1469
      %1608 = vmatprep.subr.bf16.mxu0 0
      %1609 = vmatpush1.bf16.msra.mxu0 %v1468
      %1610 = vmatprep.subr.bf16.mxu0 0
      %1611 = vmatpush1.bf16.msra.mxu0 %v1467
      %1612 = vmatprep.subr.bf16.mxu0 0
      %1613 = vmatpush1.bf16.msra.mxu0 %v1466
      %1614 = vmatprep.subr.bf16.mxu0 0
      %1615 = vmatpush1.bf16.msra.mxu0 %v1465
      %1616 = vmatprep.subr.bf16.mxu0 0
      %1617 = vmatpush1.bf16.msra.mxu0 %v1464
      %1618 = vmatprep.subr.bf16.mxu0 0
      %1619 = vmatpush1.bf16.msra.mxu0 %v1463
      %1620 = vmatprep.subr.bf16.mxu0 0
      %1621 = vmatpush1.bf16.msra.mxu0 %v1462
      %1622 = vmatprep.subr.bf16.mxu0 0
      %1623 = vmatpush2.bf16.msra.mxu0 %v1477
      %1624 = vmatprep.subr.bf16.mxu0 0
      %1625 = vmatpush2.bf16.msra.mxu0 %v1476
      %1626 = vmatprep.subr.bf16.mxu0 0
      %1627 = vmatpush2.bf16.msra.mxu0 %v1475
      %1628 = vmatprep.subr.bf16.mxu0 0
      %1629 = vmatpush2.bf16.msra.mxu0 %v1474
      %1630 = vmatprep.subr.bf16.mxu0 0
      %1631 = vmatpush2.bf16.msra.mxu0 %v1473
      %1632 = vmatprep.subr.bf16.mxu0 0
      %1633 = vmatpush2.bf16.msra.mxu0 %v1472
      %1634 = vmatprep.subr.bf16.mxu0 0
      %1635 = vmatpush2.bf16.msra.mxu0 %v1471
      %1636 = vmatprep.subr.bf16.mxu0 0
      %1637 = vmatpush2.bf16.msra.mxu0 %v1470
      %1638 = vmatprep.mubr.bf16.mxu0 %v1103
      %1639 = vmatmul.mubr.bf16.gmra.mxu0 %v1102
      %v1640 = vpop.f32.mrf.mxu0
      %v1641 = vadd.f32 0.0, %v1640
      %v1642 = vpop.f32.mrf.mxu0
      %v1643 = vpop.f32.mrf.mxu0
      %v1644 = vadd.f32 0.0, %v1643
      %v1645 = vpop.f32.mrf.mxu0
      %1646 = vmatprep.mubr.bf16.mxu0 %v1112
      %1647 = vmatmul.mubr.bf16.gmra.mxu0 %v1111
      %v1648 = vpop.f32.mrf.mxu0
      %v1649 = vadd.f32 0.0, %v1648
      %v1650 = vpop.f32.mrf.mxu0
      %v1651 = vpop.f32.mrf.mxu0
      %v1652 = vadd.f32 0.0, %v1651
      %v1653 = vpop.f32.mrf.mxu0
      %1654 = vmatprep.mubr.bf16.mxu0 %v1121
      %1655 = vmatmul.mubr.bf16.gmra.mxu0 %v1120
      %v1656 = vpop.f32.mrf.mxu0
      %v1657 = vadd.f32 0.0, %v1656
      %v1658 = vpop.f32.mrf.mxu0
      %v1659 = vpop.f32.mrf.mxu0
      %v1660 = vadd.f32 0.0, %v1659
      %v1661 = vpop.f32.mrf.mxu0
      %1662 = vmatprep.mubr.bf16.mxu0 %v1130
      %1663 = vmatmul.mubr.bf16.gmra.mxu0 %v1129
      %v1664 = vpop.f32.mrf.mxu0
      %v1665 = vadd.f32 0.0, %v1664
      %v1666 = vpop.f32.mrf.mxu0
      %v1667 = vpop.f32.mrf.mxu0
      %v1668 = vadd.f32 0.0, %v1667
      %v1669 = vpop.f32.mrf.mxu0
      %1670 = vdwg.mxu0
      %1671 = vmatprep.subr.bf16.mxu0 0
      %1672 = vmatpush1.bf16.msra.mxu0 %v1485
      %1673 = vmatprep.subr.bf16.mxu0 0
      %1674 = vmatpush1.bf16.msra.mxu0 %v1484
      %1675 = vmatprep.subr.bf16.mxu0 0
      %1676 = vmatpush1.bf16.msra.mxu0 %v1483
      %1677 = vmatprep.subr.bf16.mxu0 0
      %1678 = vmatpush1.bf16.msra.mxu0 %v1482
      %1679 = vmatprep.subr.bf16.mxu0 0
      %1680 = vmatpush1.bf16.msra.mxu0 %v1481
      %1681 = vmatprep.subr.bf16.mxu0 0
      %1682 = vmatpush1.bf16.msra.mxu0 %v1480
      %1683 = vmatprep.subr.bf16.mxu0 0
      %1684 = vmatpush1.bf16.msra.mxu0 %v1479
      %1685 = vmatprep.subr.bf16.mxu0 0
      %1686 = vmatpush1.bf16.msra.mxu0 %v1478
      %1687 = vmatprep.subr.bf16.mxu0 0
      %1688 = vmatpush2.bf16.msra.mxu0 %v1493
      %1689 = vmatprep.subr.bf16.mxu0 0
      %1690 = vmatpush2.bf16.msra.mxu0 %v1492
      %1691 = vmatprep.subr.bf16.mxu0 0
      %1692 = vmatpush2.bf16.msra.mxu0 %v1491
      %1693 = vmatprep.subr.bf16.mxu0 0
      %1694 = vmatpush2.bf16.msra.mxu0 %v1490
      %1695 = vmatprep.subr.bf16.mxu0 0
      %1696 = vmatpush2.bf16.msra.mxu0 %v1489
      %1697 = vmatprep.subr.bf16.mxu0 0
      %1698 = vmatpush2.bf16.msra.mxu0 %v1488
      %1699 = vmatprep.subr.bf16.mxu0 0
      %1700 = vmatpush2.bf16.msra.mxu0 %v1487
      %1701 = vmatprep.subr.bf16.mxu0 0
      %1702 = vmatpush2.bf16.msra.mxu0 %v1486
      %1703 = vmatprep.mubr.bf16.mxu0 %v1105
      %1704 = vmatmul.mubr.bf16.gmra.mxu0 %v1104
      %v1705 = vpop.f32.mrf.mxu0
      %v1706 = vadd.f32 %v1641, %v1705
      %v1707 = vpop.f32.mrf.mxu0
      %v1708 = vpop.f32.mrf.mxu0
      %v1709 = vadd.f32 %v1644, %v1708
      %v1710 = vpop.f32.mrf.mxu0
      %1711 = vmatprep.mubr.bf16.mxu0 %v1114
      %1712 = vmatmul.mubr.bf16.gmra.mxu0 %v1113
      %v1713 = vpop.f32.mrf.mxu0
      %v1714 = vadd.f32 %v1649, %v1713
      %v1715 = vpop.f32.mrf.mxu0
      %v1716 = vpop.f32.mrf.mxu0
      %v1717 = vadd.f32 %v1652, %v1716
      %v1718 = vpop.f32.mrf.mxu0
      %1719 = vmatprep.mubr.bf16.mxu0 %v1123
      %1720 = vmatmul.mubr.bf16.gmra.mxu0 %v1122
      %v1721 = vpop.f32.mrf.mxu0
      %v1722 = vadd.f32 %v1657, %v1721
      %v1723 = vpop.f32.mrf.mxu0
      %v1724 = vpop.f32.mrf.mxu0
      %v1725 = vadd.f32 %v1660, %v1724
      %v1726 = vpop.f32.mrf.mxu0
      %1727 = vmatprep.mubr.bf16.mxu0 %v1132
      %1728 = vmatmul.mubr.bf16.gmra.mxu0 %v1131
      %v1729 = vpop.f32.mrf.mxu0
      %v1730 = vadd.f32 %v1665, %v1729
      %v1731 = vpop.f32.mrf.mxu0
      %v1732 = vpop.f32.mrf.mxu0
      %v1733 = vadd.f32 %v1668, %v1732
      %v1734 = vpop.f32.mrf.mxu0
      %1735 = vdwg.mxu0
      %1736 = vmatprep.subr.bf16.mxu0 0
      %1737 = vmatpush1.bf16.msra.mxu0 %v1501
      %1738 = vmatprep.subr.bf16.mxu0 0
      %1739 = vmatpush1.bf16.msra.mxu0 %v1500
      %1740 = vmatprep.subr.bf16.mxu0 0
      %1741 = vmatpush1.bf16.msra.mxu0 %v1499
      %1742 = vmatprep.subr.bf16.mxu0 0
      %1743 = vmatpush1.bf16.msra.mxu0 %v1498
      %1744 = vmatprep.subr.bf16.mxu0 0
      %1745 = vmatpush1.bf16.msra.mxu0 %v1497
      %1746 = vmatprep.subr.bf16.mxu0 0
      %1747 = vmatpush1.bf16.msra.mxu0 %v1496
      %1748 = vmatprep.subr.bf16.mxu0 0
      %1749 = vmatpush1.bf16.msra.mxu0 %v1495
      %1750 = vmatprep.subr.bf16.mxu0 0
      %1751 = vmatpush1.bf16.msra.mxu0 %v1494
      %1752 = vmatprep.subr.bf16.mxu0 0
      %1753 = vmatpush2.bf16.msra.mxu0 %v1509
      %1754 = vmatprep.subr.bf16.mxu0 0
      %1755 = vmatpush2.bf16.msra.mxu0 %v1508
      %1756 = vmatprep.subr.bf16.mxu0 0
      %1757 = vmatpush2.bf16.msra.mxu0 %v1507
      %1758 = vmatprep.subr.bf16.mxu0 0
      %1759 = vmatpush2.bf16.msra.mxu0 %v1506
      %1760 = vmatprep.subr.bf16.mxu0 0
      %1761 = vmatpush2.bf16.msra.mxu0 %v1505
      %1762 = vmatprep.subr.bf16.mxu0 0
      %1763 = vmatpush2.bf16.msra.mxu0 %v1504
      %1764 = vmatprep.subr.bf16.mxu0 0
      %1765 = vmatpush2.bf16.msra.mxu0 %v1503
      %1766 = vmatprep.subr.bf16.mxu0 0
      %1767 = vmatpush2.bf16.msra.mxu0 %v1502
      %1768 = vmatprep.mubr.bf16.mxu0 %v1107
      %1769 = vmatmul.mubr.bf16.gmra.mxu0 %v1106
      %v1770 = vpop.f32.mrf.mxu0
      %v1771 = vadd.f32 %v1706, %v1770
      %v1772 = vpop.f32.mrf.mxu0
      %v1773 = vpop.f32.mrf.mxu0
      %v1774 = vadd.f32 %v1709, %v1773
      %v1775 = vpop.f32.mrf.mxu0
      %1776 = vmatprep.mubr.bf16.mxu0 %v1116
      %1777 = vmatmul.mubr.bf16.gmra.mxu0 %v1115
      %v1778 = vpop.f32.mrf.mxu0
      %v1779 = vadd.f32 %v1714, %v1778
      %v1780 = vpop.f32.mrf.mxu0
      %v1781 = vpop.f32.mrf.mxu0
      %v1782 = vadd.f32 %v1717, %v1781
      %v1783 = vpop.f32.mrf.mxu0
      %1784 = vmatprep.mubr.bf16.mxu0 %v1125
      %1785 = vmatmul.mubr.bf16.gmra.mxu0 %v1124
      %v1786 = vpop.f32.mrf.mxu0
      %v1787 = vadd.f32 %v1722, %v1786
      %v1788 = vpop.f32.mrf.mxu0
      %v1789 = vpop.f32.mrf.mxu0
      %v1790 = vadd.f32 %v1725, %v1789
      %v1791 = vpop.f32.mrf.mxu0
      %1792 = vmatprep.mubr.bf16.mxu0 %v1134
      %1793 = vmatmul.mubr.bf16.gmra.mxu0 %v1133
      %v1794 = vpop.f32.mrf.mxu0
      %v1795 = vadd.f32 %v1730, %v1794
      %v1796 = vpop.f32.mrf.mxu0
      %v1797 = vpop.f32.mrf.mxu0
      %v1798 = vadd.f32 %v1733, %v1797
      %v1799 = vpop.f32.mrf.mxu0
      %1800 = vdwg.mxu0
      %1801 = vmatprep.subr.bf16.mxu0 0
      %1802 = vmatpush1.bf16.msra.mxu0 %v1517
      %1803 = vmatprep.subr.bf16.mxu0 0
      %1804 = vmatpush1.bf16.msra.mxu0 %v1516
      %1805 = vmatprep.subr.bf16.mxu0 0
      %1806 = vmatpush1.bf16.msra.mxu0 %v1515
      %1807 = vmatprep.subr.bf16.mxu0 0
      %1808 = vmatpush1.bf16.msra.mxu0 %v1514
      %1809 = vmatprep.subr.bf16.mxu0 0
      %1810 = vmatpush1.bf16.msra.mxu0 %v1513
      %1811 = vmatprep.subr.bf16.mxu0 0
      %1812 = vmatpush1.bf16.msra.mxu0 %v1512
      %1813 = vmatprep.subr.bf16.mxu0 0
      %1814 = vmatpush1.bf16.msra.mxu0 %v1511
      %1815 = vmatprep.subr.bf16.mxu0 0
      %1816 = vmatpush1.bf16.msra.mxu0 %v1510
      %1817 = vmatprep.subr.bf16.mxu0 0
      %1818 = vmatpush2.bf16.msra.mxu0 %v1525
      %1819 = vmatprep.subr.bf16.mxu0 0
      %1820 = vmatpush2.bf16.msra.mxu0 %v1524
      %1821 = vmatprep.subr.bf16.mxu0 0
      %1822 = vmatpush2.bf16.msra.mxu0 %v1523
      %1823 = vmatprep.subr.bf16.mxu0 0
      %1824 = vmatpush2.bf16.msra.mxu0 %v1522
      %1825 = vmatprep.subr.bf16.mxu0 0
      %1826 = vmatpush2.bf16.msra.mxu0 %v1521
      %1827 = vmatprep.subr.bf16.mxu0 0
      %1828 = vmatpush2.bf16.msra.mxu0 %v1520
      %1829 = vmatprep.subr.bf16.mxu0 0
      %1830 = vmatpush2.bf16.msra.mxu0 %v1519
      %1831 = vmatprep.subr.bf16.mxu0 0
      %1832 = vmatpush2.bf16.msra.mxu0 %v1518
      %1833 = vmatprep.mubr.bf16.mxu0 %v1109
      %1834 = vmatmul.mubr.bf16.gmra.mxu0 %v1108
      %v1835 = vpop.f32.mrf.mxu0
      %v1836 = vadd.f32 %v1771, %v1835
      %v1837 = vpop.f32.mrf.mxu0
      %v1838 = vpop.f32.mrf.mxu0
      %v1839 = vadd.f32 %v1774, %v1838
      %v1840 = vpop.f32.mrf.mxu0
      %1841 = vmatprep.mubr.bf16.mxu0 %v1118
      %1842 = vmatmul.mubr.bf16.gmra.mxu0 %v1117
      %v1843 = vpop.f32.mrf.mxu0
      %v1844 = vadd.f32 %v1779, %v1843
      %v1845 = vpop.f32.mrf.mxu0
      %v1846 = vpop.f32.mrf.mxu0
      %v1847 = vadd.f32 %v1782, %v1846
      %v1848 = vpop.f32.mrf.mxu0
      %1849 = vmatprep.mubr.bf16.mxu0 %v1127
      %1850 = vmatmul.mubr.bf16.gmra.mxu0 %v1126
      %v1851 = vpop.f32.mrf.mxu0
      %v1852 = vadd.f32 %v1787, %v1851
      %v1853 = vpop.f32.mrf.mxu0
      %v1854 = vpop.f32.mrf.mxu0
      %v1855 = vadd.f32 %v1790, %v1854
      %v1856 = vpop.f32.mrf.mxu0
      %1857 = vmatprep.mubr.bf16.mxu0 %v1136
      %1858 = vmatmul.mubr.bf16.gmra.mxu0 %v1135
      %v1859 = vpop.f32.mrf.mxu0
      %v1860 = vadd.f32 %v1795, %v1859
      %v1861 = vpop.f32.mrf.mxu0
      %v1862 = vpop.f32.mrf.mxu0
      %v1863 = vadd.f32 %v1798, %v1862
      %v1864 = vpop.f32.mrf.mxu0
      %1865 = vdwg.mxu0
      %1866 = vmatprep.subr.bf16.mxu0 0
      %1867 = vmatpush1.bf16.msra.mxu0 %v1533
      %1868 = vmatprep.subr.bf16.mxu0 0
      %1869 = vmatpush1.bf16.msra.mxu0 %v1532
      %1870 = vmatprep.subr.bf16.mxu0 0
      %1871 = vmatpush1.bf16.msra.mxu0 %v1531
      %1872 = vmatprep.subr.bf16.mxu0 0
      %1873 = vmatpush1.bf16.msra.mxu0 %v1530
      %1874 = vmatprep.subr.bf16.mxu0 0
      %1875 = vmatpush1.bf16.msra.mxu0 %v1529
      %1876 = vmatprep.subr.bf16.mxu0 0
      %1877 = vmatpush1.bf16.msra.mxu0 %v1528
      %1878 = vmatprep.subr.bf16.mxu0 0
      %1879 = vmatpush1.bf16.msra.mxu0 %v1527
      %1880 = vmatprep.subr.bf16.mxu0 0
      %1881 = vmatpush1.bf16.msra.mxu0 %v1526
      %1882 = vmatprep.subr.bf16.mxu0 0
      %1883 = vmatpush2.bf16.msra.mxu0 0
      %1884 = vmatprep.subr.bf16.mxu0 0
      %1885 = vmatpush2.bf16.msra.mxu0 0
      %1886 = vmatprep.subr.bf16.mxu0 0
      %1887 = vmatpush2.bf16.msra.mxu0 0
      %1888 = vmatprep.subr.bf16.mxu0 0
      %1889 = vmatpush2.bf16.msra.mxu0 0
      %1890 = vmatprep.subr.bf16.mxu0 0
      %1891 = vmatpush2.bf16.msra.mxu0 0
      %1892 = vmatprep.subr.bf16.mxu0 0
      %1893 = vmatpush2.bf16.msra.mxu0 0
      %1894 = vmatprep.subr.bf16.mxu0 0
      %1895 = vmatpush2.bf16.msra.mxu0 0
      %1896 = vmatprep.subr.bf16.mxu0 0
      %1897 = vmatpush2.bf16.msra.mxu0 0
      %1898 = vmatprep.mubr.bf16.mxu0 0
      %1899 = vmatmul.mubr.bf16.gmra.mxu0 %v1110
      %v1900 = vpop.f32.mrf.mxu0
      %v1901 = vadd.f32 %v1836, %v1900
      %v1902 = vpop.f32.mrf.mxu0
      %v1903 = vpop.f32.mrf.mxu0
      %v1904 = vadd.f32 %v1839, %v1903
      %v1905 = vpop.f32.mrf.mxu0
      %1906 = vmatprep.mubr.bf16.mxu0 0
      %1907 = vmatmul.mubr.bf16.gmra.mxu0 %v1119
      %v1908 = vpop.f32.mrf.mxu0
      %v1909 = vadd.f32 %v1844, %v1908
      %v1910 = vpop.f32.mrf.mxu0
      %v1911 = vpop.f32.mrf.mxu0
      %v1912 = vadd.f32 %v1847, %v1911
      %v1913 = vpop.f32.mrf.mxu0
      %1914 = vmatprep.mubr.bf16.mxu0 0
      %1915 = vmatmul.mubr.bf16.gmra.mxu0 %v1128
      %v1916 = vpop.f32.mrf.mxu0
      %v1917 = vadd.f32 %v1852, %v1916
      %v1918 = vpop.f32.mrf.mxu0
      %v1919 = vpop.f32.mrf.mxu0
      %v1920 = vadd.f32 %v1855, %v1919
      %v1921 = vpop.f32.mrf.mxu0
      %1922 = vmatprep.mubr.bf16.mxu0 0
      %1923 = vmatmul.mubr.bf16.gmra.mxu0 %v1137
      %v1924 = vpop.f32.mrf.mxu0
      %v1925 = vadd.f32 %v1860, %v1924
      %v1926 = vpop.f32.mrf.mxu0
      %v1927 = vpop.f32.mrf.mxu0
      %v1928 = vadd.f32 %v1863, %v1927
      %v1929 = vpop.f32.mrf.mxu0
      %1930 = vdwg.mxu0
      %v1931 = vpack.c.bf16 %v1904, %v1901
      %v1932 = vpack.c.bf16 %v1912, %v1909
      %v1933 = vpack.c.bf16 %v1920, %v1917
      %v1934 = vpack.c.bf16 %v1928, %v1925
      %v1939 = vunpack.c.l.b16 %v1931
      %v1940 = vunpack.c.h.b16 %v1931
      %v1941 = vunpack.c.l.b16 %v1932
      %v1942 = vunpack.c.h.b16 %v1932
      %v1943 = vunpack.c.l.b16 %v1933
      %v1944 = vunpack.c.h.b16 %v1933
      %v1945 = vunpack.c.l.b16 %v1934
      %v1946 = vunpack.c.h.b16 %v1934
      %v1947 = vpack.c.b16 %v1939, %v1939
      %v1948 = vpack.c.b16 %v1940, %v1940
      %v1949 = vpack.c.b16 %v1941, %v1941
      %v1950 = vpack.c.b16 %v1942, %v1942
      %v1951 = vpack.c.b16 %v1943, %v1943
      %v1952 = vpack.c.b16 %v1944, %v1944
      %v1953 = vpack.c.b16 %v1945, %v1945
      %v1954 = vpack.c.b16 %v1946, %v1946
      %1963 = vst [vmem:[%s647] sm:$0xf] %v1947
      %1964 = vst [vmem:[%s647 + $0x4] sm:$0xf] %v1948
      %1965 = vst [vmem:[%s647 + $0x8] sm:$0xf] %v1949
      %1966 = vst [vmem:[%s647 + $0xc] sm:$0xf] %v1950
      %1967 = vst [vmem:[%s647 + $0x10] sm:$0xf] %v1951
      %1968 = vst [vmem:[%s647 + $0x14] sm:$0xf] %v1952
      %1969 = vst [vmem:[%s647 + $0x18] sm:$0xf] %v1953
      %1970 = vst [vmem:[%s647 + $0x1c] sm:$0xf] %v1954
      %v1971 = vadd.f32 %v1901, %v1904
      %v1972 = vadd.f32 %v1971, %v1909
      %v1973 = vadd.f32 %v1972, %v1912
      %v1974 = vadd.f32 %v1973, %v1917
      %v1975 = vadd.f32 %v1974, %v1920
      %v1976 = vadd.f32 %v1975, %v1925
      %v1977 = vadd.f32 %v1976, %v1928
      %v1978 = vrot.slane %v1977, 4
      %v1979 = vadd.f32 %v1977, %v1978
      %v1980 = vrot.slane %v1979, 2
      %v1981 = vadd.f32 %v1979, %v1980
      %v1982 = vrot.slane %v1981, 1
      %v1983 = vadd.f32 %v1981, %v1982
      %1984 = vst [vmem:[%s651] sm:$0x1] %v1983
      %v1985 = vmul.f32 %v1901, %v1901
      %v1986 = vmul.f32 %v1904, %v1904
      %v1987 = vmul.f32 %v1909, %v1909
      %v1988 = vmul.f32 %v1912, %v1912
      %v1989 = vmul.f32 %v1917, %v1917
      %v1990 = vmul.f32 %v1920, %v1920
      %v1991 = vmul.f32 %v1925, %v1925
      %v1992 = vmul.f32 %v1928, %v1928
      %v1993 = vadd.f32 %v1985, %v1986
      %v1994 = vadd.f32 %v1993, %v1987
      %v1995 = vadd.f32 %v1994, %v1988
      %v1996 = vadd.f32 %v1995, %v1989
      %v1997 = vadd.f32 %v1996, %v1990
      %v1998 = vadd.f32 %v1997, %v1991
      %v1999 = vadd.f32 %v1998, %v1992
      %v2000 = vrot.slane %v1999, 4
      %v2001 = vadd.f32 %v1999, %v2000
      %v2002 = vrot.slane %v2001, 2
      %v2003 = vadd.f32 %v2001, %v2002
      %v2004 = vrot.slane %v2003, 1
      %v2005 = vadd.f32 %v2003, %v2004
      %2006 = vst [vmem:[%s651 + $0x1] sm:$0x1] %v2005
      %v2007 = vld [vmem:[%s10] sm:$0xf]
      %v2008 = vld [vmem:[%s10 + $0x4] sm:$0xf]
      %v2009 = vld [vmem:[%s10 + $0x8] sm:$0xf]
      %v2010 = vld [vmem:[%s10 + $0xc] sm:$0xf]
      %v2011 = vld [vmem:[%s10 + $0x10] sm:$0xf]
      %v2012 = vld [vmem:[%s10 + $0x14] sm:$0xf]
      %v2013 = vld [vmem:[%s10 + $0x18] sm:$0xf]
      %v2014 = vld [vmem:[%s10 + $0x1c] sm:$0xf]
      %v2015 = vld [vmem:[%s10 + $0x20] sm:$0xf]
      %v2016 = vld [vmem:[%s10 + $0x24] sm:$0xf]
      %v2017 = vld [vmem:[%s10 + $0x28] sm:$0xf]
      %v2018 = vld [vmem:[%s10 + $0x2c] sm:$0xf]
      %v2019 = vld [vmem:[%s10 + $0x30] sm:$0xf]
      %v2020 = vld [vmem:[%s10 + $0x34] sm:$0xf]
      %v2021 = vld [vmem:[%s10 + $0x38] sm:$0xf]
      %v2022 = vld [vmem:[%s10 + $0x3c] sm:$0xf]
      %v2039 = vunpack.c.l.b16 %v2007
      %v2040 = vunpack.c.l.b16 %v2008
      %v2041 = vunpack.c.l.b16 %v2009
      %v2042 = vunpack.c.l.b16 %v2010
      %v2043 = vunpack.c.l.b16 %v2011
      %v2044 = vunpack.c.l.b16 %v2012
      %v2045 = vunpack.c.l.b16 %v2013
      %v2046 = vunpack.c.l.b16 %v2014
      %v2047 = vunpack.c.l.b16 %v2015
      %v2048 = vunpack.c.l.b16 %v2016
      %v2049 = vunpack.c.l.b16 %v2017
      %v2050 = vunpack.c.l.b16 %v2018
      %v2051 = vunpack.c.l.b16 %v2019
      %v2052 = vunpack.c.l.b16 %v2020
      %v2053 = vunpack.c.l.b16 %v2021
      %v2054 = vunpack.c.l.b16 %v2022
      %v2055 = vpack.c.b16 %v2040, %v2039
      %v2056 = vpack.c.b16 %v2042, %v2041
      %v2057 = vpack.c.b16 %v2044, %v2043
      %v2058 = vpack.c.b16 %v2046, %v2045
      %v2059 = vpack.c.b16 %v2048, %v2047
      %v2060 = vpack.c.b16 %v2050, %v2049
      %v2061 = vpack.c.b16 %v2052, %v2051
      %v2062 = vpack.c.b16 %v2054, %v2053
      %2071 = vmatprep.subr.bf16.mxu0 0
      %2072 = vmatpush1.bf16.msra.mxu0 %v2062
      %2073 = vmatprep.subr.bf16.mxu0 0
      %2074 = vmatpush1.bf16.msra.mxu0 %v2061
      %2075 = vmatprep.subr.bf16.mxu0 0
      %2076 = vmatpush1.bf16.msra.mxu0 %v2060
      %2077 = vmatprep.subr.bf16.mxu0 0
      %2078 = vmatpush1.bf16.msra.mxu0 %v2059
      %2079 = vmatprep.subr.bf16.mxu0 0
      %2080 = vmatpush1.bf16.msra.mxu0 %v2058
      %2081 = vmatprep.subr.bf16.mxu0 0
      %2082 = vmatpush1.bf16.msra.mxu0 %v2057
      %2083 = vmatprep.subr.bf16.mxu0 0
      %2084 = vmatpush1.bf16.msra.mxu0 %v2056
      %2085 = vmatprep.subr.bf16.mxu0 0
      %2086 = vmatpush1.bf16.msra.mxu0 %v2055
      %2087 = vmatprep.subr.bf16.mxu0 0
      %2088 = vmatpush2.bf16.msra.mxu0 0
      %2089 = vmatprep.subr.bf16.mxu0 0
      %2090 = vmatpush2.bf16.msra.mxu0 0
      %2091 = vmatprep.subr.bf16.mxu0 0
      %2092 = vmatpush2.bf16.msra.mxu0 0
      %2093 = vmatprep.subr.bf16.mxu0 0
      %2094 = vmatpush2.bf16.msra.mxu0 0
      %2095 = vmatprep.subr.bf16.mxu0 0
      %2096 = vmatpush2.bf16.msra.mxu0 0
      %2097 = vmatprep.subr.bf16.mxu0 0
      %2098 = vmatpush2.bf16.msra.mxu0 0
      %2099 = vmatprep.subr.bf16.mxu0 0
      %2100 = vmatpush2.bf16.msra.mxu0 0
      %2101 = vmatprep.subr.bf16.mxu0 0
      %2102 = vmatpush2.bf16.msra.mxu0 0
      %2103 = vmatprep.mubr.bf16.mxu0 0
      %2104 = vmatmul.mubr.bf16.gmra.mxu0 %v1106
      %v2105 = vpop.f32.mrf.mxu0
      %v2106 = vadd.f32 0.0, %v2105
      %v2107 = vpop.f32.mrf.mxu0
      %v2108 = vpop.f32.mrf.mxu0
      %v2109 = vadd.f32 0.0, %v2108
      %v2110 = vpop.f32.mrf.mxu0
      %2111 = vmatprep.mubr.bf16.mxu0 0
      %2112 = vmatmul.mubr.bf16.gmra.mxu0 %v1115
      %v2113 = vpop.f32.mrf.mxu0
      %v2114 = vadd.f32 0.0, %v2113
      %v2115 = vpop.f32.mrf.mxu0
      %v2116 = vpop.f32.mrf.mxu0
      %v2117 = vadd.f32 0.0, %v2116
      %v2118 = vpop.f32.mrf.mxu0
      %2119 = vmatprep.mubr.bf16.mxu0 0
      %2120 = vmatmul.mubr.bf16.gmra.mxu0 %v1124
      %v2121 = vpop.f32.mrf.mxu0
      %v2122 = vadd.f32 0.0, %v2121
      %v2123 = vpop.f32.mrf.mxu0
      %v2124 = vpop.f32.mrf.mxu0
      %v2125 = vadd.f32 0.0, %v2124
      %v2126 = vpop.f32.mrf.mxu0
      %2127 = vmatprep.mubr.bf16.mxu0 0
      %2128 = vmatmul.mubr.bf16.gmra.mxu0 %v1133
      %v2129 = vpop.f32.mrf.mxu0
      %v2130 = vadd.f32 0.0, %v2129
      %v2131 = vpop.f32.mrf.mxu0
      %v2132 = vpop.f32.mrf.mxu0
      %v2133 = vadd.f32 0.0, %v2132
      %v2134 = vpop.f32.mrf.mxu0
      %2135 = vdwg.mxu0
      %v2136 = vpack.c.bf16 %v2109, %v2106
      %v2137 = vpack.c.bf16 %v2117, %v2114
      %v2138 = vpack.c.bf16 %v2125, %v2122
      %v2139 = vpack.c.bf16 %v2133, %v2130
      %v2144 = vunpack.c.l.b16 %v2136
      %v2145 = vunpack.c.h.b16 %v2136
      %v2146 = vunpack.c.l.b16 %v2137
      %v2147 = vunpack.c.h.b16 %v2137
      %v2148 = vunpack.c.l.b16 %v2138
      %v2149 = vunpack.c.h.b16 %v2138
      %v2150 = vunpack.c.l.b16 %v2139
      %v2151 = vunpack.c.h.b16 %v2139
      %v2152 = vpack.c.b16 %v2144, %v2144
      %v2153 = vpack.c.b16 %v2145, %v2145
      %v2154 = vpack.c.b16 %v2146, %v2146
      %v2155 = vpack.c.b16 %v2147, %v2147
      %v2156 = vpack.c.b16 %v2148, %v2148
      %v2157 = vpack.c.b16 %v2149, %v2149
      %v2158 = vpack.c.b16 %v2150, %v2150
      %v2159 = vpack.c.b16 %v2151, %v2151
      %2168 = vst [vmem:[%s656] sm:$0xf] %v2152
      %2169 = vst [vmem:[%s656 + $0x4] sm:$0xf] %v2153
      %2170 = vst [vmem:[%s656 + $0x8] sm:$0xf] %v2154
      %2171 = vst [vmem:[%s656 + $0xc] sm:$0xf] %v2155
      %2172 = vst [vmem:[%s656 + $0x10] sm:$0xf] %v2156
      %2173 = vst [vmem:[%s656 + $0x14] sm:$0xf] %v2157
      %2174 = vst [vmem:[%s656 + $0x18] sm:$0xf] %v2158
      %2175 = vst [vmem:[%s656 + $0x1c] sm:$0xf] %v2159
      %v2176 = vadd.f32 %v2106, %v2109
      %v2177 = vadd.f32 %v2176, %v2114
      %v2178 = vadd.f32 %v2177, %v2117
      %v2179 = vadd.f32 %v2178, %v2122
      %v2180 = vadd.f32 %v2179, %v2125
      %v2181 = vadd.f32 %v2180, %v2130
      %v2182 = vadd.f32 %v2181, %v2133
      %v2183 = vrot.slane %v2182, 4
      %v2184 = vadd.f32 %v2182, %v2183
      %v2185 = vrot.slane %v2184, 2
      %v2186 = vadd.f32 %v2184, %v2185
      %v2187 = vrot.slane %v2186, 1
      %v2188 = vadd.f32 %v2186, %v2187
      %2189 = vst [vmem:[%s660] sm:$0x1] %v2188
      %v2190 = vmul.f32 %v2106, %v2106
      %v2191 = vmul.f32 %v2109, %v2109
      %v2192 = vmul.f32 %v2114, %v2114
      %v2193 = vmul.f32 %v2117, %v2117
      %v2194 = vmul.f32 %v2122, %v2122
      %v2195 = vmul.f32 %v2125, %v2125
      %v2196 = vmul.f32 %v2130, %v2130
      %v2197 = vmul.f32 %v2133, %v2133
      %v2198 = vadd.f32 %v2190, %v2191
      %v2199 = vadd.f32 %v2198, %v2192
      %v2200 = vadd.f32 %v2199, %v2193
      %v2201 = vadd.f32 %v2200, %v2194
      %v2202 = vadd.f32 %v2201, %v2195
      %v2203 = vadd.f32 %v2202, %v2196
      %v2204 = vadd.f32 %v2203, %v2197
      %v2205 = vrot.slane %v2204, 4
      %v2206 = vadd.f32 %v2204, %v2205
      %v2207 = vrot.slane %v2206, 2
      %v2208 = vadd.f32 %v2206, %v2207
      %v2209 = vrot.slane %v2208, 1
      %v2210 = vadd.f32 %v2208, %v2209
      %2211 = vst [vmem:[%s660 + $0x1] sm:$0x1] %v2210
      %p2212 = scmp.lt.s32.totalorder %s26, 1
      %s2213 = scalar_select %p2212, %s26, 1
      %s2214 = smul.addr %s2213, 8
      %s2215 = smul.addr %s2214, 4
      %s2216 = scalar_lea.vmem %s11, %s2215
      %p2217 = scmp.lt.s32.totalorder %s26, 1
      %s2218 = scalar_select %p2217, %s26, 1
      %s2219 = smul.addr %s2218, 2
      %s2220 = scalar_lea.vmem %s12, %s2219
      %p2221 = scmp.lt.s32.totalorder %s26, 1
      %s2222 = scalar_select %p2221, %s26, 1
      %s2223 = smul.addr %s2222, 8
      %s2224 = smul.addr %s2223, 4
      %s2225 = scalar_lea.vmem %s13, %s2224
      %p2226 = scmp.lt.s32.totalorder %s26, 1
      %s2227 = scalar_select %p2226, %s26, 1
      %s2228 = smul.addr %s2227, 2
      %s2229 = scalar_lea.vmem %s14, %s2228
      // Predicated region
      $region65: #{_basic_block_fwd.3} parent=63 // pred_check
        %p2230 = pneg %p320
      $region66: #{_basic_block_fwd.3} parent=63 // pred_check_branch
        %2232 = sbr.rel (%p2230) target = $region68
      $region67: #{_basic_block_fwd.3} parent=63 // pred_region
        _
      $region68: #{_basic_block_fwd.3} parent=63 // pred_fallthru
        _
      // Predicated region
      $region69: #{_basic_block_fwd.3} parent=63 // pred_check
        %p2233 = pneg %p346
      $region70: #{_basic_block_fwd.3} parent=63 // pred_check_branch
        %2235 = sbr.rel (%p2233) target = $region72
      $region71: #{_basic_block_fwd.3} parent=63 // pred_region
        _
      $region72: #{_basic_block_fwd.3} parent=63 // pred_fallthru
        _
      // Predicated region
      $region73: #{_basic_block_fwd.3} parent=63 // pred_check
        %p2236 = pneg %p372
      $region74: #{_basic_block_fwd.3} parent=63 // pred_check_branch
        %2238 = sbr.rel (%p2236) target = $region76
      $region75: #{_basic_block_fwd.3} parent=63 // pred_region
        _
      $region76: #{_basic_block_fwd.3} parent=63 // pred_fallthru
        _
      // Predicated region
      $region77: #{_basic_block_fwd.3} parent=63 // pred_check
        %p2239 = pneg %p398
      $region78: #{_basic_block_fwd.3} parent=63 // pred_check_branch
        %2241 = sbr.rel (%p2239) target = $region80
      $region79: #{_basic_block_fwd.3} parent=63 // pred_region
        _
      $region80: #{_basic_block_fwd.3} parent=63 // pred_fallthru
        _
    $region64: #{_basic_block_fwd.3} parent=5 // pred_fallthru
      _
    %p2242 = scmp.le.s32.totalorder 2, %s21
    // Predicated region
    $region81: #{_basic_block_fwd.3} parent=5 // pred_check
      %p2243 = pneg %p2242
    $region82: #{_basic_block_fwd.3} parent=5 // pred_check_branch
      %2245 = sbr.rel (%p2243) target = $region84
    $region83: #{_basic_block_fwd.3} parent=5 // pred_region
      %s2246 = ssub.s32 %s21, 2
      // Predicated region
      $region85: #{_basic_block_fwd.3} parent=83 // pred_check
        %p2247 = pneg %p326
      $region86: #{_basic_block_fwd.3} parent=83 // pred_check_branch
        %2249 = sbr.rel (%p2247) target = $region88
      $region87: #{_basic_block_fwd.3} parent=83 // pred_region
        %p2250 = scmp.lt.s32.totalorder %s27, 1
        %s2251 = scalar_select %p2250, %s27, 1
        %s2252 = smul.addr %s2251, 8
        %s2253 = smul.addr %s2252, 4
        %s2254 = scalar_lea.vmem %s11, %s2253
      $region88: #{_basic_block_fwd.3} parent=83 // pred_fallthru
        _
      // Predicated region
      $region89: #{_basic_block_fwd.3} parent=83 // pred_check
        %p2255 = pneg %p352
      $region90: #{_basic_block_fwd.3} parent=83 // pred_check_branch
        %2257 = sbr.rel (%p2255) target = $region92
      $region91: #{_basic_block_fwd.3} parent=83 // pred_region
        %p2258 = scmp.lt.s32.totalorder %s27, 1
        %s2259 = scalar_select %p2258, %s27, 1
        %s2260 = smul.addr %s2259, 2
        %s2261 = scalar_lea.vmem %s12, %s2260
      $region92: #{_basic_block_fwd.3} parent=83 // pred_fallthru
        _
      // Predicated region
      $region93: #{_basic_block_fwd.3} parent=83 // pred_check
        %p2262 = pneg %p378
      $region94: #{_basic_block_fwd.3} parent=83 // pred_check_branch
        %2264 = sbr.rel (%p2262) target = $region96
      $region95: #{_basic_block_fwd.3} parent=83 // pred_region
        %p2265 = scmp.lt.s32.totalorder %s27, 1
        %s2266 = scalar_select %p2265, %s27, 1
        %s2267 = smul.addr %s2266, 8
        %s2268 = smul.addr %s2267, 4
        %s2269 = scalar_lea.vmem %s13, %s2268
      $region96: #{_basic_block_fwd.3} parent=83 // pred_fallthru
        _
      // Predicated region
      $region97: #{_basic_block_fwd.3} parent=83 // pred_check
        %p2270 = pneg %p404
      $region98: #{_basic_block_fwd.3} parent=83 // pred_check_branch
        %2272 = sbr.rel (%p2270) target = $region100
      $region99: #{_basic_block_fwd.3} parent=83 // pred_region
        %p2273 = scmp.lt.s32.totalorder %s27, 1
        %s2274 = scalar_select %p2273, %s27, 1
        %s2275 = smul.addr %s2274, 2
        %s2276 = scalar_lea.vmem %s14, %s2275
      $region100: #{_basic_block_fwd.3} parent=83 // pred_fallthru
        _
    $region84: #{_basic_block_fwd.3} parent=5 // pred_fallthru
      _
  $region6: #{_basic_block_fwd.3} parent=0 // loop_footer
    %s25 = sadd.s32 1, %s21
  $region7: #{_basic_block_fwd.3} parent=0 // loop_footer_branch
    %20 = sbr.rel target = $region3
  $region8: #{_basic_block_fwd.3} parent=0 // loop_exit
    _

// kernel: _basic_block_fwd.4
$region0: #{_basic_block_fwd.4}
  #allocation0 [shape = 'u32[]', space=smem, size = 0x4, offset = 0x4, fixed_abs, tag = 'smem constant byte address 0x4 - core index']
  #allocation1 [shape = 'u32[144,128]{1,0:T(1,128)}', space=vmem, size = 0x12000, scoped, tag = 'internal scratch']
  #allocation2 [shape = 'bf16[8,8,1152]{2,1,0:T(8,128)(2,1)}', space=vmem, size = 0x24000, scoped, tag = 'scratch operand']
  %s0 = inlined_call_operand.vmem [shape: bf16[2,64,128], index: 0, kind: input, shape index: {}]
  %s1 = inlined_call_operand.vmem [shape: f32[2,128], index: 1, kind: input, shape index: {}]
  %s2 = inlined_call_operand.vmem [shape: bf16[1152,128], index: 2, kind: input, shape index: {}]
  %s3 = inlined_call_operand.vmem [shape: f32[2,64,128], index: 3, kind: output, shape index: {0}]
  %s4 = inlined_call_operand.vmem [shape: f32[2,2,128], index: 4, kind: output, shape index: {1}]
  %5 = xla_tuple %s3, %s4
  %s6 = sld [smem:[#allocation0]]
  $region53: #{_basic_block_fwd.4} parent=0
    _
  %s8 = ssub.s32 1, %s6
  %s9 = scalar_select 0, %s8, %s6
  loop: start=0, step=1, limit=4
  $region2: #{_basic_block_fwd.4} parent=0 // loop_pre_header
    _
  $region3: #{_basic_block_fwd.4} parent=0 // loop_header
    %s11 = sphi 0, %s15
    %p12 = scmp.ge.s32.totalorder %s11, 4
    %s21 = sphi 0, %s23
    %s24 = sphi 0, %s21
    %s25 = sphi 0, %s24
    %s41 = sphi 0, %s25
    %s45 = sphi 0, %s45
    %s47 = sphi 0, %s45
    %s48 = sphi 0, %s47
    %s62 = sphi 0, %s48
    %s66 = sphi 0, %s66
    %s68 = sphi 0, %s66
    %s69 = sphi 0, %s68
    %s83 = sphi 0, %s69
    %s89 = sphi 0, %s91
    %s92 = sphi 0, %s89
    %s93 = sphi 0, %s92
    %s109 = sphi 0, %s93
    %s115 = sphi 0, %s117
    %s118 = sphi 0, %s115
    %s119 = sphi 0, %s118
    %s135 = sphi 0, %s119
  $region4: #{_basic_block_fwd.4} parent=0 // loop_header_branch
    %14 = sbr.rel (%p12) target = $region8
  $region5: #{_basic_block_fwd.4} parent=0 // loop_body
    %s16 = ssub.s32 %s11, 1
    %s17 = ssub.s32 %s11, 2
    %s18 = sadd.s32 %s11, 1
    %s19 = ssub.s32 %s11, %s18
    %p20 = scmp.eq.s32.totalorder %s19, 0
    %s22 = sadd.s32 %s21, 1
    %s23 = scalar_select %p20, %s21, %s22
    %p26 = pneg %p20
    %p27 = scmp.eq.s32.totalorder %s11, 1
    %p28 = por %p26, %p27
    %p29 = scmp.ne.s32.totalorder %s21, %s24
    %p30 = scmp.eq.s32.totalorder %s11, 0
    %p31 = por %p29, %p30
    %p32 = scmp.ne.s32.totalorder %s21, %s24
    %p33 = scmp.eq.s32.totalorder %s16, 1
    %p34 = por %p32, %p33
    %p35 = scmp.ne.s32.totalorder %s24, %s25
    %p36 = scmp.eq.s32.totalorder %s16, 0
    %p37 = por %p35, %p36
    %p38 = scmp.ne.s32.totalorder %s24, %s25
    %p39 = scmp.eq.s32.totalorder %s17, 1
    %p40 = por %p38, %p39
    %p42 = scmp.ne.s32.totalorder %s25, %s41
    %p43 = scmp.eq.s32.totalorder %s17, 0
    %p44 = por %p42, %p43
    %s46 = sadd.s32 %s45, 1
    %p49 = scmp.eq.s32.totalorder %s11, 1
    %p50 = scmp.ne.s32.totalorder %s45, %s47
    %p51 = scmp.eq.s32.totalorder %s11, 0
    %p52 = por %p50, %p51
    %p53 = scmp.ne.s32.totalorder %s45, %s47
    %p54 = scmp.eq.s32.totalorder %s16, 1
    %p55 = por %p53, %p54
    %p56 = scmp.ne.s32.totalorder %s47, %s48
    %p57 = scmp.eq.s32.totalorder %s16, 0
    %p58 = por %p56, %p57
    %p59 = scmp.ne.s32.totalorder %s47, %s48
    %p60 = scmp.eq.s32.totalorder %s17, 1
    %p61 = por %p59, %p60
    %p63 = scmp.ne.s32.totalorder %s48, %s62
    %p64 = scmp.eq.s32.totalorder %s17, 0
    %p65 = por %p63, %p64
    %s67 = sadd.s32 %s66, 1
    %p70 = scmp.eq.s32.totalorder %s11, 1
    %p71 = scmp.ne.s32.totalorder %s66, %s68
    %p72 = scmp.eq.s32.totalorder %s11, 0
    %p73 = por %p71, %p72
    %p74 = scmp.ne.s32.totalorder %s66, %s68
    %p75 = scmp.eq.s32.totalorder %s16, 1
    %p76 = por %p74, %p75
    %p77 = scmp.ne.s32.totalorder %s68, %s69
    %p78 = scmp.eq.s32.totalorder %s16, 0
    %p79 = por %p77, %p78
    %p80 = scmp.ne.s32.totalorder %s68, %s69
    %p81 = scmp.eq.s32.totalorder %s17, 1
    %p82 = por %p80, %p81
    %p84 = scmp.ne.s32.totalorder %s69, %s83
    %p85 = scmp.eq.s32.totalorder %s17, 0
    %p86 = por %p84, %p85
    %s87 = ssub.s32 %s11, %s18
    %p88 = scmp.eq.s32.totalorder %s87, 0
    %s90 = sadd.s32 %s89, 1
    %s91 = scalar_select %p88, %s89, %s90
    %p94 = pneg %p88
    %p95 = scmp.eq.s32.totalorder %s11, 1
    %p96 = por %p94, %p95
    %p97 = scmp.ne.s32.totalorder %s89, %s92
    %p98 = scmp.eq.s32.totalorder %s11, 0
    %p99 = por %p97, %p98
    %p100 = scmp.ne.s32.totalorder %s89, %s92
    %p101 = scmp.eq.s32.totalorder %s16, 1
    %p102 = por %p100, %p101
    %p103 = scmp.ne.s32.totalorder %s92, %s93
    %p104 = scmp.eq.s32.totalorder %s16, 0
    %p105 = por %p103, %p104
    %p106 = scmp.ne.s32.totalorder %s92, %s93
    %p107 = scmp.eq.s32.totalorder %s17, 1
    %p108 = por %p106, %p107
    %p110 = scmp.ne.s32.totalorder %s93, %s109
    %p111 = scmp.eq.s32.totalorder %s17, 0
    %p112 = por %p110, %p111
    %s113 = ssub.s32 %s11, %s18
    %p114 = scmp.eq.s32.totalorder %s113, 0
    %s116 = sadd.s32 %s115, 1
    %s117 = scalar_select %p114, %s115, %s116
    %p120 = pneg %p114
    %p121 = scmp.eq.s32.totalorder %s11, 1
    %p122 = por %p120, %p121
    %p123 = scmp.ne.s32.totalorder %s115, %s118
    %p124 = scmp.eq.s32.totalorder %s11, 0
    %p125 = por %p123, %p124
    %p126 = scmp.ne.s32.totalorder %s115, %s118
    %p127 = scmp.eq.s32.totalorder %s16, 1
    %p128 = por %p126, %p127
    %p129 = scmp.ne.s32.totalorder %s118, %s119
    %p130 = scmp.eq.s32.totalorder %s16, 0
    %p131 = por %p129, %p130
    %p132 = scmp.ne.s32.totalorder %s118, %s119
    %p133 = scmp.eq.s32.totalorder %s17, 1
    %p134 = por %p132, %p133
    %p136 = scmp.ne.s32.totalorder %s119, %s135
    %p137 = scmp.eq.s32.totalorder %s17, 0
    %p138 = por %p136, %p137
    %p139 = scmp.le.s32.totalorder 1, %s11
    %p140 = scmp.lt.s32.totalorder %s11, 3
    %p141 = pnand %p139, %p140
    %p142 = pneg %p141
    // Predicated region
    $region9: #{_basic_block_fwd.4} parent=5 // pred_check
      _
    $region10: #{_basic_block_fwd.4} parent=5 // pred_check_branch
      %144 = sbr.rel (%p141) target = $region12
    $region11: #{_basic_block_fwd.4} parent=5 // pred_region
      %s145 = ssub.s32 %s11, 1
      // Predicated region
      $region13: #{_basic_block_fwd.4} parent=11 // pred_check
        %p146 = pneg %p58
      $region14: #{_basic_block_fwd.4} parent=11 // pred_check_branch
        %148 = sbr.rel (%p146) target = $region16
      $region15: #{_basic_block_fwd.4} parent=11 // pred_region
        _
      $region16: #{_basic_block_fwd.4} parent=11 // pred_fallthru
        _
      // Predicated region
      $region17: #{_basic_block_fwd.4} parent=11 // pred_check
        %p149 = pneg %p79
      $region18: #{_basic_block_fwd.4} parent=11 // pred_check_branch
        %151 = sbr.rel (%p149) target = $region20
      $region19: #{_basic_block_fwd.4} parent=11 // pred_region
        _
      $region20: #{_basic_block_fwd.4} parent=11 // pred_fallthru
        _
    $region12: #{_basic_block_fwd.4} parent=5 // pred_fallthru
      _
    %p152 = scmp.lt.s32.totalorder %s11, 2
    // Predicated region
    $region21: #{_basic_block_fwd.4} parent=5 // pred_check
      %p153 = pneg %p152
    $region22: #{_basic_block_fwd.4} parent=5 // pred_check_branch
      %155 = sbr.rel (%p153) target = $region24
    $region23: #{_basic_block_fwd.4} parent=5 // pred_region
      // Predicated region
      $region25: #{_basic_block_fwd.4} parent=23 // pred_check
        %p156 = pneg %p31
      $region26: #{_basic_block_fwd.4} parent=23 // pred_check_branch
        %158 = sbr.rel (%p156) target = $region28
      $region27: #{_basic_block_fwd.4} parent=23 // pred_region
        %p159 = scmp.lt.s32.totalorder %s11, 1
        %s160 = scalar_select %p159, %s11, 1
        %s161 = smul.addr %s160, 8
        %s162 = smul.addr %s161, 4
        %s163 = scalar_lea.vmem %s0, %s162
      $region28: #{_basic_block_fwd.4} parent=23 // pred_fallthru
        _
    $region24: #{_basic_block_fwd.4} parent=5 // pred_fallthru
      _
    %p164 = scmp.le.s32.totalorder 1, %s11
    %p165 = scmp.lt.s32.totalorder %s11, 3
    %p166 = pnand %p164, %p165
    %p167 = pneg %p166
    // Predicated region
    $region29: #{_basic_block_fwd.4} parent=5 // pred_check
      _
    $region30: #{_basic_block_fwd.4} parent=5 // pred_check_branch
      %169 = sbr.rel (%p166) target = $region32
    $region31: #{_basic_block_fwd.4} parent=5 // pred_region
      %s170 = ssub.s32 %s11, 1
      %p171 = scmp.lt.s32.totalorder %s16, 1
      %s172 = scalar_select %p171, %s16, 1
      %s173 = smul.addr %s172, 8
      %s174 = smul.addr %s173, 4
      %s175 = scalar_lea.vmem %s0, %s174
      %p176 = pneg %p37
      %p177 = pneg %p34
      %p178 = pneg %p58
      %p179 = pneg %p55
      %p180 = pneg %p79
      %p181 = pneg %p76
      %p182 = pneg %p105
      %p183 = pneg %p102
      %p184 = scmp.lt.s32.totalorder %s16, 1
      %s185 = scalar_select %p184, %s16, 1
      %s186 = smul.addr %s185, 8
      %s187 = smul.addr %s186, 8
      %s188 = scalar_lea.vmem %s3, %s187
      %p189 = pneg %p131
      %p190 = pneg %p128
      %p191 = scmp.lt.s32.totalorder %s16, 1
      %s192 = scalar_select %p191, %s16, 1
      %s193 = smul.addr %s192, 2
      %s194 = scalar_lea.vmem %s4, %s193
      %p195 = scmp.lt.s32.totalorder %s16, 1
      %s196 = scalar_select %p195, %s16, 1
      %s197 = smul.addr %s196, 8
      %s198 = smul.addr %s197, 4
      %s199 = scalar_lea.vmem %s0, %s198
      %p200 = scmp.lt.s32.totalorder %s16, 1
      %s201 = scalar_select %p200, %s16, 1
      %s202 = smul.addr %s201, 8
      %s203 = smul.addr %s202, 8
      %s204 = scalar_lea.vmem %s3, %s203
      %p205 = scmp.lt.s32.totalorder %s16, 1
      %s206 = scalar_select %p205, %s16, 1
      %s207 = smul.addr %s206, 2
      %s208 = scalar_lea.vmem %s4, %s207
      %v210 = vld [vmem:[%s1] sm:$0x1]
      %v211 = vld [vmem:[%s1 + $0x1] sm:$0x1]
      %v212 = vld [vmem:[%s199] sm:$0xf]
      %v213 = vld [vmem:[%s199 + $0x4] sm:$0xf]
      %v214 = vld [vmem:[%s199 + $0x8] sm:$0xf]
      %v215 = vld [vmem:[%s199 + $0xc] sm:$0xf]
      %v216 = vld [vmem:[%s199 + $0x10] sm:$0xf]
      %v217 = vld [vmem:[%s199 + $0x14] sm:$0xf]
      %v218 = vld [vmem:[%s199 + $0x18] sm:$0xf]
      %v219 = vld [vmem:[%s199 + $0x1c] sm:$0xf]
      %v220 = vunpack.c.l.bf16 %v212
      %v221 = vunpack.c.l.bf16 %v213
      %v222 = vunpack.c.l.bf16 %v214
      %v223 = vunpack.c.l.bf16 %v215
      %v224 = vunpack.c.l.bf16 %v216
      %v225 = vunpack.c.l.bf16 %v217
      %v226 = vunpack.c.l.bf16 %v218
      %v227 = vunpack.c.l.bf16 %v219
      %v228 = vlaneseq
      %v229 = vshrl.u32 %v228, 7
      %v230 = vsub.s32 0, %v229
      %v231 = vrot.slane %v210, %v230
      %v232 = vmul.f32 %v220, %v231
      %v233 = vmul.f32 %v221, %v231
      %v234 = vmul.f32 %v222, %v231
      %v235 = vmul.f32 %v223, %v231
      %v236 = vmul.f32 %v224, %v231
      %v237 = vmul.f32 %v225, %v231
      %v238 = vmul.f32 %v226, %v231
      %v239 = vmul.f32 %v227, %v231
      %v240 = vlaneseq
      %v241 = vshrl.u32 %v240, 7
      %v242 = vsub.s32 0, %v241
      %v243 = vrot.slane %v211, %v242
      %v244 = vadd.f32 %v232, %v243
      %v245 = vadd.f32 %v233, %v243
      %v246 = vadd.f32 %v234, %v243
      %v247 = vadd.f32 %v235, %v243
      %v248 = vadd.f32 %v236, %v243
      %v249 = vadd.f32 %v237, %v243
      %v250 = vadd.f32 %v238, %v243
      %v251 = vadd.f32 %v239, %v243
      %v252 = vmax.f32 %v244, 0.0
      %v253 = vmax.f32 %v245, 0.0
      %v254 = vmax.f32 %v246, 0.0
      %v255 = vmax.f32 %v247, 0.0
      %v256 = vmax.f32 %v248, 0.0
      %v257 = vmax.f32 %v249, 0.0
      %v258 = vmax.f32 %v250, 0.0
      %v259 = vmax.f32 %v251, 0.0
      %v260 = vpack.c.bf16 %v252, %v252
      %v261 = vpack.c.bf16 %v253, %v253
      %v262 = vpack.c.bf16 %v254, %v254
      %v263 = vpack.c.bf16 %v255, %v255
      %v264 = vpack.c.bf16 %v256, %v256
      %v265 = vpack.c.bf16 %v257, %v257
      %v266 = vpack.c.bf16 %v258, %v258
      %v267 = vpack.c.bf16 %v259, %v259
      %268 = vst [vmem:[#allocation2] sm:$0xf] 0
      %vm269 = vcmask 1040384
      %vm270 = vsmask.f32 256
      %vm271 = vmand %vm269, %vm270
      %v272 = vld [vmem:[#allocation2] sm:$0x1]
      %v273 = vsel %vm271, 0, %v272
      %274 = vst [vmem:[#allocation2] sm:$0x1] %v273
      %v275 = vld [vmem:[#allocation2 + $0x24] sm:$0x1]
      %v276 = vsel %vm271, 0, %v275
      %277 = vst [vmem:[#allocation2 + $0x24] sm:$0x1] %v276
      %v278 = vld [vmem:[#allocation2 + $0x48] sm:$0x1]
      %v279 = vsel %vm271, 0, %v278
      %280 = vst [vmem:[#allocation2 + $0x48] sm:$0x1] %v279
      %v281 = vld [vmem:[#allocation2 + $0x6c] sm:$0x1]
      %v282 = vsel %vm271, 0, %v281
      %283 = vst [vmem:[#allocation2 + $0x6c] sm:$0x1] %v282
      %v284 = vld [vmem:[#allocation2 + $0x90] sm:$0x1]
      %v285 = vsel %vm271, 0, %v284
      %286 = vst [vmem:[#allocation2 + $0x90] sm:$0x1] %v285
      %v287 = vld [vmem:[#allocation2 + $0xb4] sm:$0x1]
      %v288 = vsel %vm271, 0, %v287
      %289 = vst [vmem:[#allocation2 + $0xb4] sm:$0x1] %v288
      %v290 = vld [vmem:[#allocation2 + $0xd8] sm:$0x1]
      %v291 = vsel %vm271, 0, %v290
      %292 = vst [vmem:[#allocation2 + $0xd8] sm:$0x1] %v291
      %v293 = vld [vmem:[#allocation2 + $0xfc] sm:$0x1]
      %v294 = vsel %vm271, 0, %v293
      %295 = vst [vmem:[#allocation2 + $0xfc] sm:$0x1] %v294
      %v303 = vunpack.c.l.b16 %v260
      %v304 = vunpack.c.l.b16 %v261
      %v305 = vunpack.c.l.b16 %v262
      %v306 = vunpack.c.l.b16 %v263
      %v307 = vunpack.c.l.b16 %v264
      %v308 = vunpack.c.l.b16 %v265
      %v309 = vunpack.c.l.b16 %v266
      %v310 = vpack.c.b16 %v303, %v303
      %v311 = vpack.c.b16 %v304, %v304
      %v312 = vpack.c.b16 %v305, %v305
      %v313 = vpack.c.b16 %v306, %v306
      %v314 = vpack.c.b16 %v307, %v307
      %v315 = vpack.c.b16 %v308, %v308
      %v316 = vpack.c.b16 %v309, %v309
      %v318 = vshrl.u32 %v310, 16
      %v320 = vrot.slane %v318, 7
      %v321 = vshll.u32 %v310, 16
      %v323 = vor.u32 %v320, %v321
      %v325 = vshrl.u32 %v311, 16
      %v327 = vrot.slane %v325, 7
      %v328 = vshll.u32 %v311, 16
      %v330 = vor.u32 %v327, %v328
      %v332 = vshrl.u32 %v312, 16
      %v334 = vrot.slane %v332, 7
      %v335 = vshll.u32 %v312, 16
      %v337 = vor.u32 %v334, %v335
      %v339 = vshrl.u32 %v313, 16
      %v341 = vrot.slane %v339, 7
      %v342 = vshll.u32 %v313, 16
      %v344 = vor.u32 %v341, %v342
      %v346 = vshrl.u32 %v314, 16
      %v348 = vrot.slane %v346, 7
      %v349 = vshll.u32 %v314, 16
      %v351 = vor.u32 %v348, %v349
      %v353 = vshrl.u32 %v315, 16
      %v355 = vrot.slane %v353, 7
      %v356 = vshll.u32 %v315, 16
      %v358 = vor.u32 %v355, %v356
      %v360 = vshrl.u32 %v316, 16
      %v362 = vrot.slane %v360, 7
      %v363 = vshll.u32 %v316, 16
      %v365 = vor.u32 %v362, %v363
      %s373 = scalar_lea.vmem [#allocation2], 36
      %vm374 = vcmask 1043456
      %vm375 = vsmask.f32 7938
      %vm376 = vmand %vm374, %vm375
      %v377 = vld [vmem:[%s373] sm:$0xf]
      %v378 = vsel %vm376, %v323, %v377
      %379 = vst [vmem:[%s373] sm:$0xf] %v378
      %v380 = vld [vmem:[%s373 + $0x24] sm:$0xf]
      %v381 = vsel %vm376, %v330, %v380
      %382 = vst [vmem:[%s373 + $0x24] sm:$0xf] %v381
      %v383 = vld [vmem:[%s373 + $0x48] sm:$0xf]
      %v384 = vsel %vm376, %v337, %v383
      %385 = vst [vmem:[%s373 + $0x48] sm:$0xf] %v384
      %v386 = vld [vmem:[%s373 + $0x6c] sm:$0xf]
      %v387 = vsel %vm376, %v344, %v386
      %388 = vst [vmem:[%s373 + $0x6c] sm:$0xf] %v387
      %v389 = vld [vmem:[%s373 + $0x90] sm:$0xf]
      %v390 = vsel %vm376, %v351, %v389
      %391 = vst [vmem:[%s373 + $0x90] sm:$0xf] %v390
      %v392 = vld [vmem:[%s373 + $0xb4] sm:$0xf]
      %v393 = vsel %vm376, %v358, %v392
      %394 = vst [vmem:[%s373 + $0xb4] sm:$0xf] %v393
      %v395 = vld [vmem:[%s373 + $0xd8] sm:$0xf]
      %v396 = vsel %vm376, %v365, %v395
      %397 = vst [vmem:[%s373 + $0xd8] sm:$0xf] %v396
      %398 = vst [vmem:[#allocation2 + $0x4] sm:$0xf] 0
      %399 = vst [vmem:[%s373 + $0x4] sm:$0xf] %v260
      %400 = vst [vmem:[%s373 + $0x28] sm:$0xf] %v261
      %401 = vst [vmem:[%s373 + $0x4c] sm:$0xf] %v262
      %402 = vst [vmem:[%s373 + $0x70] sm:$0xf] %v263
      %403 = vst [vmem:[%s373 + $0x94] sm:$0xf] %v264
      %404 = vst [vmem:[%s373 + $0xb8] sm:$0xf] %v265
      %405 = vst [vmem:[%s373 + $0xdc] sm:$0xf] %v266
      %406 = vst [vmem:[#allocation2 + $0x8] sm:$0xf] 0
      %vm407 = vcmask 1043459
      %vm408 = vsmask.f32 7950
      %vm409 = vmand %vm407, %vm408
      %v410 = vld [vmem:[#allocation2 + $0x8] sm:$0x8]
      %v411 = vsel %vm409, 0, %v410
      %412 = vst [vmem:[#allocation2 + $0x8] sm:$0x8] %v411
      %v413 = vld [vmem:[#allocation2 + $0x2c] sm:$0x8]
      %v414 = vsel %vm409, 0, %v413
      %415 = vst [vmem:[#allocation2 + $0x2c] sm:$0x8] %v414
      %v416 = vld [vmem:[#allocation2 + $0x50] sm:$0x8]
      %v417 = vsel %vm409, 0, %v416
      %418 = vst [vmem:[#allocation2 + $0x50] sm:$0x8] %v417
      %v419 = vld [vmem:[#allocation2 + $0x74] sm:$0x8]
      %v420 = vsel %vm409, 0, %v419
      %421 = vst [vmem:[#allocation2 + $0x74] sm:$0x8] %v420
      %v422 = vld [vmem:[#allocation2 + $0x98] sm:$0x8]
      %v423 = vsel %vm409, 0, %v422
      %424 = vst [vmem:[#allocation2 + $0x98] sm:$0x8] %v423
      %v425 = vld [vmem:[#allocation2 + $0xbc] sm:$0x8]
      %v426 = vsel %vm409, 0, %v425
      %427 = vst [vmem:[#allocation2 + $0xbc] sm:$0x8] %v426
      %v428 = vld [vmem:[#allocation2 + $0xe0] sm:$0x8]
      %v429 = vsel %vm409, 0, %v428
      %430 = vst [vmem:[#allocation2 + $0xe0] sm:$0x8] %v429
      %v431 = vld [vmem:[#allocation2 + $0x104] sm:$0x8]
      %v432 = vsel %vm409, 0, %v431
      %433 = vst [vmem:[#allocation2 + $0x104] sm:$0x8] %v432
      %v434 = vrot.slane %v318, 4
      %v435 = vrot.slane %v321, 5
      %v436 = vor.u32 %v434, %v435
      %v437 = vrot.slane %v436, 4
      %v438 = vrot.slane %v325, 4
      %v439 = vrot.slane %v328, 5
      %v440 = vor.u32 %v438, %v439
      %v441 = vrot.slane %v440, 4
      %v442 = vrot.slane %v332, 4
      %v443 = vrot.slane %v335, 5
      %v444 = vor.u32 %v442, %v443
      %v445 = vrot.slane %v444, 4
      %v446 = vrot.slane %v339, 4
      %v447 = vrot.slane %v342, 5
      %v448 = vor.u32 %v446, %v447
      %v449 = vrot.slane %v448, 4
      %v450 = vrot.slane %v346, 4
      %v451 = vrot.slane %v349, 5
      %v452 = vor.u32 %v450, %v451
      %v453 = vrot.slane %v452, 4
      %v454 = vrot.slane %v353, 4
      %v455 = vrot.slane %v356, 5
      %v456 = vor.u32 %v454, %v455
      %v457 = vrot.slane %v456, 4
      %v458 = vrot.slane %v360, 4
      %v459 = vrot.slane %v363, 5
      %v460 = vor.u32 %v458, %v459
      %v461 = vrot.slane %v460, 4
      %vm469 = vsmask.f32 3328
      %vm470 = vmand %vm374, %vm469
      %v471 = vld [vmem:[%s373 + $0x8] sm:$0xf]
      %v472 = vsel %vm470, %v437, %v471
      %473 = vst [vmem:[%s373 + $0x8] sm:$0xf] %v472
      %v474 = vld [vmem:[%s373 + $0x2c] sm:$0xf]
      %v475 = vsel %vm470, %v441, %v474
      %476 = vst [vmem:[%s373 + $0x2c] sm:$0xf] %v475
      %v477 = vld [vmem:[%s373 + $0x50] sm:$0xf]
      %v478 = vsel %vm470, %v445, %v477
      %479 = vst [vmem:[%s373 + $0x50] sm:$0xf] %v478
      %v480 = vld [vmem:[%s373 + $0x74] sm:$0xf]
      %v481 = vsel %vm470, %v449, %v480
      %482 = vst [vmem:[%s373 + $0x74] sm:$0xf] %v481
      %v483 = vld [vmem:[%s373 + $0x98] sm:$0xf]
      %v484 = vsel %vm470, %v453, %v483
      %485 = vst [vmem:[%s373 + $0x98] sm:$0xf] %v484
      %v486 = vld [vmem:[%s373 + $0xbc] sm:$0xf]
      %v487 = vsel %vm470, %v457, %v486
      %488 = vst [vmem:[%s373 + $0xbc] sm:$0xf] %v487
      %v489 = vld [vmem:[%s373 + $0xe0] sm:$0xf]
      %v490 = vsel %vm470, %v461, %v489
      %491 = vst [vmem:[%s373 + $0xe0] sm:$0xf] %v490
      %v492 = vld [vmem:[#allocation2 + $0xc] sm:$0x1]
      %v493 = vsel %vm271, 0, %v492
      %494 = vst [vmem:[#allocation2 + $0xc] sm:$0x1] %v493
      %v495 = vld [vmem:[#allocation2 + $0x30] sm:$0x1]
      %v496 = vsel %vm271, 0, %v495
      %497 = vst [vmem:[#allocation2 + $0x30] sm:$0x1] %v496
      %v498 = vld [vmem:[#allocation2 + $0x54] sm:$0x1]
      %v499 = vsel %vm271, 0, %v498
      %500 = vst [vmem:[#allocation2 + $0x54] sm:$0x1] %v499
      %v501 = vld [vmem:[#allocation2 + $0x78] sm:$0x1]
      %v502 = vsel %vm271, 0, %v501
      %503 = vst [vmem:[#allocation2 + $0x78] sm:$0x1] %v502
      %v504 = vld [vmem:[#allocation2 + $0x9c] sm:$0x1]
      %v505 = vsel %vm271, 0, %v504
      %506 = vst [vmem:[#allocation2 + $0x9c] sm:$0x1] %v505
      %v507 = vld [vmem:[#allocation2 + $0xc0] sm:$0x1]
      %v508 = vsel %vm271, 0, %v507
      %509 = vst [vmem:[#allocation2 + $0xc0] sm:$0x1] %v508
      %v510 = vld [vmem:[#allocation2 + $0xe4] sm:$0x1]
      %v511 = vsel %vm271, 0, %v510
      %512 = vst [vmem:[#allocation2 + $0xe4] sm:$0x1] %v511
      %v513 = vld [vmem:[#allocation2 + $0x108] sm:$0x1]
      %v514 = vsel %vm271, 0, %v513
      %515 = vst [vmem:[#allocation2 + $0x108] sm:$0x1] %v514
      %v517 = vunpack.c.l.b16 %v267
      %v518 = vpack.c.b16 %v517, %v517
      %v520 = vshrl.u32 %v518, 16
      %v522 = vrot.slane %v520, 7
      %v523 = vshll.u32 %v518, 16
      %v525 = vor.u32 %v522, %v523
      %v527 = vld [vmem:[#allocation2 + $0xc] sm:$0xf]
      %v528 = vsel %vm376, %v323, %v527
      %529 = vst [vmem:[#allocation2 + $0xc] sm:$0xf] %v528
      %v530 = vld [vmem:[#allocation2 + $0x30] sm:$0xf]
      %v531 = vsel %vm376, %v330, %v530
      %532 = vst [vmem:[#allocation2 + $0x30] sm:$0xf] %v531
      %v533 = vld [vmem:[#allocation2 + $0x54] sm:$0xf]
      %v534 = vsel %vm376, %v337, %v533
      %535 = vst [vmem:[#allocation2 + $0x54] sm:$0xf] %v534
      %v536 = vld [vmem:[#allocation2 + $0x78] sm:$0xf]
      %v537 = vsel %vm376, %v344, %v536
      %538 = vst [vmem:[#allocation2 + $0x78] sm:$0xf] %v537
      %v539 = vld [vmem:[#allocation2 + $0x9c] sm:$0xf]
      %v540 = vsel %vm376, %v351, %v539
      %541 = vst [vmem:[#allocation2 + $0x9c] sm:$0xf] %v540
      %v542 = vld [vmem:[#allocation2 + $0xc0] sm:$0xf]
      %v543 = vsel %vm376, %v358, %v542
      %544 = vst [vmem:[#allocation2 + $0xc0] sm:$0xf] %v543
      %v545 = vld [vmem:[#allocation2 + $0xe4] sm:$0xf]
      %v546 = vsel %vm376, %v365, %v545
      %547 = vst [vmem:[#allocation2 + $0xe4] sm:$0xf] %v546
      %v548 = vld [vmem:[#allocation2 + $0x108] sm:$0xf]
      %v549 = vsel %vm376, %v525, %v548
      %550 = vst [vmem:[#allocation2 + $0x108] sm:$0xf] %v549
      %551 = vst [vmem:[#allocation2 + $0x10] sm:$0xf] %v260
      %552 = vst [vmem:[#allocation2 + $0x34] sm:$0xf] %v261
      %553 = vst [vmem:[#allocation2 + $0x58] sm:$0xf] %v262
      %554 = vst [vmem:[#allocation2 + $0x7c] sm:$0xf] %v263
      %555 = vst [vmem:[#allocation2 + $0xa0] sm:$0xf] %v264
      %556 = vst [vmem:[#allocation2 + $0xc4] sm:$0xf] %v265
      %557 = vst [vmem:[#allocation2 + $0xe8] sm:$0xf] %v266
      %558 = vst [vmem:[#allocation2 + $0x10c] sm:$0xf] %v267
      %v559 = vld [vmem:[#allocation2 + $0x14] sm:$0x8]
      %v560 = vsel %vm409, 0, %v559
      %561 = vst [vmem:[#allocation2 + $0x14] sm:$0x8] %v560
      %v562 = vld [vmem:[#allocation2 + $0x38] sm:$0x8]
      %v563 = vsel %vm409, 0, %v562
      %564 = vst [vmem:[#allocation2 + $0x38] sm:$0x8] %v563
      %v565 = vld [vmem:[#allocation2 + $0x5c] sm:$0x8]
      %v566 = vsel %vm409, 0, %v565
      %567 = vst [vmem:[#allocation2 + $0x5c] sm:$0x8] %v566
      %v568 = vld [vmem:[#allocation2 + $0x80] sm:$0x8]
      %v569 = vsel %vm409, 0, %v568
      %570 = vst [vmem:[#allocation2 + $0x80] sm:$0x8] %v569
      %v571 = vld [vmem:[#allocation2 + $0xa4] sm:$0x8]
      %v572 = vsel %vm409, 0, %v571
      %573 = vst [vmem:[#allocation2 + $0xa4] sm:$0x8] %v572
      %v574 = vld [vmem:[#allocation2 + $0xc8] sm:$0x8]
      %v575 = vsel %vm409, 0, %v574
      %576 = vst [vmem:[#allocation2 + $0xc8] sm:$0x8] %v575
      %v577 = vld [vmem:[#allocation2 + $0xec] sm:$0x8]
      %v578 = vsel %vm409, 0, %v577
      %579 = vst [vmem:[#allocation2 + $0xec] sm:$0x8] %v578
      %v580 = vld [vmem:[#allocation2 + $0x110] sm:$0x8]
      %v581 = vsel %vm409, 0, %v580
      %582 = vst [vmem:[#allocation2 + $0x110] sm:$0x8] %v581
      %v583 = vrot.slane %v520, 4
      %v584 = vrot.slane %v523, 5
      %v585 = vor.u32 %v583, %v584
      %v586 = vrot.slane %v585, 4
      %v588 = vld [vmem:[#allocation2 + $0x14] sm:$0xf]
      %v589 = vsel %vm470, %v437, %v588
      %590 = vst [vmem:[#allocation2 + $0x14] sm:$0xf] %v589
      %v591 = vld [vmem:[#allocation2 + $0x38] sm:$0xf]
      %v592 = vsel %vm470, %v441, %v591
      %593 = vst [vmem:[#allocation2 + $0x38] sm:$0xf] %v592
      %v594 = vld [vmem:[#allocation2 + $0x5c] sm:$0xf]
      %v595 = vsel %vm470, %v445, %v594
      %596 = vst [vmem:[#allocation2 + $0x5c] sm:$0xf] %v595
      %v597 = vld [vmem:[#allocation2 + $0x80] sm:$0xf]
      %v598 = vsel %vm470, %v449, %v597
      %599 = vst [vmem:[#allocation2 + $0x80] sm:$0xf] %v598
      %v600 = vld [vmem:[#allocation2 + $0xa4] sm:$0xf]
      %v601 = vsel %vm470, %v453, %v600
      %602 = vst [vmem:[#allocation2 + $0xa4] sm:$0xf] %v601
      %v603 = vld [vmem:[#allocation2 + $0xc8] sm:$0xf]
      %v604 = vsel %vm470, %v457, %v603
      %605 = vst [vmem:[#allocation2 + $0xc8] sm:$0xf] %v604
      %v606 = vld [vmem:[#allocation2 + $0xec] sm:$0xf]
      %v607 = vsel %vm470, %v461, %v606
      %608 = vst [vmem:[#allocation2 + $0xec] sm:$0xf] %v607
      %v609 = vld [vmem:[#allocation2 + $0x110] sm:$0xf]
      %v610 = vsel %vm470, %v586, %v609
      %611 = vst [vmem:[#allocation2 + $0x110] sm:$0xf] %v610
      %s612 = scalar_lea.vmem [#allocation2], 252
      %613 = vst [vmem:[%s612 + $0x18] sm:$0xf] 0
      %v614 = vld [vmem:[#allocation2 + $0x18] sm:$0x1]
      %v615 = vsel %vm271, 0, %v614
      %616 = vst [vmem:[#allocation2 + $0x18] sm:$0x1] %v615
      %v617 = vld [vmem:[#allocation2 + $0x3c] sm:$0x1]
      %v618 = vsel %vm271, 0, %v617
      %619 = vst [vmem:[#allocation2 + $0x3c] sm:$0x1] %v618
      %v620 = vld [vmem:[#allocation2 + $0x60] sm:$0x1]
      %v621 = vsel %vm271, 0, %v620
      %622 = vst [vmem:[#allocation2 + $0x60] sm:$0x1] %v621
      %v623 = vld [vmem:[#allocation2 + $0x84] sm:$0x1]
      %v624 = vsel %vm271, 0, %v623
      %625 = vst [vmem:[#allocation2 + $0x84] sm:$0x1] %v624
      %v626 = vld [vmem:[#allocation2 + $0xa8] sm:$0x1]
      %v627 = vsel %vm271, 0, %v626
      %628 = vst [vmem:[#allocation2 + $0xa8] sm:$0x1] %v627
      %v629 = vld [vmem:[#allocation2 + $0xcc] sm:$0x1]
      %v630 = vsel %vm271, 0, %v629
      %631 = vst [vmem:[#allocation2 + $0xcc] sm:$0x1] %v630
      %v632 = vld [vmem:[#allocation2 + $0xf0] sm:$0x1]
      %v633 = vsel %vm271, 0, %v632
      %634 = vst [vmem:[#allocation2 + $0xf0] sm:$0x1] %v633
      %v635 = vld [vmem:[#allocation2 + $0x114] sm:$0x1]
      %v636 = vsel %vm271, 0, %v635
      %637 = vst [vmem:[#allocation2 + $0x114] sm:$0x1] %v636
      %v638 = vld [vmem:[#allocation2 + $0x18] sm:$0xf]
      %v639 = vsel %vm376, %v330, %v638
      %640 = vst [vmem:[#allocation2 + $0x18] sm:$0xf] %v639
      %v641 = vld [vmem:[#allocation2 + $0x3c] sm:$0xf]
      %v642 = vsel %vm376, %v337, %v641
      %643 = vst [vmem:[#allocation2 + $0x3c] sm:$0xf] %v642
      %v644 = vld [vmem:[#allocation2 + $0x60] sm:$0xf]
      %v645 = vsel %vm376, %v344, %v644
      %646 = vst [vmem:[#allocation2 + $0x60] sm:$0xf] %v645
      %v647 = vld [vmem:[#allocation2 + $0x84] sm:$0xf]
      %v648 = vsel %vm376, %v351, %v647
      %649 = vst [vmem:[#allocation2 + $0x84] sm:$0xf] %v648
      %v650 = vld [vmem:[#allocation2 + $0xa8] sm:$0xf]
      %v651 = vsel %vm376, %v358, %v650
      %652 = vst [vmem:[#allocation2 + $0xa8] sm:$0xf] %v651
      %v653 = vld [vmem:[#allocation2 + $0xcc] sm:$0xf]
      %v654 = vsel %vm376, %v365, %v653
      %655 = vst [vmem:[#allocation2 + $0xcc] sm:$0xf] %v654
      %v656 = vld [vmem:[#allocation2 + $0xf0] sm:$0xf]
      %v657 = vsel %vm376, %v525, %v656
      %658 = vst [vmem:[#allocation2 + $0xf0] sm:$0xf] %v657
      %659 = vst [vmem:[%s612 + $0x1c] sm:$0xf] 0
      %660 = vst [vmem:[#allocation2 + $0x1c] sm:$0xf] %v261
      %661 = vst [vmem:[#allocation2 + $0x40] sm:$0xf] %v262
      %662 = vst [vmem:[#allocation2 + $0x64] sm:$0xf] %v263
      %663 = vst [vmem:[#allocation2 + $0x88] sm:$0xf] %v264
      %664 = vst [vmem:[#allocation2 + $0xac] sm:$0xf] %v265
      %665 = vst [vmem:[#allocation2 + $0xd0] sm:$0xf] %v266
      %666 = vst [vmem:[#allocation2 + $0xf4] sm:$0xf] %v267
      %667 = vst [vmem:[%s612 + $0x20] sm:$0xf] 0
      %v668 = vld [vmem:[#allocation2 + $0x20] sm:$0x8]
      %v669 = vsel %vm409, 0, %v668
      %670 = vst [vmem:[#allocation2 + $0x20] sm:$0x8] %v669
      %v671 = vld [vmem:[#allocation2 + $0x44] sm:$0x8]
      %v672 = vsel %vm409, 0, %v671
      %673 = vst [vmem:[#allocation2 + $0x44] sm:$0x8] %v672
      %v674 = vld [vmem:[#allocation2 + $0x68] sm:$0x8]
      %v675 = vsel %vm409, 0, %v674
      %676 = vst [vmem:[#allocation2 + $0x68] sm:$0x8] %v675
      %v677 = vld [vmem:[#allocation2 + $0x8c] sm:$0x8]
      %v678 = vsel %vm409, 0, %v677
      %679 = vst [vmem:[#allocation2 + $0x8c] sm:$0x8] %v678
      %v680 = vld [vmem:[#allocation2 + $0xb0] sm:$0x8]
      %v681 = vsel %vm409, 0, %v680
      %682 = vst [vmem:[#allocation2 + $0xb0] sm:$0x8] %v681
      %v683 = vld [vmem:[#allocation2 + $0xd4] sm:$0x8]
      %v684 = vsel %vm409, 0, %v683
      %685 = vst [vmem:[#allocation2 + $0xd4] sm:$0x8] %v684
      %v686 = vld [vmem:[#allocation2 + $0xf8] sm:$0x8]
      %v687 = vsel %vm409, 0, %v686
      %688 = vst [vmem:[#allocation2 + $0xf8] sm:$0x8] %v687
      %v689 = vld [vmem:[#allocation2 + $0x11c] sm:$0x8]
      %v690 = vsel %vm409, 0, %v689
      %691 = vst [vmem:[#allocation2 + $0x11c] sm:$0x8] %v690
      %v692 = vld [vmem:[#allocation2 + $0x20] sm:$0xf]
      %v693 = vsel %vm470, %v441, %v692
      %694 = vst [vmem:[#allocation2 + $0x20] sm:$0xf] %v693
      %v695 = vld [vmem:[#allocation2 + $0x44] sm:$0xf]
      %v696 = vsel %vm470, %v445, %v695
      %697 = vst [vmem:[#allocation2 + $0x44] sm:$0xf] %v696
      %v698 = vld [vmem:[#allocation2 + $0x68] sm:$0xf]
      %v699 = vsel %vm470, %v449, %v698
      %700 = vst [vmem:[#allocation2 + $0x68] sm:$0xf] %v699
      %v701 = vld [vmem:[#allocation2 + $0x8c] sm:$0xf]
      %v702 = vsel %vm470, %v453, %v701
      %703 = vst [vmem:[#allocation2 + $0x8c] sm:$0xf] %v702
      %v704 = vld [vmem:[#allocation2 + $0xb0] sm:$0xf]
      %v705 = vsel %vm470, %v457, %v704
      %706 = vst [vmem:[#allocation2 + $0xb0] sm:$0xf] %v705
      %v707 = vld [vmem:[#allocation2 + $0xd4] sm:$0xf]
      %v708 = vsel %vm470, %v461, %v707
      %709 = vst [vmem:[#allocation2 + $0xd4] sm:$0xf] %v708
      %v710 = vld [vmem:[#allocation2 + $0xf8] sm:$0xf]
      %v711 = vsel %vm470, %v586, %v710
      %712 = vst [vmem:[#allocation2 + $0xf8] sm:$0xf] %v711
      %v713 = vld [vmem:[#allocation2] sm:$0xff]
      %v714 = vld [vmem:[#allocation2 + $0x8] sm:$0xff]
      %v715 = vld [vmem:[#allocation2 + $0x10] sm:$0xff]
      %v716 = vld [vmem:[#allocation2 + $0x18] sm:$0xff]
      %v717 = vld [vmem:[#allocation2 + $0x20] sm:$0xf]
      %v718 = vld [vmem:[#allocation2 + $0x24] sm:$0xff]
      %v719 = vld [vmem:[#allocation2 + $0x2c] sm:$0xff]
      %v720 = vld [vmem:[#allocation2 + $0x34] sm:$0xff]
      %v721 = vld [vmem:[#allocation2 + $0x3c] sm:$0xff]
      %v722 = vld [vmem:[#allocation2 + $0x44] sm:$0xf]
      %v723 = vld [vmem:[#allocation2 + $0x48] sm:$0xff]
      %v724 = vld [vmem:[#allocation2 + $0x50] sm:$0xff]
      %v725 = vld [vmem:[#allocation2 + $0x58] sm:$0xff]
      %v726 = vld [vmem:[#allocation2 + $0x60] sm:$0xff]
      %v727 = vld [vmem:[#allocation2 + $0x68] sm:$0xf]
      %v728 = vld [vmem:[#allocation2 + $0x6c] sm:$0xff]
      %v729 = vld [vmem:[#allocation2 + $0x74] sm:$0xff]
      %v730 = vld [vmem:[#allocation2 + $0x7c] sm:$0xff]
      %v731 = vld [vmem:[#allocation2 + $0x84] sm:$0xff]
      %v732 = vld [vmem:[#allocation2 + $0x8c] sm:$0xf]
      %v733 = vld [vmem:[#allocation2 + $0x90] sm:$0xff]
      %v734 = vld [vmem:[#allocation2 + $0x98] sm:$0xff]
      %v735 = vld [vmem:[#allocation2 + $0xa0] sm:$0xff]
      %v736 = vld [vmem:[#allocation2 + $0xa8] sm:$0xff]
      %v737 = vld [vmem:[#allocation2 + $0xb0] sm:$0xf]
      %v738 = vld [vmem:[#allocation2 + $0xb4] sm:$0xff]
      %v739 = vld [vmem:[#allocation2 + $0xbc] sm:$0xff]
      %v740 = vld [vmem:[#allocation2 + $0xc4] sm:$0xff]
      %v741 = vld [vmem:[#allocation2 + $0xcc] sm:$0xff]
      %v742 = vld [vmem:[#allocation2 + $0xd4] sm:$0xf]
      %v743 = vld [vmem:[#allocation2 + $0xd8] sm:$0xff]
      %v744 = vld [vmem:[#allocation2 + $0xe0] sm:$0xff]
      %v745 = vld [vmem:[#allocation2 + $0xe8] sm:$0xff]
      %v746 = vld [vmem:[#allocation2 + $0xf0] sm:$0xff]
      %v747 = vld [vmem:[#allocation2 + $0xf8] sm:$0xf]
      %v748 = vld [vmem:[#allocation2 + $0xfc] sm:$0xff]
      %v749 = vld [vmem:[#allocation2 + $0x104] sm:$0xff]
      %v750 = vld [vmem:[#allocation2 + $0x10c] sm:$0xff]
      %v751 = vld [vmem:[#allocation2 + $0x114] sm:$0xff]
      %v752 = vld [vmem:[#allocation2 + $0x11c] sm:$0xf]
      %v753 = vld [vmem:[%s2] sm:$0xf]
      %v754 = vld [vmem:[%s2 + $0x4] sm:$0xf]
      %v755 = vld [vmem:[%s2 + $0x8] sm:$0xf]
      %v756 = vld [vmem:[%s2 + $0xc] sm:$0xf]
      %v757 = vld [vmem:[%s2 + $0x10] sm:$0xf]
      %v758 = vld [vmem:[%s2 + $0x14] sm:$0xf]
      %v759 = vld [vmem:[%s2 + $0x18] sm:$0xf]
      %v760 = vld [vmem:[%s2 + $0x1c] sm:$0xf]
      %v761 = vld [vmem:[%s2 + $0x20] sm:$0xf]
      %v762 = vld [vmem:[%s2 + $0x24] sm:$0xf]
      %v763 = vld [vmem:[%s2 + $0x28] sm:$0xf]
      %v764 = vld [vmem:[%s2 + $0x2c] sm:$0xf]
      %v765 = vld [vmem:[%s2 + $0x30] sm:$0xf]
      %v766 = vld [vmem:[%s2 + $0x34] sm:$0xf]
      %v767 = vld [vmem:[%s2 + $0x38] sm:$0xf]
      %v768 = vld [vmem:[%s2 + $0x3c] sm:$0xf]
      %v769 = vld [vmem:[%s2 + $0x40] sm:$0xf]
      %v770 = vld [vmem:[%s2 + $0x44] sm:$0xf]
      %v771 = vld [vmem:[%s2 + $0x48] sm:$0xf]
      %v772 = vld [vmem:[%s2 + $0x4c] sm:$0xf]
      %v773 = vld [vmem:[%s2 + $0x50] sm:$0xf]
      %v774 = vld [vmem:[%s2 + $0x54] sm:$0xf]
      %v775 = vld [vmem:[%s2 + $0x58] sm:$0xf]
      %v776 = vld [vmem:[%s2 + $0x5c] sm:$0xf]
      %v777 = vld [vmem:[%s2 + $0x60] sm:$0xf]
      %v778 = vld [vmem:[%s2 + $0x64] sm:$0xf]
      %v779 = vld [vmem:[%s2 + $0x68] sm:$0xf]
      %v780 = vld [vmem:[%s2 + $0x6c] sm:$0xf]
      %v781 = vld [vmem:[%s2 + $0x70] sm:$0xf]
      %v782 = vld [vmem:[%s2 + $0x74] sm:$0xf]
      %v783 = vld [vmem:[%s2 + $0x78] sm:$0xf]
      %v784 = vld [vmem:[%s2 + $0x7c] sm:$0xf]
      %v785 = vld [vmem:[%s2 + $0x80] sm:$0xf]
      %v786 = vld [vmem:[%s2 + $0x84] sm:$0xf]
      %v787 = vld [vmem:[%s2 + $0x88] sm:$0xf]
      %v788 = vld [vmem:[%s2 + $0x8c] sm:$0xf]
      %v789 = vld [vmem:[%s2 + $0x90] sm:$0xf]
      %v790 = vld [vmem:[%s2 + $0x94] sm:$0xf]
      %v791 = vld [vmem:[%s2 + $0x98] sm:$0xf]
      %v792 = vld [vmem:[%s2 + $0x9c] sm:$0xf]
      %v793 = vld [vmem:[%s2 + $0xa0] sm:$0xf]
      %v794 = vld [vmem:[%s2 + $0xa4] sm:$0xf]
      %v795 = vld [vmem:[%s2 + $0xa8] sm:$0xf]
      %v796 = vld [vmem:[%s2 + $0xac] sm:$0xf]
      %v797 = vld [vmem:[%s2 + $0xb0] sm:$0xf]
      %v798 = vld [vmem:[%s2 + $0xb4] sm:$0xf]
      %v799 = vld [vmem:[%s2 + $0xb8] sm:$0xf]
      %v800 = vld [vmem:[%s2 + $0xbc] sm:$0xf]
      %v801 = vld [vmem:[%s2 + $0xc0] sm:$0xf]
      %v802 = vld [vmem:[%s2 + $0xc4] sm:$0xf]
      %v803 = vld [vmem:[%s2 + $0xc8] sm:$0xf]
      %v804 = vld [vmem:[%s2 + $0xcc] sm:$0xf]
      %v805 = vld [vmem:[%s2 + $0xd0] sm:$0xf]
      %v806 = vld [vmem:[%s2 + $0xd4] sm:$0xf]
      %v807 = vld [vmem:[%s2 + $0xd8] sm:$0xf]
      %v808 = vld [vmem:[%s2 + $0xdc] sm:$0xf]
      %v809 = vld [vmem:[%s2 + $0xe0] sm:$0xf]
      %v810 = vld [vmem:[%s2 + $0xe4] sm:$0xf]
      %v811 = vld [vmem:[%s2 + $0xe8] sm:$0xf]
      %v812 = vld [vmem:[%s2 + $0xec] sm:$0xf]
      %v813 = vld [vmem:[%s2 + $0xf0] sm:$0xf]
      %v814 = vld [vmem:[%s2 + $0xf4] sm:$0xf]
      %v815 = vld [vmem:[%s2 + $0xf8] sm:$0xf]
      %v816 = vld [vmem:[%s2 + $0xfc] sm:$0xf]
      %v817 = vld [vmem:[%s2 + $0x100] sm:$0xf]
      %v818 = vld [vmem:[%s2 + $0x104] sm:$0xf]
      %v819 = vld [vmem:[%s2 + $0x108] sm:$0xf]
      %v820 = vld [vmem:[%s2 + $0x10c] sm:$0xf]
      %v821 = vld [vmem:[%s2 + $0x110] sm:$0xf]
      %v822 = vld [vmem:[%s2 + $0x114] sm:$0xf]
      %v823 = vld [vmem:[%s2 + $0x118] sm:$0xf]
      %v824 = vld [vmem:[%s2 + $0x11c] sm:$0xf]
      %v825 = vld [vmem:[%s2 + $0x120] sm:$0xf]
      %v826 = vld [vmem:[%s2 + $0x124] sm:$0xf]
      %v827 = vld [vmem:[%s2 + $0x128] sm:$0xf]
      %v828 = vld [vmem:[%s2 + $0x12c] sm:$0xf]
      %v829 = vld [vmem:[%s2 + $0x130] sm:$0xf]
      %v830 = vld [vmem:[%s2 + $0x134] sm:$0xf]
      %v831 = vld [vmem:[%s2 + $0x138] sm:$0xf]
      %v832 = vld [vmem:[%s2 + $0x13c] sm:$0xf]
      %v833 = vld [vmem:[%s2 + $0x140] sm:$0xf]
      %v834 = vld [vmem:[%s2 + $0x144] sm:$0xf]
      %v835 = vld [vmem:[%s2 + $0x148] sm:$0xf]
      %v836 = vld [vmem:[%s2 + $0x14c] sm:$0xf]
      %v837 = vld [vmem:[%s2 + $0x150] sm:$0xf]
      %v838 = vld [vmem:[%s2 + $0x154] sm:$0xf]
      %v839 = vld [vmem:[%s2 + $0x158] sm:$0xf]
      %v840 = vld [vmem:[%s2 + $0x15c] sm:$0xf]
      %v841 = vld [vmem:[%s2 + $0x160] sm:$0xf]
      %v842 = vld [vmem:[%s2 + $0x164] sm:$0xf]
      %v843 = vld [vmem:[%s2 + $0x168] sm:$0xf]
      %v844 = vld [vmem:[%s2 + $0x16c] sm:$0xf]
      %v845 = vld [vmem:[%s2 + $0x170] sm:$0xf]
      %v846 = vld [vmem:[%s2 + $0x174] sm:$0xf]
      %v847 = vld [vmem:[%s2 + $0x178] sm:$0xf]
      %v848 = vld [vmem:[%s2 + $0x17c] sm:$0xf]
      %v849 = vld [vmem:[%s2 + $0x180] sm:$0xf]
      %v850 = vld [vmem:[%s2 + $0x184] sm:$0xf]
      %v851 = vld [vmem:[%s2 + $0x188] sm:$0xf]
      %v852 = vld [vmem:[%s2 + $0x18c] sm:$0xf]
      %v853 = vld [vmem:[%s2 + $0x190] sm:$0xf]
      %v854 = vld [vmem:[%s2 + $0x194] sm:$0xf]
      %v855 = vld [vmem:[%s2 + $0x198] sm:$0xf]
      %v856 = vld [vmem:[%s2 + $0x19c] sm:$0xf]
      %v857 = vld [vmem:[%s2 + $0x1a0] sm:$0xf]
      %v858 = vld [vmem:[%s2 + $0x1a4] sm:$0xf]
      %v859 = vld [vmem:[%s2 + $0x1a8] sm:$0xf]
      %v860 = vld [vmem:[%s2 + $0x1ac] sm:$0xf]
      %v861 = vld [vmem:[%s2 + $0x1b0] sm:$0xf]
      %v862 = vld [vmem:[%s2 + $0x1b4] sm:$0xf]
      %v863 = vld [vmem:[%s2 + $0x1b8] sm:$0xf]
      %v864 = vld [vmem:[%s2 + $0x1bc] sm:$0xf]
      %v865 = vld [vmem:[%s2 + $0x1c0] sm:$0xf]
      %v866 = vld [vmem:[%s2 + $0x1c4] sm:$0xf]
      %v867 = vld [vmem:[%s2 + $0x1c8] sm:$0xf]
      %v868 = vld [vmem:[%s2 + $0x1cc] sm:$0xf]
      %v869 = vld [vmem:[%s2 + $0x1d0] sm:$0xf]
      %v870 = vld [vmem:[%s2 + $0x1d4] sm:$0xf]
      %v871 = vld [vmem:[%s2 + $0x1d8] sm:$0xf]
      %v872 = vld [vmem:[%s2 + $0x1dc] sm:$0xf]
      %v873 = vld [vmem:[%s2 + $0x1e0] sm:$0xf]
      %v874 = vld [vmem:[%s2 + $0x1e4] sm:$0xf]
      %v875 = vld [vmem:[%s2 + $0x1e8] sm:$0xf]
      %v876 = vld [vmem:[%s2 + $0x1ec] sm:$0xf]
      %v877 = vld [vmem:[%s2 + $0x1f0] sm:$0xf]
      %v878 = vld [vmem:[%s2 + $0x1f4] sm:$0xf]
      %v879 = vld [vmem:[%s2 + $0x1f8] sm:$0xf]
      %v880 = vld [vmem:[%s2 + $0x1fc] sm:$0xf]
      %v881 = vld [vmem:[%s2 + $0x200] sm:$0xf]
      %v882 = vld [vmem:[%s2 + $0x204] sm:$0xf]
      %v883 = vld [vmem:[%s2 + $0x208] sm:$0xf]
      %v884 = vld [vmem:[%s2 + $0x20c] sm:$0xf]
      %v885 = vld [vmem:[%s2 + $0x210] sm:$0xf]
      %v886 = vld [vmem:[%s2 + $0x214] sm:$0xf]
      %v887 = vld [vmem:[%s2 + $0x218] sm:$0xf]
      %v888 = vld [vmem:[%s2 + $0x21c] sm:$0xf]
      %v889 = vld [vmem:[%s2 + $0x220] sm:$0xf]
      %v890 = vld [vmem:[%s2 + $0x224] sm:$0xf]
      %v891 = vld [vmem:[%s2 + $0x228] sm:$0xf]
      %v892 = vld [vmem:[%s2 + $0x22c] sm:$0xf]
      %v893 = vld [vmem:[%s2 + $0x230] sm:$0xf]
      %v894 = vld [vmem:[%s2 + $0x234] sm:$0xf]
      %v895 = vld [vmem:[%s2 + $0x238] sm:$0xf]
      %v896 = vld [vmem:[%s2 + $0x23c] sm:$0xf]
      %v937 = vunpack.c.l.b16 %v713
      %v938 = vunpack.c.h.b16 %v713
      %v939 = vunpack.c.l.b16 %v714
      %v940 = vunpack.c.h.b16 %v714
      %v941 = vunpack.c.l.b16 %v715
      %v942 = vunpack.c.h.b16 %v715
      %v943 = vunpack.c.l.b16 %v716
      %v944 = vunpack.c.h.b16 %v716
      %v945 = vunpack.c.l.b16 %v717
      %v946 = vunpack.c.l.b16 %v718
      %v947 = vunpack.c.h.b16 %v718
      %v948 = vunpack.c.l.b16 %v719
      %v949 = vunpack.c.h.b16 %v719
      %v950 = vunpack.c.l.b16 %v720
      %v951 = vunpack.c.h.b16 %v720
      %v952 = vunpack.c.l.b16 %v721
      %v953 = vunpack.c.h.b16 %v721
      %v954 = vunpack.c.l.b16 %v722
      %v955 = vunpack.c.l.b16 %v723
      %v956 = vunpack.c.h.b16 %v723
      %v957 = vunpack.c.l.b16 %v724
      %v958 = vunpack.c.h.b16 %v724
      %v959 = vunpack.c.l.b16 %v725
      %v960 = vunpack.c.h.b16 %v725
      %v961 = vunpack.c.l.b16 %v726
      %v962 = vunpack.c.h.b16 %v726
      %v963 = vunpack.c.l.b16 %v727
      %v964 = vunpack.c.l.b16 %v728
      %v965 = vunpack.c.h.b16 %v728
      %v966 = vunpack.c.l.b16 %v729
      %v967 = vunpack.c.h.b16 %v729
      %v968 = vunpack.c.l.b16 %v730
      %v969 = vunpack.c.h.b16 %v730
      %v970 = vunpack.c.l.b16 %v731
      %v971 = vunpack.c.h.b16 %v731
      %v972 = vunpack.c.l.b16 %v732
      %v973 = vunpack.c.l.b16 %v733
      %v974 = vunpack.c.h.b16 %v733
      %v975 = vunpack.c.l.b16 %v734
      %v976 = vunpack.c.h.b16 %v734
      %v977 = vunpack.c.l.b16 %v735
      %v978 = vunpack.c.h.b16 %v735
      %v979 = vunpack.c.l.b16 %v736
      %v980 = vunpack.c.h.b16 %v736
      %v981 = vunpack.c.l.b16 %v737
      %v982 = vunpack.c.l.b16 %v738
      %v983 = vunpack.c.h.b16 %v738
      %v984 = vunpack.c.l.b16 %v739
      %v985 = vunpack.c.h.b16 %v739
      %v986 = vunpack.c.l.b16 %v740
      %v987 = vunpack.c.h.b16 %v740
      %v988 = vunpack.c.l.b16 %v741
      %v989 = vunpack.c.h.b16 %v741
      %v990 = vunpack.c.l.b16 %v742
      %v991 = vunpack.c.l.b16 %v743
      %v992 = vunpack.c.h.b16 %v743
      %v993 = vunpack.c.l.b16 %v744
      %v994 = vunpack.c.h.b16 %v744
      %v995 = vunpack.c.l.b16 %v745
      %v996 = vunpack.c.h.b16 %v745
      %v997 = vunpack.c.l.b16 %v746
      %v998 = vunpack.c.h.b16 %v746
      %v999 = vunpack.c.l.b16 %v747
      %v1000 = vunpack.c.l.b16 %v748
      %v1001 = vunpack.c.h.b16 %v748
      %v1002 = vunpack.c.l.b16 %v749
      %v1003 = vunpack.c.h.b16 %v749
      %v1004 = vunpack.c.l.b16 %v750
      %v1005 = vunpack.c.h.b16 %v750
      %v1006 = vunpack.c.l.b16 %v751
      %v1007 = vunpack.c.h.b16 %v751
      %v1008 = vunpack.c.l.b16 %v752
      %v1009 = vpack.c.b16 %v946, %v937
      %v1010 = vpack.c.b16 %v947, %v938
      %v1011 = vpack.c.b16 %v948, %v939
      %v1012 = vpack.c.b16 %v949, %v940
      %v1013 = vpack.c.b16 %v950, %v941
      %v1014 = vpack.c.b16 %v951, %v942
      %v1015 = vpack.c.b16 %v952, %v943
      %v1016 = vpack.c.b16 %v953, %v944
      %v1017 = vpack.c.b16 %v954, %v945
      %v1018 = vpack.c.b16 %v964, %v955
      %v1019 = vpack.c.b16 %v965, %v956
      %v1020 = vpack.c.b16 %v966, %v957
      %v1021 = vpack.c.b16 %v967, %v958
      %v1022 = vpack.c.b16 %v968, %v959
      %v1023 = vpack.c.b16 %v969, %v960
      %v1024 = vpack.c.b16 %v970, %v961
      %v1025 = vpack.c.b16 %v971, %v962
      %v1026 = vpack.c.b16 %v972, %v963
      %v1027 = vpack.c.b16 %v982, %v973
      %v1028 = vpack.c.b16 %v983, %v974
      %v1029 = vpack.c.b16 %v984, %v975
      %v1030 = vpack.c.b16 %v985, %v976
      %v1031 = vpack.c.b16 %v986, %v977
      %v1032 = vpack.c.b16 %v987, %v978
      %v1033 = vpack.c.b16 %v988, %v979
      %v1034 = vpack.c.b16 %v989, %v980
      %v1035 = vpack.c.b16 %v990, %v981
      %v1036 = vpack.c.b16 %v1000, %v991
      %v1037 = vpack.c.b16 %v1001, %v992
      %v1038 = vpack.c.b16 %v1002, %v993
      %v1039 = vpack.c.b16 %v1003, %v994
      %v1040 = vpack.c.b16 %v1004, %v995
      %v1041 = vpack.c.b16 %v1005, %v996
      %v1042 = vpack.c.b16 %v1006, %v997
      %v1043 = vpack.c.b16 %v1007, %v998
      %v1044 = vpack.c.b16 %v1008, %v999
      %v1225 = vunpack.c.l.b16 %v753
      %v1226 = vunpack.c.l.b16 %v754
      %v1227 = vunpack.c.l.b16 %v755
      %v1228 = vunpack.c.l.b16 %v756
      %v1229 = vunpack.c.l.b16 %v757
      %v1230 = vunpack.c.l.b16 %v758
      %v1231 = vunpack.c.l.b16 %v759
      %v1232 = vunpack.c.l.b16 %v760
      %v1233 = vunpack.c.l.b16 %v761
      %v1234 = vunpack.c.l.b16 %v762
      %v1235 = vunpack.c.l.b16 %v763
      %v1236 = vunpack.c.l.b16 %v764
      %v1237 = vunpack.c.l.b16 %v765
      %v1238 = vunpack.c.l.b16 %v766
      %v1239 = vunpack.c.l.b16 %v767
      %v1240 = vunpack.c.l.b16 %v768
      %v1241 = vunpack.c.l.b16 %v769
      %v1242 = vunpack.c.l.b16 %v770
      %v1243 = vunpack.c.l.b16 %v771
      %v1244 = vunpack.c.l.b16 %v772
      %v1245 = vunpack.c.l.b16 %v773
      %v1246 = vunpack.c.l.b16 %v774
      %v1247 = vunpack.c.l.b16 %v775
      %v1248 = vunpack.c.l.b16 %v776
      %v1249 = vunpack.c.l.b16 %v777
      %v1250 = vunpack.c.l.b16 %v778
      %v1251 = vunpack.c.l.b16 %v779
      %v1252 = vunpack.c.l.b16 %v780
      %v1253 = vunpack.c.l.b16 %v781
      %v1254 = vunpack.c.l.b16 %v782
      %v1255 = vunpack.c.l.b16 %v783
      %v1256 = vunpack.c.l.b16 %v784
      %v1257 = vunpack.c.l.b16 %v785
      %v1258 = vunpack.c.l.b16 %v786
      %v1259 = vunpack.c.l.b16 %v787
      %v1260 = vunpack.c.l.b16 %v788
      %v1261 = vunpack.c.l.b16 %v789
      %v1262 = vunpack.c.l.b16 %v790
      %v1263 = vunpack.c.l.b16 %v791
      %v1264 = vunpack.c.l.b16 %v792
      %v1265 = vunpack.c.l.b16 %v793
      %v1266 = vunpack.c.l.b16 %v794
      %v1267 = vunpack.c.l.b16 %v795
      %v1268 = vunpack.c.l.b16 %v796
      %v1269 = vunpack.c.l.b16 %v797
      %v1270 = vunpack.c.l.b16 %v798
      %v1271 = vunpack.c.l.b16 %v799
      %v1272 = vunpack.c.l.b16 %v800
      %v1273 = vunpack.c.l.b16 %v801
      %v1274 = vunpack.c.l.b16 %v802
      %v1275 = vunpack.c.l.b16 %v803
      %v1276 = vunpack.c.l.b16 %v804
      %v1277 = vunpack.c.l.b16 %v805
      %v1278 = vunpack.c.l.b16 %v806
      %v1279 = vunpack.c.l.b16 %v807
      %v1280 = vunpack.c.l.b16 %v808
      %v1281 = vunpack.c.l.b16 %v809
      %v1282 = vunpack.c.l.b16 %v810
      %v1283 = vunpack.c.l.b16 %v811
      %v1284 = vunpack.c.l.b16 %v812
      %v1285 = vunpack.c.l.b16 %v813
      %v1286 = vunpack.c.l.b16 %v814
      %v1287 = vunpack.c.l.b16 %v815
      %v1288 = vunpack.c.l.b16 %v816
      %v1289 = vunpack.c.l.b16 %v817
      %v1290 = vunpack.c.l.b16 %v818
      %v1291 = vunpack.c.l.b16 %v819
      %v1292 = vunpack.c.l.b16 %v820
      %v1293 = vunpack.c.l.b16 %v821
      %v1294 = vunpack.c.l.b16 %v822
      %v1295 = vunpack.c.l.b16 %v823
      %v1296 = vunpack.c.l.b16 %v824
      %v1297 = vunpack.c.l.b16 %v825
      %v1298 = vunpack.c.l.b16 %v826
      %v1299 = vunpack.c.l.b16 %v827
      %v1300 = vunpack.c.l.b16 %v828
      %v1301 = vunpack.c.l.b16 %v829
      %v1302 = vunpack.c.l.b16 %v830
      %v1303 = vunpack.c.l.b16 %v831
      %v1304 = vunpack.c.l.b16 %v832
      %v1305 = vunpack.c.l.b16 %v833
      %v1306 = vunpack.c.l.b16 %v834
      %v1307 = vunpack.c.l.b16 %v835
      %v1308 = vunpack.c.l.b16 %v836
      %v1309 = vunpack.c.l.b16 %v837
      %v1310 = vunpack.c.l.b16 %v838
      %v1311 = vunpack.c.l.b16 %v839
      %v1312 = vunpack.c.l.b16 %v840
      %v1313 = vunpack.c.l.b16 %v841
      %v1314 = vunpack.c.l.b16 %v842
      %v1315 = vunpack.c.l.b16 %v843
      %v1316 = vunpack.c.l.b16 %v844
      %v1317 = vunpack.c.l.b16 %v845
      %v1318 = vunpack.c.l.b16 %v846
      %v1319 = vunpack.c.l.b16 %v847
      %v1320 = vunpack.c.l.b16 %v848
      %v1321 = vunpack.c.l.b16 %v849
      %v1322 = vunpack.c.l.b16 %v850
      %v1323 = vunpack.c.l.b16 %v851
      %v1324 = vunpack.c.l.b16 %v852
      %v1325 = vunpack.c.l.b16 %v853
      %v1326 = vunpack.c.l.b16 %v854
      %v1327 = vunpack.c.l.b16 %v855
      %v1328 = vunpack.c.l.b16 %v856
      %v1329 = vunpack.c.l.b16 %v857
      %v1330 = vunpack.c.l.b16 %v858
      %v1331 = vunpack.c.l.b16 %v859
      %v1332 = vunpack.c.l.b16 %v860
      %v1333 = vunpack.c.l.b16 %v861
      %v1334 = vunpack.c.l.b16 %v862
      %v1335 = vunpack.c.l.b16 %v863
      %v1336 = vunpack.c.l.b16 %v864
      %v1337 = vunpack.c.l.b16 %v865
      %v1338 = vunpack.c.l.b16 %v866
      %v1339 = vunpack.c.l.b16 %v867
      %v1340 = vunpack.c.l.b16 %v868
      %v1341 = vunpack.c.l.b16 %v869
      %v1342 = vunpack.c.l.b16 %v870
      %v1343 = vunpack.c.l.b16 %v871
      %v1344 = vunpack.c.l.b16 %v872
      %v1345 = vunpack.c.l.b16 %v873
      %v1346 = vunpack.c.l.b16 %v874
      %v1347 = vunpack.c.l.b16 %v875
      %v1348 = vunpack.c.l.b16 %v876
      %v1349 = vunpack.c.l.b16 %v877
      %v1350 = vunpack.c.l.b16 %v878
      %v1351 = vunpack.c.l.b16 %v879
      %v1352 = vunpack.c.l.b16 %v880
      %v1353 = vunpack.c.l.b16 %v881
      %v1354 = vunpack.c.l.b16 %v882
      %v1355 = vunpack.c.l.b16 %v883
      %v1356 = vunpack.c.l.b16 %v884
      %v1357 = vunpack.c.l.b16 %v885
      %v1358 = vunpack.c.l.b16 %v886
      %v1359 = vunpack.c.l.b16 %v887
      %v1360 = vunpack.c.l.b16 %v888
      %v1361 = vunpack.c.l.b16 %v889
      %v1362 = vunpack.c.l.b16 %v890
      %v1363 = vunpack.c.l.b16 %v891
      %v1364 = vunpack.c.l.b16 %v892
      %v1365 = vunpack.c.l.b16 %v893
      %v1366 = vunpack.c.l.b16 %v894
      %v1367 = vunpack.c.l.b16 %v895
      %v1368 = vunpack.c.l.b16 %v896
      %v1369 = vpack.c.b16 %v1226, %v1225
      %v1370 = vpack.c.b16 %v1228, %v1227
      %v1371 = vpack.c.b16 %v1230, %v1229
      %v1372 = vpack.c.b16 %v1232, %v1231
      %v1373 = vpack.c.b16 %v1234, %v1233
      %v1374 = vpack.c.b16 %v1236, %v1235
      %v1375 = vpack.c.b16 %v1238, %v1237
      %v1376 = vpack.c.b16 %v1240, %v1239
      %v1377 = vpack.c.b16 %v1242, %v1241
      %v1378 = vpack.c.b16 %v1244, %v1243
      %v1379 = vpack.c.b16 %v1246, %v1245
      %v1380 = vpack.c.b16 %v1248, %v1247
      %v1381 = vpack.c.b16 %v1250, %v1249
      %v1382 = vpack.c.b16 %v1252, %v1251
      %v1383 = vpack.c.b16 %v1254, %v1253
      %v1384 = vpack.c.b16 %v1256, %v1255
      %v1385 = vpack.c.b16 %v1258, %v1257
      %v1386 = vpack.c.b16 %v1260, %v1259
      %v1387 = vpack.c.b16 %v1262, %v1261
      %v1388 = vpack.c.b16 %v1264, %v1263
      %v1389 = vpack.c.b16 %v1266, %v1265
      %v1390 = vpack.c.b16 %v1268, %v1267
      %v1391 = vpack.c.b16 %v1270, %v1269
      %v1392 = vpack.c.b16 %v1272, %v1271
      %v1393 = vpack.c.b16 %v1274, %v1273
      %v1394 = vpack.c.b16 %v1276, %v1275
      %v1395 = vpack.c.b16 %v1278, %v1277
      %v1396 = vpack.c.b16 %v1280, %v1279
      %v1397 = vpack.c.b16 %v1282, %v1281
      %v1398 = vpack.c.b16 %v1284, %v1283
      %v1399 = vpack.c.b16 %v1286, %v1285
      %v1400 = vpack.c.b16 %v1288, %v1287
      %v1401 = vpack.c.b16 %v1290, %v1289
      %v1402 = vpack.c.b16 %v1292, %v1291
      %v1403 = vpack.c.b16 %v1294, %v1293
      %v1404 = vpack.c.b16 %v1296, %v1295
      %v1405 = vpack.c.b16 %v1298, %v1297
      %v1406 = vpack.c.b16 %v1300, %v1299
      %v1407 = vpack.c.b16 %v1302, %v1301
      %v1408 = vpack.c.b16 %v1304, %v1303
      %v1409 = vpack.c.b16 %v1306, %v1305
      %v1410 = vpack.c.b16 %v1308, %v1307
      %v1411 = vpack.c.b16 %v1310, %v1309
      %v1412 = vpack.c.b16 %v1312, %v1311
      %v1413 = vpack.c.b16 %v1314, %v1313
      %v1414 = vpack.c.b16 %v1316, %v1315
      %v1415 = vpack.c.b16 %v1318, %v1317
      %v1416 = vpack.c.b16 %v1320, %v1319
      %v1417 = vpack.c.b16 %v1322, %v1321
      %v1418 = vpack.c.b16 %v1324, %v1323
      %v1419 = vpack.c.b16 %v1326, %v1325
      %v1420 = vpack.c.b16 %v1328, %v1327
      %v1421 = vpack.c.b16 %v1330, %v1329
      %v1422 = vpack.c.b16 %v1332, %v1331
      %v1423 = vpack.c.b16 %v1334, %v1333
      %v1424 = vpack.c.b16 %v1336, %v1335
      %v1425 = vpack.c.b16 %v1338, %v1337
      %v1426 = vpack.c.b16 %v1340, %v1339
      %v1427 = vpack.c.b16 %v1342, %v1341
      %v1428 = vpack.c.b16 %v1344, %v1343
      %v1429 = vpack.c.b16 %v1346, %v1345
      %v1430 = vpack.c.b16 %v1348, %v1347
      %v1431 = vpack.c.b16 %v1350, %v1349
      %v1432 = vpack.c.b16 %v1352, %v1351
      %v1433 = vpack.c.b16 %v1354, %v1353
      %v1434 = vpack.c.b16 %v1356, %v1355
      %v1435 = vpack.c.b16 %v1358, %v1357
      %v1436 = vpack.c.b16 %v1360, %v1359
      %v1437 = vpack.c.b16 %v1362, %v1361
      %v1438 = vpack.c.b16 %v1364, %v1363
      %v1439 = vpack.c.b16 %v1366, %v1365
      %v1440 = vpack.c.b16 %v1368, %v1367
      %1513 = vmatprep.subr.bf16.mxu0 0
      %1514 = vmatpush1.bf16.msra.mxu0 %v1376
      %1515 = vmatprep.subr.bf16.mxu0 0
      %1516 = vmatpush1.bf16.msra.mxu0 %v1375
      %1517 = vmatprep.subr.bf16.mxu0 0
      %1518 = vmatpush1.bf16.msra.mxu0 %v1374
      %1519 = vmatprep.subr.bf16.mxu0 0
      %1520 = vmatpush1.bf16.msra.mxu0 %v1373
      %1521 = vmatprep.subr.bf16.mxu0 0
      %1522 = vmatpush1.bf16.msra.mxu0 %v1372
      %1523 = vmatprep.subr.bf16.mxu0 0
      %1524 = vmatpush1.bf16.msra.mxu0 %v1371
      %1525 = vmatprep.subr.bf16.mxu0 0
      %1526 = vmatpush1.bf16.msra.mxu0 %v1370
      %1527 = vmatprep.subr.bf16.mxu0 0
      %1528 = vmatpush1.bf16.msra.mxu0 %v1369
      %1529 = vmatprep.subr.bf16.mxu0 0
      %1530 = vmatpush2.bf16.msra.mxu0 %v1384
      %1531 = vmatprep.subr.bf16.mxu0 0
      %1532 = vmatpush2.bf16.msra.mxu0 %v1383
      %1533 = vmatprep.subr.bf16.mxu0 0
      %1534 = vmatpush2.bf16.msra.mxu0 %v1382
      %1535 = vmatprep.subr.bf16.mxu0 0
      %1536 = vmatpush2.bf16.msra.mxu0 %v1381
      %1537 = vmatprep.subr.bf16.mxu0 0
      %1538 = vmatpush2.bf16.msra.mxu0 %v1380
      %1539 = vmatprep.subr.bf16.mxu0 0
      %1540 = vmatpush2.bf16.msra.mxu0 %v1379
      %1541 = vmatprep.subr.bf16.mxu0 0
      %1542 = vmatpush2.bf16.msra.mxu0 %v1378
      %1543 = vmatprep.subr.bf16.mxu0 0
      %1544 = vmatpush2.bf16.msra.mxu0 %v1377
      %1545 = vmatprep.mubr.bf16.mxu0 %v1010
      %1546 = vmatmul.mubr.bf16.gmra.mxu0 %v1009
      %v1547 = vpop.f32.mrf.mxu0
      %v1548 = vadd.f32 0.0, %v1547
      %v1549 = vpop.f32.mrf.mxu0
      %v1550 = vpop.f32.mrf.mxu0
      %v1551 = vadd.f32 0.0, %v1550
      %v1552 = vpop.f32.mrf.mxu0
      %1553 = vmatprep.mubr.bf16.mxu0 %v1019
      %1554 = vmatmul.mubr.bf16.gmra.mxu0 %v1018
      %v1555 = vpop.f32.mrf.mxu0
      %v1556 = vadd.f32 0.0, %v1555
      %v1557 = vpop.f32.mrf.mxu0
      %v1558 = vpop.f32.mrf.mxu0
      %v1559 = vadd.f32 0.0, %v1558
      %v1560 = vpop.f32.mrf.mxu0
      %1561 = vmatprep.mubr.bf16.mxu0 %v1028
      %1562 = vmatmul.mubr.bf16.gmra.mxu0 %v1027
      %v1563 = vpop.f32.mrf.mxu0
      %v1564 = vadd.f32 0.0, %v1563
      %v1565 = vpop.f32.mrf.mxu0
      %v1566 = vpop.f32.mrf.mxu0
      %v1567 = vadd.f32 0.0, %v1566
      %v1568 = vpop.f32.mrf.mxu0
      %1569 = vmatprep.mubr.bf16.mxu0 %v1037
      %1570 = vmatmul.mubr.bf16.gmra.mxu0 %v1036
      %v1571 = vpop.f32.mrf.mxu0
      %v1572 = vadd.f32 0.0, %v1571
      %v1573 = vpop.f32.mrf.mxu0
      %v1574 = vpop.f32.mrf.mxu0
      %v1575 = vadd.f32 0.0, %v1574
      %v1576 = vpop.f32.mrf.mxu0
      %1577 = vdwg.mxu0
      %1578 = vmatprep.subr.bf16.mxu0 0
      %1579 = vmatpush1.bf16.msra.mxu0 %v1392
      %1580 = vmatprep.subr.bf16.mxu0 0
      %1581 = vmatpush1.bf16.msra.mxu0 %v1391
      %1582 = vmatprep.subr.bf16.mxu0 0
      %1583 = vmatpush1.bf16.msra.mxu0 %v1390
      %1584 = vmatprep.subr.bf16.mxu0 0
      %1585 = vmatpush1.bf16.msra.mxu0 %v1389
      %1586 = vmatprep.subr.bf16.mxu0 0
      %1587 = vmatpush1.bf16.msra.mxu0 %v1388
      %1588 = vmatprep.subr.bf16.mxu0 0
      %1589 = vmatpush1.bf16.msra.mxu0 %v1387
      %1590 = vmatprep.subr.bf16.mxu0 0
      %1591 = vmatpush1.bf16.msra.mxu0 %v1386
      %1592 = vmatprep.subr.bf16.mxu0 0
      %1593 = vmatpush1.bf16.msra.mxu0 %v1385
      %1594 = vmatprep.subr.bf16.mxu0 0
      %1595 = vmatpush2.bf16.msra.mxu0 %v1400
      %1596 = vmatprep.subr.bf16.mxu0 0
      %1597 = vmatpush2.bf16.msra.mxu0 %v1399
      %1598 = vmatprep.subr.bf16.mxu0 0
      %1599 = vmatpush2.bf16.msra.mxu0 %v1398
      %1600 = vmatprep.subr.bf16.mxu0 0
      %1601 = vmatpush2.bf16.msra.mxu0 %v1397
      %1602 = vmatprep.subr.bf16.mxu0 0
      %1603 = vmatpush2.bf16.msra.mxu0 %v1396
      %1604 = vmatprep.subr.bf16.mxu0 0
      %1605 = vmatpush2.bf16.msra.mxu0 %v1395
      %1606 = vmatprep.subr.bf16.mxu0 0
      %1607 = vmatpush2.bf16.msra.mxu0 %v1394
      %1608 = vmatprep.subr.bf16.mxu0 0
      %1609 = vmatpush2.bf16.msra.mxu0 %v1393
      %1610 = vmatprep.mubr.bf16.mxu0 %v1012
      %1611 = vmatmul.mubr.bf16.gmra.mxu0 %v1011
      %v1612 = vpop.f32.mrf.mxu0
      %v1613 = vadd.f32 %v1548, %v1612
      %v1614 = vpop.f32.mrf.mxu0
      %v1615 = vpop.f32.mrf.mxu0
      %v1616 = vadd.f32 %v1551, %v1615
      %v1617 = vpop.f32.mrf.mxu0
      %1618 = vmatprep.mubr.bf16.mxu0 %v1021
      %1619 = vmatmul.mubr.bf16.gmra.mxu0 %v1020
      %v1620 = vpop.f32.mrf.mxu0
      %v1621 = vadd.f32 %v1556, %v1620
      %v1622 = vpop.f32.mrf.mxu0
      %v1623 = vpop.f32.mrf.mxu0
      %v1624 = vadd.f32 %v1559, %v1623
      %v1625 = vpop.f32.mrf.mxu0
      %1626 = vmatprep.mubr.bf16.mxu0 %v1030
      %1627 = vmatmul.mubr.bf16.gmra.mxu0 %v1029
      %v1628 = vpop.f32.mrf.mxu0
      %v1629 = vadd.f32 %v1564, %v1628
      %v1630 = vpop.f32.mrf.mxu0
      %v1631 = vpop.f32.mrf.mxu0
      %v1632 = vadd.f32 %v1567, %v1631
      %v1633 = vpop.f32.mrf.mxu0
      %1634 = vmatprep.mubr.bf16.mxu0 %v1039
      %1635 = vmatmul.mubr.bf16.gmra.mxu0 %v1038
      %v1636 = vpop.f32.mrf.mxu0
      %v1637 = vadd.f32 %v1572, %v1636
      %v1638 = vpop.f32.mrf.mxu0
      %v1639 = vpop.f32.mrf.mxu0
      %v1640 = vadd.f32 %v1575, %v1639
      %v1641 = vpop.f32.mrf.mxu0
      %1642 = vdwg.mxu0
      %1643 = vmatprep.subr.bf16.mxu0 0
      %1644 = vmatpush1.bf16.msra.mxu0 %v1408
      %1645 = vmatprep.subr.bf16.mxu0 0
      %1646 = vmatpush1.bf16.msra.mxu0 %v1407
      %1647 = vmatprep.subr.bf16.mxu0 0
      %1648 = vmatpush1.bf16.msra.mxu0 %v1406
      %1649 = vmatprep.subr.bf16.mxu0 0
      %1650 = vmatpush1.bf16.msra.mxu0 %v1405
      %1651 = vmatprep.subr.bf16.mxu0 0
      %1652 = vmatpush1.bf16.msra.mxu0 %v1404
      %1653 = vmatprep.subr.bf16.mxu0 0
      %1654 = vmatpush1.bf16.msra.mxu0 %v1403
      %1655 = vmatprep.subr.bf16.mxu0 0
      %1656 = vmatpush1.bf16.msra.mxu0 %v1402
      %1657 = vmatprep.subr.bf16.mxu0 0
      %1658 = vmatpush1.bf16.msra.mxu0 %v1401
      %1659 = vmatprep.subr.bf16.mxu0 0
      %1660 = vmatpush2.bf16.msra.mxu0 %v1416
      %1661 = vmatprep.subr.bf16.mxu0 0
      %1662 = vmatpush2.bf16.msra.mxu0 %v1415
      %1663 = vmatprep.subr.bf16.mxu0 0
      %1664 = vmatpush2.bf16.msra.mxu0 %v1414
      %1665 = vmatprep.subr.bf16.mxu0 0
      %1666 = vmatpush2.bf16.msra.mxu0 %v1413
      %1667 = vmatprep.subr.bf16.mxu0 0
      %1668 = vmatpush2.bf16.msra.mxu0 %v1412
      %1669 = vmatprep.subr.bf16.mxu0 0
      %1670 = vmatpush2.bf16.msra.mxu0 %v1411
      %1671 = vmatprep.subr.bf16.mxu0 0
      %1672 = vmatpush2.bf16.msra.mxu0 %v1410
      %1673 = vmatprep.subr.bf16.mxu0 0
      %1674 = vmatpush2.bf16.msra.mxu0 %v1409
      %1675 = vmatprep.mubr.bf16.mxu0 %v1014
      %1676 = vmatmul.mubr.bf16.gmra.mxu0 %v1013
      %v1677 = vpop.f32.mrf.mxu0
      %v1678 = vadd.f32 %v1613, %v1677
      %v1679 = vpop.f32.mrf.mxu0
      %v1680 = vpop.f32.mrf.mxu0
      %v1681 = vadd.f32 %v1616, %v1680
      %v1682 = vpop.f32.mrf.mxu0
      %1683 = vmatprep.mubr.bf16.mxu0 %v1023
      %1684 = vmatmul.mubr.bf16.gmra.mxu0 %v1022
      %v1685 = vpop.f32.mrf.mxu0
      %v1686 = vadd.f32 %v1621, %v1685
      %v1687 = vpop.f32.mrf.mxu0
      %v1688 = vpop.f32.mrf.mxu0
      %v1689 = vadd.f32 %v1624, %v1688
      %v1690 = vpop.f32.mrf.mxu0
      %1691 = vmatprep.mubr.bf16.mxu0 %v1032
      %1692 = vmatmul.mubr.bf16.gmra.mxu0 %v1031
      %v1693 = vpop.f32.mrf.mxu0
      %v1694 = vadd.f32 %v1629, %v1693
      %v1695 = vpop.f32.mrf.mxu0
      %v1696 = vpop.f32.mrf.mxu0
      %v1697 = vadd.f32 %v1632, %v1696
      %v1698 = vpop.f32.mrf.mxu0
      %1699 = vmatprep.mubr.bf16.mxu0 %v1041
      %1700 = vmatmul.mubr.bf16.gmra.mxu0 %v1040
      %v1701 = vpop.f32.mrf.mxu0
      %v1702 = vadd.f32 %v1637, %v1701
      %v1703 = vpop.f32.mrf.mxu0
      %v1704 = vpop.f32.mrf.mxu0
      %v1705 = vadd.f32 %v1640, %v1704
      %v1706 = vpop.f32.mrf.mxu0
      %1707 = vdwg.mxu0
      %1708 = vmatprep.subr.bf16.mxu0 0
      %1709 = vmatpush1.bf16.msra.mxu0 %v1424
      %1710 = vmatprep.subr.bf16.mxu0 0
      %1711 = vmatpush1.bf16.msra.mxu0 %v1423
      %1712 = vmatprep.subr.bf16.mxu0 0
      %1713 = vmatpush1.bf16.msra.mxu0 %v1422
      %1714 = vmatprep.subr.bf16.mxu0 0
      %1715 = vmatpush1.bf16.msra.mxu0 %v1421
      %1716 = vmatprep.subr.bf16.mxu0 0
      %1717 = vmatpush1.bf16.msra.mxu0 %v1420
      %1718 = vmatprep.subr.bf16.mxu0 0
      %1719 = vmatpush1.bf16.msra.mxu0 %v1419
      %1720 = vmatprep.subr.bf16.mxu0 0
      %1721 = vmatpush1.bf16.msra.mxu0 %v1418
      %1722 = vmatprep.subr.bf16.mxu0 0
      %1723 = vmatpush1.bf16.msra.mxu0 %v1417
      %1724 = vmatprep.subr.bf16.mxu0 0
      %1725 = vmatpush2.bf16.msra.mxu0 %v1432
      %1726 = vmatprep.subr.bf16.mxu0 0
      %1727 = vmatpush2.bf16.msra.mxu0 %v1431
      %1728 = vmatprep.subr.bf16.mxu0 0
      %1729 = vmatpush2.bf16.msra.mxu0 %v1430
      %1730 = vmatprep.subr.bf16.mxu0 0
      %1731 = vmatpush2.bf16.msra.mxu0 %v1429
      %1732 = vmatprep.subr.bf16.mxu0 0
      %1733 = vmatpush2.bf16.msra.mxu0 %v1428
      %1734 = vmatprep.subr.bf16.mxu0 0
      %1735 = vmatpush2.bf16.msra.mxu0 %v1427
      %1736 = vmatprep.subr.bf16.mxu0 0
      %1737 = vmatpush2.bf16.msra.mxu0 %v1426
      %1738 = vmatprep.subr.bf16.mxu0 0
      %1739 = vmatpush2.bf16.msra.mxu0 %v1425
      %1740 = vmatprep.mubr.bf16.mxu0 %v1016
      %1741 = vmatmul.mubr.bf16.gmra.mxu0 %v1015
      %v1742 = vpop.f32.mrf.mxu0
      %v1743 = vadd.f32 %v1678, %v1742
      %v1744 = vpop.f32.mrf.mxu0
      %v1745 = vpop.f32.mrf.mxu0
      %v1746 = vadd.f32 %v1681, %v1745
      %v1747 = vpop.f32.mrf.mxu0
      %1748 = vmatprep.mubr.bf16.mxu0 %v1025
      %1749 = vmatmul.mubr.bf16.gmra.mxu0 %v1024
      %v1750 = vpop.f32.mrf.mxu0
      %v1751 = vadd.f32 %v1686, %v1750
      %v1752 = vpop.f32.mrf.mxu0
      %v1753 = vpop.f32.mrf.mxu0
      %v1754 = vadd.f32 %v1689, %v1753
      %v1755 = vpop.f32.mrf.mxu0
      %1756 = vmatprep.mubr.bf16.mxu0 %v1034
      %1757 = vmatmul.mubr.bf16.gmra.mxu0 %v1033
      %v1758 = vpop.f32.mrf.mxu0
      %v1759 = vadd.f32 %v1694, %v1758
      %v1760 = vpop.f32.mrf.mxu0
      %v1761 = vpop.f32.mrf.mxu0
      %v1762 = vadd.f32 %v1697, %v1761
      %v1763 = vpop.f32.mrf.mxu0
      %1764 = vmatprep.mubr.bf16.mxu0 %v1043
      %1765 = vmatmul.mubr.bf16.gmra.mxu0 %v1042
      %v1766 = vpop.f32.mrf.mxu0
      %v1767 = vadd.f32 %v1702, %v1766
      %v1768 = vpop.f32.mrf.mxu0
      %v1769 = vpop.f32.mrf.mxu0
      %v1770 = vadd.f32 %v1705, %v1769
      %v1771 = vpop.f32.mrf.mxu0
      %1772 = vdwg.mxu0
      %1773 = vmatprep.subr.bf16.mxu0 0
      %1774 = vmatpush1.bf16.msra.mxu0 %v1440
      %1775 = vmatprep.subr.bf16.mxu0 0
      %1776 = vmatpush1.bf16.msra.mxu0 %v1439
      %1777 = vmatprep.subr.bf16.mxu0 0
      %1778 = vmatpush1.bf16.msra.mxu0 %v1438
      %1779 = vmatprep.subr.bf16.mxu0 0
      %1780 = vmatpush1.bf16.msra.mxu0 %v1437
      %1781 = vmatprep.subr.bf16.mxu0 0
      %1782 = vmatpush1.bf16.msra.mxu0 %v1436
      %1783 = vmatprep.subr.bf16.mxu0 0
      %1784 = vmatpush1.bf16.msra.mxu0 %v1435
      %1785 = vmatprep.subr.bf16.mxu0 0
      %1786 = vmatpush1.bf16.msra.mxu0 %v1434
      %1787 = vmatprep.subr.bf16.mxu0 0
      %1788 = vmatpush1.bf16.msra.mxu0 %v1433
      %1789 = vmatprep.subr.bf16.mxu0 0
      %1790 = vmatpush2.bf16.msra.mxu0 0
      %1791 = vmatprep.subr.bf16.mxu0 0
      %1792 = vmatpush2.bf16.msra.mxu0 0
      %1793 = vmatprep.subr.bf16.mxu0 0
      %1794 = vmatpush2.bf16.msra.mxu0 0
      %1795 = vmatprep.subr.bf16.mxu0 0
      %1796 = vmatpush2.bf16.msra.mxu0 0
      %1797 = vmatprep.subr.bf16.mxu0 0
      %1798 = vmatpush2.bf16.msra.mxu0 0
      %1799 = vmatprep.subr.bf16.mxu0 0
      %1800 = vmatpush2.bf16.msra.mxu0 0
      %1801 = vmatprep.subr.bf16.mxu0 0
      %1802 = vmatpush2.bf16.msra.mxu0 0
      %1803 = vmatprep.subr.bf16.mxu0 0
      %1804 = vmatpush2.bf16.msra.mxu0 0
      %1805 = vmatprep.mubr.bf16.mxu0 0
      %1806 = vmatmul.mubr.bf16.gmra.mxu0 %v1017
      %v1807 = vpop.f32.mrf.mxu0
      %v1808 = vadd.f32 %v1743, %v1807
      %v1809 = vpop.f32.mrf.mxu0
      %v1810 = vpop.f32.mrf.mxu0
      %v1811 = vadd.f32 %v1746, %v1810
      %v1812 = vpop.f32.mrf.mxu0
      %1813 = vmatprep.mubr.bf16.mxu0 0
      %1814 = vmatmul.mubr.bf16.gmra.mxu0 %v1026
      %v1815 = vpop.f32.mrf.mxu0
      %v1816 = vadd.f32 %v1751, %v1815
      %v1817 = vpop.f32.mrf.mxu0
      %v1818 = vpop.f32.mrf.mxu0
      %v1819 = vadd.f32 %v1754, %v1818
      %v1820 = vpop.f32.mrf.mxu0
      %1821 = vmatprep.mubr.bf16.mxu0 0
      %1822 = vmatmul.mubr.bf16.gmra.mxu0 %v1035
      %v1823 = vpop.f32.mrf.mxu0
      %v1824 = vadd.f32 %v1759, %v1823
      %v1825 = vpop.f32.mrf.mxu0
      %v1826 = vpop.f32.mrf.mxu0
      %v1827 = vadd.f32 %v1762, %v1826
      %v1828 = vpop.f32.mrf.mxu0
      %1829 = vmatprep.mubr.bf16.mxu0 0
      %1830 = vmatmul.mubr.bf16.gmra.mxu0 %v1044
      %v1831 = vpop.f32.mrf.mxu0
      %v1832 = vadd.f32 %v1767, %v1831
      %v1833 = vpop.f32.mrf.mxu0
      %v1834 = vpop.f32.mrf.mxu0
      %v1835 = vadd.f32 %v1770, %v1834
      %v1836 = vpop.f32.mrf.mxu0
      %1837 = vdwg.mxu0
      %1838 = vst [vmem:[%s204] sm:$0xff] %v1808
      %1839 = vst [vmem:[%s204 + $0x8] sm:$0xff] %v1811
      %1840 = vst [vmem:[%s204 + $0x10] sm:$0xff] %v1816
      %1841 = vst [vmem:[%s204 + $0x18] sm:$0xff] %v1819
      %1842 = vst [vmem:[%s204 + $0x20] sm:$0xff] %v1824
      %1843 = vst [vmem:[%s204 + $0x28] sm:$0xff] %v1827
      %1844 = vst [vmem:[%s204 + $0x30] sm:$0xff] %v1832
      %1845 = vst [vmem:[%s204 + $0x38] sm:$0xff] %v1835
      %v1846 = vadd.f32 %v1808, %v1811
      %v1847 = vadd.f32 %v1846, %v1816
      %v1848 = vadd.f32 %v1847, %v1819
      %v1849 = vadd.f32 %v1848, %v1824
      %v1850 = vadd.f32 %v1849, %v1827
      %v1851 = vadd.f32 %v1850, %v1832
      %v1852 = vadd.f32 %v1851, %v1835
      %v1853 = vrot.slane %v1852, 4
      %v1854 = vadd.f32 %v1852, %v1853
      %v1855 = vrot.slane %v1854, 2
      %v1856 = vadd.f32 %v1854, %v1855
      %v1857 = vrot.slane %v1856, 1
      %v1858 = vadd.f32 %v1856, %v1857
      %1859 = vst [vmem:[%s208] sm:$0x1] %v1858
      %v1860 = vmul.f32 %v1808, %v1808
      %v1861 = vmul.f32 %v1811, %v1811
      %v1862 = vmul.f32 %v1816, %v1816
      %v1863 = vmul.f32 %v1819, %v1819
      %v1864 = vmul.f32 %v1824, %v1824
      %v1865 = vmul.f32 %v1827, %v1827
      %v1866 = vmul.f32 %v1832, %v1832
      %v1867 = vmul.f32 %v1835, %v1835
      %v1868 = vadd.f32 %v1860, %v1861
      %v1869 = vadd.f32 %v1868, %v1862
      %v1870 = vadd.f32 %v1869, %v1863
      %v1871 = vadd.f32 %v1870, %v1864
      %v1872 = vadd.f32 %v1871, %v1865
      %v1873 = vadd.f32 %v1872, %v1866
      %v1874 = vadd.f32 %v1873, %v1867
      %v1875 = vrot.slane %v1874, 4
      %v1876 = vadd.f32 %v1874, %v1875
      %v1877 = vrot.slane %v1876, 2
      %v1878 = vadd.f32 %v1876, %v1877
      %v1879 = vrot.slane %v1878, 1
      %v1880 = vadd.f32 %v1878, %v1879
      %1881 = vst [vmem:[%s208 + $0x1] sm:$0x1] %v1880
      %p1882 = scmp.lt.s32.totalorder %s16, 1
      %s1883 = scalar_select %p1882, %s16, 1
      %s1884 = smul.addr %s1883, 8
      %s1885 = smul.addr %s1884, 8
      %s1886 = scalar_lea.vmem %s3, %s1885
      %p1887 = scmp.lt.s32.totalorder %s16, 1
      %s1888 = scalar_select %p1887, %s16, 1
      %s1889 = smul.addr %s1888, 2
      %s1890 = scalar_lea.vmem %s4, %s1889
      // Predicated region
      $region33: #{_basic_block_fwd.4} parent=31 // pred_check
        %p1891 = pneg %p102
      $region34: #{_basic_block_fwd.4} parent=31 // pred_check_branch
        %1893 = sbr.rel (%p1891) target = $region36
      $region35: #{_basic_block_fwd.4} parent=31 // pred_region
        _
      $region36: #{_basic_block_fwd.4} parent=31 // pred_fallthru
        _
      // Predicated region
      $region37: #{_basic_block_fwd.4} parent=31 // pred_check
        %p1894 = pneg %p128
      $region38: #{_basic_block_fwd.4} parent=31 // pred_check_branch
        %1896 = sbr.rel (%p1894) target = $region40
      $region39: #{_basic_block_fwd.4} parent=31 // pred_region
        _
      $region40: #{_basic_block_fwd.4} parent=31 // pred_fallthru
        _
    $region32: #{_basic_block_fwd.4} parent=5 // pred_fallthru
      _
    %p1897 = scmp.le.s32.totalorder 2, %s11
    // Predicated region
    $region41: #{_basic_block_fwd.4} parent=5 // pred_check
      %p1898 = pneg %p1897
    $region42: #{_basic_block_fwd.4} parent=5 // pred_check_branch
      %1900 = sbr.rel (%p1898) target = $region44
    $region43: #{_basic_block_fwd.4} parent=5 // pred_region
      %s1901 = ssub.s32 %s11, 2
      // Predicated region
      $region45: #{_basic_block_fwd.4} parent=43 // pred_check
        %p1902 = pneg %p108
      $region46: #{_basic_block_fwd.4} parent=43 // pred_check_branch
        %1904 = sbr.rel (%p1902) target = $region48
      $region47: #{_basic_block_fwd.4} parent=43 // pred_region
        %p1905 = scmp.lt.s32.totalorder %s17, 1
        %s1906 = scalar_select %p1905, %s17, 1
        %s1907 = smul.addr %s1906, 8
        %s1908 = smul.addr %s1907, 8
        %s1909 = scalar_lea.vmem %s3, %s1908
      $region48: #{_basic_block_fwd.4} parent=43 // pred_fallthru
        _
      // Predicated region
      $region49: #{_basic_block_fwd.4} parent=43 // pred_check
        %p1910 = pneg %p134
      $region50: #{_basic_block_fwd.4} parent=43 // pred_check_branch
        %1912 = sbr.rel (%p1910) target = $region52
      $region51: #{_basic_block_fwd.4} parent=43 // pred_region
        %p1913 = scmp.lt.s32.totalorder %s17, 1
        %s1914 = scalar_select %p1913, %s17, 1
        %s1915 = smul.addr %s1914, 2
        %s1916 = scalar_lea.vmem %s4, %s1915
      $region52: #{_basic_block_fwd.4} parent=43 // pred_fallthru
        _
    $region44: #{_basic_block_fwd.4} parent=5 // pred_fallthru
      _
  $region6: #{_basic_block_fwd.4} parent=0 // loop_footer
    %s15 = sadd.s32 1, %s11
  $region7: #{_basic_block_fwd.4} parent=0 // loop_footer_branch
    %10 = sbr.rel target = $region3
  $region8: #{_basic_block_fwd.4} parent=0 // loop_exit
    _

</llo_original>
